<compile_context>
chip_gen: v7x
topology: tpu7x:2x2x1
jax: 0.10.0
libtpu: 0.0.40
codegen_flags: <defaults>
</compile_context>

<pallas_src>
import math
import functools

import jax
import jax.numpy as jnp
from jax.experimental import pallas as pl
from jax.experimental.pallas import tpu as pltpu


# ----------------------------------------------------------------------------
# Kernel
# ----------------------------------------------------------------------------
def _lstm_kernel(x_ref, w_x_ref, w_h_ref, b_ref, w_out_ref, b_out_ref,
                 out_ref, gates_sc, h_sc, c_sc, *, t_blk, tb, hidden_p, unroll):
    """One (batch_tile, time_block) grid step of the fused LSTM recurrence."""
    s_blk = pl.program_id(1)

    @pl.when(s_blk == 0)
    def _():
        h_sc[...] = jnp.zeros_like(h_sc)
        c_sc[...] = jnp.zeros_like(c_sc)

    # ---- Hoisted input projection: one big MXU matmul per time block. ------
    # x_ref: (t_blk*tb, input_p) bf16; rows [s*tb:(s+1)*tb] are time step s.
    gates_sc[...] = (jnp.dot(x_ref[...], w_x_ref[...],
                             preferred_element_type=jnp.float32)
                     + b_ref[...])                    # (t_blk*tb, 3H) f32

    w_h = w_h_ref[...]                                # (hidden_p, 3H) bf16

    # ---- Serial recurrence: only h @ W_h + gate math per step. -------------
    def step(s, carry):
        h, c = carry
        row0 = pl.multiple_of(s * tb, 8)
        gates = (gates_sc[pl.ds(row0, tb), :]
                 + jnp.dot(h.astype(jnp.bfloat16), w_h,
                           preferred_element_type=jnp.float32))
        sig_if = jax.nn.sigmoid(gates[:, :2 * hidden_p])   # fused i|f sigmoid
        i_t = sig_if[:, :hidden_p]
        f_t = sig_if[:, hidden_p:]
        g_t = jnp.tanh(gates[:, 2 * hidden_p:])
        c = f_t * c + i_t * g_t
        h = jnp.tanh(c)
        return h, c

    h, c = jax.lax.fori_loop(0, t_blk, step, (h_sc[...], c_sc[...]),
                             unroll=unroll)
    h_sc[...] = h
    c_sc[...] = c

    # ---- Final Linear on the last time block only. --------------------------
    @pl.when(s_blk == pl.num_programs(1) - 1)
    def _():
        logits = (jnp.dot(h.astype(jnp.bfloat16), w_out_ref[...],
                          preferred_element_type=jnp.float32)
                  + b_out_ref[...])
        out_ref[...] = logits.astype(out_ref.dtype)


# ----------------------------------------------------------------------------
# Wrapper helpers
# ----------------------------------------------------------------------------
def _round_up(v, m):
    return ((v + m - 1) // m) * m


def _largest_divisor(n, candidates):
    for c in candidates:
        if n % c == 0:
            return c
    return n


def _pad2(a, rows, cols):
    return jnp.pad(a, ((0, rows - a.shape[0]), (0, cols - a.shape[1])))


def _nbytes(shape, dtype):
    return math.prod(shape) * jnp.dtype(dtype).itemsize


def _vmem_capacity_bytes():
    try:
        cap = getattr(pltpu.get_tpu_info(), "vmem_capacity_bytes", None)
        if cap:
            return int(cap)
    except Exception:
        pass
    return 64 * 1024 * 1024   # conservative default (safe on v7x too)


def _pick_time_block(seq_len, tb, hidden_p, budget_bytes=8 << 20):
    """Largest time block that divides seq_len and keeps the f32 gates scratch
    (t_blk*tb, 3*hidden_p) under a modest VMEM budget."""
    divisors = [c for c in (128, 64, 32, 16, 8) if seq_len % c == 0]
    for c in divisors:
        if c * tb * 3 * hidden_p * 4 <= budget_bytes:
            return c
    if divisors:
        return divisors[-1]
    # Odd / prime lengths: single block; the fori_loop keeps compile bounded.
    return seq_len


# ----------------------------------------------------------------------------
# Public forward
# ----------------------------------------------------------------------------
def no_output_gate_lstm(x, params):
    """x: (batch, seq_len, input_size) f32.  Returns (batch, categories) f32."""
    batch, seq_len, input_size = x.shape
    hidden = params["W_ii"].shape[1]
    categories = params["W_out"].shape[1]

    # Hardware-tile padding (exact: zero-padded hidden/input lanes give
    # i=f=sigmoid(0), g=tanh(0)=0 -> c=h stay identically 0).
    batch_p = _round_up(batch, 8)
    input_p = _round_up(input_size, 128)
    hidden_p = _round_up(hidden, 128)
    cat_p = _round_up(categories, 128)

    # Fused + padded gate weights; all matmul operands bf16, f32 accumulate.
    w_x = jnp.concatenate(
        [_pad2(params["W_ii"], input_p, hidden_p),
         _pad2(params["W_if"], input_p, hidden_p),
         _pad2(params["W_ig"], input_p, hidden_p)], axis=1).astype(jnp.bfloat16)
    w_h = jnp.concatenate(
        [_pad2(params["W_hi"], hidden_p, hidden_p),
         _pad2(params["W_hf"], hidden_p, hidden_p),
         _pad2(params["W_hg"], hidden_p, hidden_p)], axis=1).astype(jnp.bfloat16)
    bias = jnp.concatenate(
        [_pad2(params["b_ii"], 1, hidden_p),
         _pad2(params["b_if"], 1, hidden_p),
         _pad2(params["b_ig"], 1, hidden_p)], axis=1).astype(jnp.float32)
    w_out = _pad2(params["W_out"], hidden_p, cat_p).astype(jnp.bfloat16)
    b_out = _pad2(params["b_out"], 1, cat_p).astype(jnp.float32)

    # Batch tile (leading "parallel" axis) and time block.
    tb = _largest_divisor(batch_p, (256, 128, 64, 32, 16, 8))
    t_blk = _pick_time_block(seq_len, tb, hidden_p)
    n_bt = batch_p // tb
    n_st = seq_len // t_blk
    grid = (n_bt, n_st)

    # Marshal x to (n_time_blocks, n_batch_tiles, t_blk*tb, input_p) bf16 so
    # the kernel reads one contiguous lane-dense 2-D slab per grid step whose
    # rows [s*tb:(s+1)*tb] are local time step s for this batch tile.
    x_p = jnp.pad(x.astype(jnp.float32),
                  ((0, batch_p - batch), (0, 0), (0, input_p - input_size)))
    x_blk = (x_p.reshape(n_bt, tb, n_st, t_blk, input_p)
             .transpose(2, 0, 3, 1, 4)
             .reshape(n_st, n_bt, t_blk * tb, input_p)
             .astype(jnp.bfloat16))

    unroll = t_blk if t_blk <= 8 else 8
    kernel = functools.partial(_lstm_kernel, t_blk=t_blk, tb=tb,
                               hidden_p=hidden_p, unroll=unroll)

    # VMEM budget: double-buffered x / out blocks, weights (worst case double
    # buffered), resident gates / h / c scratch.  Clamped to 75% of physical.
    weight_bytes = (_nbytes(w_x.shape, jnp.bfloat16)
                    + _nbytes(w_h.shape, jnp.bfloat16)
                    + _nbytes(bias.shape, jnp.float32)
                    + _nbytes(w_out.shape, jnp.bfloat16)
                    + _nbytes(b_out.shape, jnp.float32))
    est = (2 * _nbytes((t_blk * tb, input_p), jnp.bfloat16)
           + 2 * weight_bytes
           + 2 * _nbytes((tb, cat_p), jnp.float32)
           + _nbytes((t_blk * tb, 3 * hidden_p), jnp.float32)
           + 2 * _nbytes((tb, hidden_p), jnp.float32))
    vmem_limit = int(min(max(2 * est, 16 << 20),
                         (3 * _vmem_capacity_bytes()) // 4))

    def _build(single_buffer_weights):
        def w_spec(shape):
            idx = lambda b, s: (0,) * len(shape)
            if single_buffer_weights:
                # Grid-invariant operands: no re-DMA, so 1 buffer is enough.
                return pl.BlockSpec(shape, idx, pipeline_mode=pl.Buffered(1))
            return pl.BlockSpec(shape, idx)

        return pl.pallas_call(
            kernel,
            out_shape=jax.ShapeDtypeStruct((batch_p, cat_p), jnp.float32),
            grid_spec=pltpu.PrefetchScalarGridSpec(
                num_scalar_prefetch=0,
                grid=grid,
                in_specs=[
                    # x slab: (time-block, batch-tile) leading dims squeezed.
                    pl.BlockSpec((None, None, t_blk * tb, input_p),
                                 lambda b, s: (s, b, 0, 0)),
                    w_spec((input_p, 3 * hidden_p)),
                    w_spec((hidden_p, 3 * hidden_p)),
                    w_spec((1, 3 * hidden_p)),
                    w_spec((hidden_p, cat_p)),
                    w_spec((1, cat_p)),
                ],
                out_specs=pl.BlockSpec((tb, cat_p), lambda b, s: (b, 0)),
                scratch_shapes=[
                    pltpu.VMEM((t_blk * tb, 3 * hidden_p), jnp.float32),  # x-gates
                    pltpu.VMEM((tb, hidden_p), jnp.float32),              # h_t
                    pltpu.VMEM((tb, hidden_p), jnp.float32),              # c_t
                ],
            ),
            compiler_params=pltpu.CompilerParams(
                dimension_semantics=("parallel", "arbitrary"),
                vmem_limit_bytes=vmem_limit),
        )

    args = (x_blk, w_x, w_h, bias, w_out, b_out)
    try:
        out = _build(True)(*args)
    except Exception:
        # pipeline_mode=pl.Buffered(1) unsupported on this jax version; fall
        # back to default double-buffered weight specs (correct, more VMEM).
        out = _build(False)(*args)

    return out[:batch, :categories]


# ----------------------------------------------------------------------------
# Params + pure-JAX reference (mirror the PyTorch module)
# ----------------------------------------------------------------------------
def init_params(key, input_size, hidden_size, categories):
    """Mirrors the PyTorch init: U(-stdv, stdv) everywhere, then b_if = 1."""
    stdv = 1.0 / math.sqrt(hidden_size)
    keys = jax.random.split(key, 12)
    u = lambda k, shape: jax.random.uniform(
        k, shape, dtype=jnp.float32, minval=-stdv, maxval=stdv)
    return {
        "W_ii": u(keys[0], (input_size, hidden_size)),
        "W_hi": u(keys[1], (hidden_size, hidden_size)),
        "b_ii": u(keys[2], (1, hidden_size)),
        "W_if": u(keys[3], (input_size, hidden_size)),
        "W_hf": u(keys[4], (hidden_size, hidden_size)),
        "b_if": jnp.ones((1, hidden_size), jnp.float32),   # constant_(b_if, 1)
        "W_ig": u(keys[5], (input_size, hidden_size)),
        "W_hg": u(keys[6], (hidden_size, hidden_size)),
        "b_ig": u(keys[7], (1, hidden_size)),
        # nn.Linear(hidden, categories): store weight transposed -> (hidden, cat)
        "W_out": u(keys[8], (hidden_size, categories)),
        "b_out": u(keys[9], (1, categories)),
    }


def reference_forward(x, params):
    """Pure-JAX f32 reference mirroring the PyTorch forward loop."""
    batch, seq_len, _ = x.shape
    hidden = params["W_ii"].shape[1]
    h = jnp.zeros((batch, hidden), jnp.float32)
    c = jnp.zeros((batch, hidden), jnp.float32)
    for t in range(seq_len):
        x_t = x[:, t, :]
        i_t = jax.nn.sigmoid(x_t @ params["W_ii"] + h @ params["W_hi"] + params["b_ii"])
        f_t = jax.nn.sigmoid(x_t @ params["W_if"] + h @ params["W_hf"] + params["b_if"])
        g_t = jnp.tanh(x_t @ params["W_ig"] + h @ params["W_hg"] + params["b_ig"])
        c = f_t * c + i_t * g_t
        h = jnp.tanh(c)
    return h @ params["W_out"] + params["b_out"]


if __name__ == "__main__":
    batch, seq_len, input_size, hidden_size, categories = 2, 8, 8, 32, 4

    key = jax.random.PRNGKey(0)
    k_x, k_p = jax.random.split(key)
    x = jax.random.normal(k_x, (batch, seq_len, input_size), dtype=jnp.float32)
    params = init_params(k_p, input_size, hidden_size, categories)

    out = no_output_gate_lstm(x, params)
    out = jax.block_until_ready(out)

    ref = reference_forward(x, params)
    assert out.shape == (batch, categories), out.shape
    # Tolerance loosened because matmul operands (x, h, W) are bf16 (f32 acc).
    max_err = float(jnp.max(jnp.abs(out - ref)))
    assert max_err < 5e-2, (max_err, out, ref)

    print("KERNEL_OK")
</pallas_src>

<mosaic_0001>
module attributes {stable_mosaic.version = 11 : i64} {
  func.func @_lstm_kernel(%arg0: i32, %arg1: i32, %arg2: memref<1x1x64x128xbf16, #tpu.memory_space<vmem>>, %arg3: memref<128x384xbf16, #tpu.memory_space<vmem>>, %arg4: memref<128x384xbf16, #tpu.memory_space<vmem>>, %arg5: memref<1x384xf32, #tpu.memory_space<vmem>>, %arg6: memref<128x128xbf16, #tpu.memory_space<vmem>>, %arg7: memref<1x128xf32, #tpu.memory_space<vmem>>, %arg8: memref<8x128xf32, #tpu.memory_space<vmem>>, %arg9: memref<64x384xf32, #tpu.memory_space<vmem>>, %arg10: memref<8x128xf32, #tpu.memory_space<vmem>>, %arg11: memref<8x128xf32, #tpu.memory_space<vmem>>) attributes {dimension_semantics = [#tpu.dimension_semantics<parallel>, #tpu.dimension_semantics<arbitrary>], iteration_bounds = array<i64: 1, 1>, scalar_prefetch = 0 : i64, scratch_operands = 3 : i64, tpu.core_type = #tpu.core_type<tc>, window_params = [{transform_indices = @transform_0, window_bounds = array<i64: 1, 1, 64, 128>}, {pipeline_mode = #tpu.pipeline_mode<synchronous>, transform_indices = @transform_1, window_bounds = array<i64: 128, 384>}, {pipeline_mode = #tpu.pipeline_mode<synchronous>, transform_indices = @transform_2, window_bounds = array<i64: 128, 384>}, {pipeline_mode = #tpu.pipeline_mode<synchronous>, transform_indices = @transform_3, window_bounds = array<i64: 1, 384>}, {pipeline_mode = #tpu.pipeline_mode<synchronous>, transform_indices = @transform_4, window_bounds = array<i64: 128, 128>}, {pipeline_mode = #tpu.pipeline_mode<synchronous>, transform_indices = @transform_5, window_bounds = array<i64: 1, 128>}, {transform_indices = @transform_6, window_bounds = array<i64: 8, 128>}]} {
    %c0_i32 = arith.constant 0 : i32
    %0 = arith.cmpi eq, %arg1, %c0_i32 : i32
    %1 = arith.extui %0 : i1 to i32
    %c0_i32_0 = arith.constant 0 : i32
    %2 = arith.cmpi ne, %1, %c0_i32_0 : i32
    scf.if %2 {
      %cst_55 = arith.constant 0.000000e+00 : f32
      %187 = vector.broadcast %cst_55 : f32 to vector<8x128xf32>
      %c0_56 = arith.constant 0 : index
      %c0_57 = arith.constant 0 : index
      %188 = vector.load %arg10[%c0_56, %c0_57] : memref<8x128xf32, #tpu.memory_space<vmem>>, vector<8x128xf32>
      tpu.vector_store %arg10[%c0_56, %c0_57], %187 {strides = array<i32>} : memref<8x128xf32, #tpu.memory_space<vmem>>, vector<8x128xf32>,
      %cst_58 = arith.constant 0.000000e+00 : f32
      %189 = vector.broadcast %cst_58 : f32 to vector<8x128xf32>
      %c0_59 = arith.constant 0 : index
      %c0_60 = arith.constant 0 : index
      %190 = vector.load %arg11[%c0_59, %c0_60] : memref<8x128xf32, #tpu.memory_space<vmem>>, vector<8x128xf32>
      tpu.vector_store %arg11[%c0_59, %c0_60], %189 {strides = array<i32>} : memref<8x128xf32, #tpu.memory_space<vmem>>, vector<8x128xf32>,
    } else {
    }
    %c0 = arith.constant 0 : index
    %c0_1 = arith.constant 0 : index
    %c0_2 = arith.constant 0 : index
    %c0_3 = arith.constant 0 : index
    %3 = vector.load %arg2[%c0, %c0_1, %c0_2, %c0_3] : memref<1x1x64x128xbf16, #tpu.memory_space<vmem>>, vector<1x1x64x128xbf16>
    %4 = vector.shape_cast %3 : vector<1x1x64x128xbf16> to vector<64x128xbf16>
    %c0_4 = arith.constant 0 : index
    %c0_5 = arith.constant 0 : index
    %5 = vector.load %arg3[%c0_4, %c0_5] : memref<128x384xbf16, #tpu.memory_space<vmem>>, vector<128x384xbf16>
    %cst = arith.constant dense<0.000000e+00> : vector<64x384xf32>
    %6 = tpu.matmul %4, %5, %cst {dimension_numbers = #tpu.dot_dimension_numbers<[1], [0], [0], [1], [0, 0, 1, 1], [], []>} : vector<64x128xbf16>, vector<128x384xbf16>, vector<64x384xf32> -> vector<64x384xf32>
    %c0_6 = arith.constant 0 : index
    %c0_7 = arith.constant 0 : index
    %7 = vector.load %arg5[%c0_6, %c0_7] : memref<1x384xf32, #tpu.memory_space<vmem>>, vector<1x384xf32>
    %8 = vector.broadcast %7 : vector<1x384xf32> to vector<64x384xf32>
    %9 = arith.addf %6, %8 : vector<64x384xf32>
    %c0_8 = arith.constant 0 : index
    %c0_9 = arith.constant 0 : index
    %10 = vector.load %arg9[%c0_8, %c0_9] : memref<64x384xf32, #tpu.memory_space<vmem>>, vector<64x384xf32>
    tpu.vector_store %arg9[%c0_8, %c0_9], %9 {strides = array<i32>} : memref<64x384xf32, #tpu.memory_space<vmem>>, vector<64x384xf32>,
    %c0_10 = arith.constant 0 : index
    %c0_11 = arith.constant 0 : index
    %11 = vector.load %arg4[%c0_10, %c0_11] : memref<128x384xbf16, #tpu.memory_space<vmem>>, vector<128x384xbf16>
    %c0_12 = arith.constant 0 : index
    %c0_13 = arith.constant 0 : index
    %12 = vector.load %arg10[%c0_12, %c0_13] : memref<8x128xf32, #tpu.memory_space<vmem>>, vector<8x128xf32>
    %c0_14 = arith.constant 0 : index
    %c0_15 = arith.constant 0 : index
    %13 = vector.load %arg11[%c0_14, %c0_15] : memref<8x128xf32, #tpu.memory_space<vmem>>, vector<8x128xf32>
    %c0_i32_16 = arith.constant 0 : i32
    %c8_i32 = arith.constant 8 : i32
    %14 = arith.muli %c0_i32_16, %c8_i32 : i32
    %15 = tpu.assume_multiple %14, 8 : i32
    %16 = arith.index_cast %15 : i32 to index
    %c0_17 = arith.constant 0 : index
    %17 = vector.load %arg9[%16, %c0_17] : memref<64x384xf32, #tpu.memory_space<vmem>>, vector<8x384xf32>
    %18 = arith.truncf %12 : vector<8x128xf32> to vector<8x128xbf16>
    %cst_18 = arith.constant dense<0.000000e+00> : vector<8x384xf32>
    %19 = tpu.matmul %18, %11, %cst_18 {dimension_numbers = #tpu.dot_dimension_numbers<[1], [0], [0], [1], [0, 0, 1, 1], [], []>} : vector<8x128xbf16>, vector<128x384xbf16>, vector<8x384xf32> -> vector<8x384xf32>
    %20 = arith.addf %17, %19 : vector<8x384xf32>
    %21 = vector.extract_strided_slice %20 {offsets = [0, 0], sizes = [8, 256], strides = [1, 1]} : vector<8x384xf32> to vector<8x256xf32>
    %22 = arith.negf %21 : vector<8x256xf32>
    %23 = math.exp %22 : vector<8x256xf32>
    %cst_19 = arith.constant 1.000000e+00 : f32
    %24 = vector.broadcast %cst_19 : f32 to vector<8x256xf32>
    %25 = arith.addf %24, %23 : vector<8x256xf32>
    %26 = arith.divf %24, %25 : vector<8x256xf32>
    %27 = vector.extract_strided_slice %26 {offsets = [0, 0], sizes = [8, 128], strides = [1, 1]} : vector<8x256xf32> to vector<8x128xf32>
    %28 = vector.extract_strided_slice %26 {offsets = [0, 128], sizes = [8, 128], strides = [1, 1]} : vector<8x256xf32> to vector<8x128xf32>
    %29 = vector.extract_strided_slice %20 {offsets = [0, 256], sizes = [8, 128], strides = [1, 1]} : vector<8x384xf32> to vector<8x128xf32>
    %30 = math.tanh %29 : vector<8x128xf32>
    %31 = arith.mulf %28, %13 : vector<8x128xf32>
    %32 = arith.mulf %27, %30 : vector<8x128xf32>
    %33 = arith.addf %31, %32 : vector<8x128xf32>
    %34 = math.tanh %33 : vector<8x128xf32>
    %c1_i32 = arith.constant 1 : i32
    %c8_i32_20 = arith.constant 8 : i32
    %35 = arith.muli %c1_i32, %c8_i32_20 : i32
    %36 = tpu.assume_multiple %35, 8 : i32
    %37 = arith.index_cast %36 : i32 to index
    %c0_21 = arith.constant 0 : index
    %38 = vector.load %arg9[%37, %c0_21] : memref<64x384xf32, #tpu.memory_space<vmem>>, vector<8x384xf32>
    %39 = arith.truncf %34 : vector<8x128xf32> to vector<8x128xbf16>
    %cst_22 = arith.constant dense<0.000000e+00> : vector<8x384xf32>
    %40 = tpu.matmul %39, %11, %cst_22 {dimension_numbers = #tpu.dot_dimension_numbers<[1], [0], [0], [1], [0, 0, 1, 1], [], []>} : vector<8x128xbf16>, vector<128x384xbf16>, vector<8x384xf32> -> vector<8x384xf32>
    %41 = arith.addf %38, %40 : vector<8x384xf32>
    %42 = vector.extract_strided_slice %41 {offsets = [0, 0], sizes = [8, 256], strides = [1, 1]} : vector<8x384xf32> to vector<8x256xf32>
    %43 = arith.negf %42 : vector<8x256xf32>
    %44 = math.exp %43 : vector<8x256xf32>
    %cst_23 = arith.constant 1.000000e+00 : f32
    %45 = vector.broadcast %cst_23 : f32 to vector<8x256xf32>
    %46 = arith.addf %45, %44 : vector<8x256xf32>
    %47 = arith.divf %45, %46 : vector<8x256xf32>
    %48 = vector.extract_strided_slice %47 {offsets = [0, 0], sizes = [8, 128], strides = [1, 1]} : vector<8x256xf32> to vector<8x128xf32>
    %49 = vector.extract_strided_slice %47 {offsets = [0, 128], sizes = [8, 128], strides = [1, 1]} : vector<8x256xf32> to vector<8x128xf32>
    %50 = vector.extract_strided_slice %41 {offsets = [0, 256], sizes = [8, 128], strides = [1, 1]} : vector<8x384xf32> to vector<8x128xf32>
    %51 = math.tanh %50 : vector<8x128xf32>
    %52 = arith.mulf %49, %33 : vector<8x128xf32>
    %53 = arith.mulf %48, %51 : vector<8x128xf32>
    %54 = arith.addf %52, %53 : vector<8x128xf32>
    %55 = math.tanh %54 : vector<8x128xf32>
    %c2_i32 = arith.constant 2 : i32
    %c8_i32_24 = arith.constant 8 : i32
    %56 = arith.muli %c2_i32, %c8_i32_24 : i32
    %57 = tpu.assume_multiple %56, 8 : i32
    %58 = arith.index_cast %57 : i32 to index
    %c0_25 = arith.constant 0 : index
    %59 = vector.load %arg9[%58, %c0_25] : memref<64x384xf32, #tpu.memory_space<vmem>>, vector<8x384xf32>
    %60 = arith.truncf %55 : vector<8x128xf32> to vector<8x128xbf16>
    %cst_26 = arith.constant dense<0.000000e+00> : vector<8x384xf32>
    %61 = tpu.matmul %60, %11, %cst_26 {dimension_numbers = #tpu.dot_dimension_numbers<[1], [0], [0], [1], [0, 0, 1, 1], [], []>} : vector<8x128xbf16>, vector<128x384xbf16>, vector<8x384xf32> -> vector<8x384xf32>
    %62 = arith.addf %59, %61 : vector<8x384xf32>
    %63 = vector.extract_strided_slice %62 {offsets = [0, 0], sizes = [8, 256], strides = [1, 1]} : vector<8x384xf32> to vector<8x256xf32>
    %64 = arith.negf %63 : vector<8x256xf32>
    %65 = math.exp %64 : vector<8x256xf32>
    %cst_27 = arith.constant 1.000000e+00 : f32
    %66 = vector.broadcast %cst_27 : f32 to vector<8x256xf32>
    %67 = arith.addf %66, %65 : vector<8x256xf32>
    %68 = arith.divf %66, %67 : vector<8x256xf32>
    %69 = vector.extract_strided_slice %68 {offsets = [0, 0], sizes = [8, 128], strides = [1, 1]} : vector<8x256xf32> to vector<8x128xf32>
    %70 = vector.extract_strided_slice %68 {offsets = [0, 128], sizes = [8, 128], strides = [1, 1]} : vector<8x256xf32> to vector<8x128xf32>
    %71 = vector.extract_strided_slice %62 {offsets = [0, 256], sizes = [8, 128], strides = [1, 1]} : vector<8x384xf32> to vector<8x128xf32>
    %72 = math.tanh %71 : vector<8x128xf32>
    %73 = arith.mulf %70, %54 : vector<8x128xf32>
    %74 = arith.mulf %69, %72 : vector<8x128xf32>
    %75 = arith.addf %73, %74 : vector<8x128xf32>
    %76 = math.tanh %75 : vector<8x128xf32>
    %c3_i32 = arith.constant 3 : i32
    %c8_i32_28 = arith.constant 8 : i32
    %77 = arith.muli %c3_i32, %c8_i32_28 : i32
    %78 = tpu.assume_multiple %77, 8 : i32
    %79 = arith.index_cast %78 : i32 to index
    %c0_29 = arith.constant 0 : index
    %80 = vector.load %arg9[%79, %c0_29] : memref<64x384xf32, #tpu.memory_space<vmem>>, vector<8x384xf32>
    %81 = arith.truncf %76 : vector<8x128xf32> to vector<8x128xbf16>
    %cst_30 = arith.constant dense<0.000000e+00> : vector<8x384xf32>
    %82 = tpu.matmul %81, %11, %cst_30 {dimension_numbers = #tpu.dot_dimension_numbers<[1], [0], [0], [1], [0, 0, 1, 1], [], []>} : vector<8x128xbf16>, vector<128x384xbf16>, vector<8x384xf32> -> vector<8x384xf32>
    %83 = arith.addf %80, %82 : vector<8x384xf32>
    %84 = vector.extract_strided_slice %83 {offsets = [0, 0], sizes = [8, 256], strides = [1, 1]} : vector<8x384xf32> to vector<8x256xf32>
    %85 = arith.negf %84 : vector<8x256xf32>
    %86 = math.exp %85 : vector<8x256xf32>
    %cst_31 = arith.constant 1.000000e+00 : f32
    %87 = vector.broadcast %cst_31 : f32 to vector<8x256xf32>
    %88 = arith.addf %87, %86 : vector<8x256xf32>
    %89 = arith.divf %87, %88 : vector<8x256xf32>
    %90 = vector.extract_strided_slice %89 {offsets = [0, 0], sizes = [8, 128], strides = [1, 1]} : vector<8x256xf32> to vector<8x128xf32>
    %91 = vector.extract_strided_slice %89 {offsets = [0, 128], sizes = [8, 128], strides = [1, 1]} : vector<8x256xf32> to vector<8x128xf32>
    %92 = vector.extract_strided_slice %83 {offsets = [0, 256], sizes = [8, 128], strides = [1, 1]} : vector<8x384xf32> to vector<8x128xf32>
    %93 = math.tanh %92 : vector<8x128xf32>
    %94 = arith.mulf %91, %75 : vector<8x128xf32>
    %95 = arith.mulf %90, %93 : vector<8x128xf32>
    %96 = arith.addf %94, %95 : vector<8x128xf32>
    %97 = math.tanh %96 : vector<8x128xf32>
    %c4_i32 = arith.constant 4 : i32
    %c8_i32_32 = arith.constant 8 : i32
    %98 = arith.muli %c4_i32, %c8_i32_32 : i32
    %99 = tpu.assume_multiple %98, 8 : i32
    %100 = arith.index_cast %99 : i32 to index
    %c0_33 = arith.constant 0 : index
    %101 = vector.load %arg9[%100, %c0_33] : memref<64x384xf32, #tpu.memory_space<vmem>>, vector<8x384xf32>
    %102 = arith.truncf %97 : vector<8x128xf32> to vector<8x128xbf16>
    %cst_34 = arith.constant dense<0.000000e+00> : vector<8x384xf32>
    %103 = tpu.matmul %102, %11, %cst_34 {dimension_numbers = #tpu.dot_dimension_numbers<[1], [0], [0], [1], [0, 0, 1, 1], [], []>} : vector<8x128xbf16>, vector<128x384xbf16>, vector<8x384xf32> -> vector<8x384xf32>
    %104 = arith.addf %101, %103 : vector<8x384xf32>
    %105 = vector.extract_strided_slice %104 {offsets = [0, 0], sizes = [8, 256], strides = [1, 1]} : vector<8x384xf32> to vector<8x256xf32>
    %106 = arith.negf %105 : vector<8x256xf32>
    %107 = math.exp %106 : vector<8x256xf32>
    %cst_35 = arith.constant 1.000000e+00 : f32
    %108 = vector.broadcast %cst_35 : f32 to vector<8x256xf32>
    %109 = arith.addf %108, %107 : vector<8x256xf32>
    %110 = arith.divf %108, %109 : vector<8x256xf32>
    %111 = vector.extract_strided_slice %110 {offsets = [0, 0], sizes = [8, 128], strides = [1, 1]} : vector<8x256xf32> to vector<8x128xf32>
    %112 = vector.extract_strided_slice %110 {offsets = [0, 128], sizes = [8, 128], strides = [1, 1]} : vector<8x256xf32> to vector<8x128xf32>
    %113 = vector.extract_strided_slice %104 {offsets = [0, 256], sizes = [8, 128], strides = [1, 1]} : vector<8x384xf32> to vector<8x128xf32>
    %114 = math.tanh %113 : vector<8x128xf32>
    %115 = arith.mulf %112, %96 : vector<8x128xf32>
    %116 = arith.mulf %111, %114 : vector<8x128xf32>
    %117 = arith.addf %115, %116 : vector<8x128xf32>
    %118 = math.tanh %117 : vector<8x128xf32>
    %c5_i32 = arith.constant 5 : i32
    %c8_i32_36 = arith.constant 8 : i32
    %119 = arith.muli %c5_i32, %c8_i32_36 : i32
    %120 = tpu.assume_multiple %119, 8 : i32
    %121 = arith.index_cast %120 : i32 to index
    %c0_37 = arith.constant 0 : index
    %122 = vector.load %arg9[%121, %c0_37] : memref<64x384xf32, #tpu.memory_space<vmem>>, vector<8x384xf32>
    %123 = arith.truncf %118 : vector<8x128xf32> to vector<8x128xbf16>
    %cst_38 = arith.constant dense<0.000000e+00> : vector<8x384xf32>
    %124 = tpu.matmul %123, %11, %cst_38 {dimension_numbers = #tpu.dot_dimension_numbers<[1], [0], [0], [1], [0, 0, 1, 1], [], []>} : vector<8x128xbf16>, vector<128x384xbf16>, vector<8x384xf32> -> vector<8x384xf32>
    %125 = arith.addf %122, %124 : vector<8x384xf32>
    %126 = vector.extract_strided_slice %125 {offsets = [0, 0], sizes = [8, 256], strides = [1, 1]} : vector<8x384xf32> to vector<8x256xf32>
    %127 = arith.negf %126 : vector<8x256xf32>
    %128 = math.exp %127 : vector<8x256xf32>
    %cst_39 = arith.constant 1.000000e+00 : f32
    %129 = vector.broadcast %cst_39 : f32 to vector<8x256xf32>
    %130 = arith.addf %129, %128 : vector<8x256xf32>
    %131 = arith.divf %129, %130 : vector<8x256xf32>
    %132 = vector.extract_strided_slice %131 {offsets = [0, 0], sizes = [8, 128], strides = [1, 1]} : vector<8x256xf32> to vector<8x128xf32>
    %133 = vector.extract_strided_slice %131 {offsets = [0, 128], sizes = [8, 128], strides = [1, 1]} : vector<8x256xf32> to vector<8x128xf32>
    %134 = vector.extract_strided_slice %125 {offsets = [0, 256], sizes = [8, 128], strides = [1, 1]} : vector<8x384xf32> to vector<8x128xf32>
    %135 = math.tanh %134 : vector<8x128xf32>
    %136 = arith.mulf %133, %117 : vector<8x128xf32>
    %137 = arith.mulf %132, %135 : vector<8x128xf32>
    %138 = arith.addf %136, %137 : vector<8x128xf32>
    %139 = math.tanh %138 : vector<8x128xf32>
    %c6_i32 = arith.constant 6 : i32
    %c8_i32_40 = arith.constant 8 : i32
    %140 = arith.muli %c6_i32, %c8_i32_40 : i32
    %141 = tpu.assume_multiple %140, 8 : i32
    %142 = arith.index_cast %141 : i32 to index
    %c0_41 = arith.constant 0 : index
    %143 = vector.load %arg9[%142, %c0_41] : memref<64x384xf32, #tpu.memory_space<vmem>>, vector<8x384xf32>
    %144 = arith.truncf %139 : vector<8x128xf32> to vector<8x128xbf16>
    %cst_42 = arith.constant dense<0.000000e+00> : vector<8x384xf32>
    %145 = tpu.matmul %144, %11, %cst_42 {dimension_numbers = #tpu.dot_dimension_numbers<[1], [0], [0], [1], [0, 0, 1, 1], [], []>} : vector<8x128xbf16>, vector<128x384xbf16>, vector<8x384xf32> -> vector<8x384xf32>
    %146 = arith.addf %143, %145 : vector<8x384xf32>
    %147 = vector.extract_strided_slice %146 {offsets = [0, 0], sizes = [8, 256], strides = [1, 1]} : vector<8x384xf32> to vector<8x256xf32>
    %148 = arith.negf %147 : vector<8x256xf32>
    %149 = math.exp %148 : vector<8x256xf32>
    %cst_43 = arith.constant 1.000000e+00 : f32
    %150 = vector.broadcast %cst_43 : f32 to vector<8x256xf32>
    %151 = arith.addf %150, %149 : vector<8x256xf32>
    %152 = arith.divf %150, %151 : vector<8x256xf32>
    %153 = vector.extract_strided_slice %152 {offsets = [0, 0], sizes = [8, 128], strides = [1, 1]} : vector<8x256xf32> to vector<8x128xf32>
    %154 = vector.extract_strided_slice %152 {offsets = [0, 128], sizes = [8, 128], strides = [1, 1]} : vector<8x256xf32> to vector<8x128xf32>
    %155 = vector.extract_strided_slice %146 {offsets = [0, 256], sizes = [8, 128], strides = [1, 1]} : vector<8x384xf32> to vector<8x128xf32>
    %156 = math.tanh %155 : vector<8x128xf32>
    %157 = arith.mulf %154, %138 : vector<8x128xf32>
    %158 = arith.mulf %153, %156 : vector<8x128xf32>
    %159 = arith.addf %157, %158 : vector<8x128xf32>
    %160 = math.tanh %159 : vector<8x128xf32>
    %c7_i32 = arith.constant 7 : i32
    %c8_i32_44 = arith.constant 8 : i32
    %161 = arith.muli %c7_i32, %c8_i32_44 : i32
    %162 = tpu.assume_multiple %161, 8 : i32
    %163 = arith.index_cast %162 : i32 to index
    %c0_45 = arith.constant 0 : index
    %164 = vector.load %arg9[%163, %c0_45] : memref<64x384xf32, #tpu.memory_space<vmem>>, vector<8x384xf32>
    %165 = arith.truncf %160 : vector<8x128xf32> to vector<8x128xbf16>
    %cst_46 = arith.constant dense<0.000000e+00> : vector<8x384xf32>
    %166 = tpu.matmul %165, %11, %cst_46 {dimension_numbers = #tpu.dot_dimension_numbers<[1], [0], [0], [1], [0, 0, 1, 1], [], []>} : vector<8x128xbf16>, vector<128x384xbf16>, vector<8x384xf32> -> vector<8x384xf32>
    %167 = arith.addf %164, %166 : vector<8x384xf32>
    %168 = vector.extract_strided_slice %167 {offsets = [0, 0], sizes = [8, 256], strides = [1, 1]} : vector<8x384xf32> to vector<8x256xf32>
    %169 = arith.negf %168 : vector<8x256xf32>
    %170 = math.exp %169 : vector<8x256xf32>
    %cst_47 = arith.constant 1.000000e+00 : f32
    %171 = vector.broadcast %cst_47 : f32 to vector<8x256xf32>
    %172 = arith.addf %171, %170 : vector<8x256xf32>
    %173 = arith.divf %171, %172 : vector<8x256xf32>
    %174 = vector.extract_strided_slice %173 {offsets = [0, 0], sizes = [8, 128], strides = [1, 1]} : vector<8x256xf32> to vector<8x128xf32>
    %175 = vector.extract_strided_slice %173 {offsets = [0, 128], sizes = [8, 128], strides = [1, 1]} : vector<8x256xf32> to vector<8x128xf32>
    %176 = vector.extract_strided_slice %167 {offsets = [0, 256], sizes = [8, 128], strides = [1, 1]} : vector<8x384xf32> to vector<8x128xf32>
    %177 = math.tanh %176 : vector<8x128xf32>
    %178 = arith.mulf %175, %159 : vector<8x128xf32>
    %179 = arith.mulf %174, %177 : vector<8x128xf32>
    %180 = arith.addf %178, %179 : vector<8x128xf32>
    %181 = math.tanh %180 : vector<8x128xf32>
    %c8_i32_48 = arith.constant 8 : i32
    %c0_49 = arith.constant 0 : index
    %c0_50 = arith.constant 0 : index
    %182 = vector.load %arg10[%c0_49, %c0_50] : memref<8x128xf32, #tpu.memory_space<vmem>>, vector<8x128xf32>
    tpu.vector_store %arg10[%c0_49, %c0_50], %181 {strides = array<i32>} : memref<8x128xf32, #tpu.memory_space<vmem>>, vector<8x128xf32>,
    %c0_51 = arith.constant 0 : index
    %c0_52 = arith.constant 0 : index
    %183 = vector.load %arg11[%c0_51, %c0_52] : memref<8x128xf32, #tpu.memory_space<vmem>>, vector<8x128xf32>
    tpu.vector_store %arg11[%c0_51, %c0_52], %180 {strides = array<i32>} : memref<8x128xf32, #tpu.memory_space<vmem>>, vector<8x128xf32>,
    %c0_i32_53 = arith.constant 0 : i32
    %184 = arith.cmpi eq, %arg1, %c0_i32_53 : i32
    %185 = arith.extui %184 : i1 to i32
    %c0_i32_54 = arith.constant 0 : i32
    %186 = arith.cmpi ne, %185, %c0_i32_54 : i32
    scf.if %186 {
      %187 = arith.truncf %181 : vector<8x128xf32> to vector<8x128xbf16>
      %c0_55 = arith.constant 0 : index
      %c0_56 = arith.constant 0 : index
      %188 = vector.load %arg6[%c0_55, %c0_56] : memref<128x128xbf16, #tpu.memory_space<vmem>>, vector<128x128xbf16>
      %cst_57 = arith.constant dense<0.000000e+00> : vector<8x128xf32>
      %189 = tpu.matmul %187, %188, %cst_57 {dimension_numbers = #tpu.dot_dimension_numbers<[1], [0], [0], [1], [0, 0, 1, 1], [], []>} : vector<8x128xbf16>, vector<128x128xbf16>, vector<8x128xf32> -> vector<8x128xf32>
      %c0_58 = arith.constant 0 : index
      %c0_59 = arith.constant 0 : index
      %190 = vector.load %arg7[%c0_58, %c0_59] : memref<1x128xf32, #tpu.memory_space<vmem>>, vector<1x128xf32>
      %191 = vector.broadcast %190 : vector<1x128xf32> to vector<8x128xf32>
      %192 = arith.addf %189, %191 : vector<8x128xf32>
      %c0_60 = arith.constant 0 : index
      %c0_61 = arith.constant 0 : index
      %193 = vector.load %arg8[%c0_60, %c0_61] : memref<8x128xf32, #tpu.memory_space<vmem>>, vector<8x128xf32>
      tpu.vector_store %arg8[%c0_60, %c0_61], %192 {strides = array<i32>} : memref<8x128xf32, #tpu.memory_space<vmem>>, vector<8x128xf32>,
    } else {
    }
    return
  }
  func.func @transform_0(%arg0: i32, %arg1: i32) -> (i32, i32, i32, i32) {
    %c0_i32 = arith.constant 0 : i32
    %c0_i32_0 = arith.constant 0 : i32
    %c0_i32_1 = arith.constant 0 : i32
    return %arg1, %arg0, %c0_i32, %c0_i32_0 : i32, i32, i32, i32
  }
  func.func @transform_1(%arg0: i32, %arg1: i32) -> (i32, i32) {
    %c0_i32 = arith.constant 0 : i32
    %c0_i32_0 = arith.constant 0 : i32
    %c0_i32_1 = arith.constant 0 : i32
    return %c0_i32, %c0_i32_0 : i32, i32
  }
  func.func @transform_2(%arg0: i32, %arg1: i32) -> (i32, i32) {
    %c0_i32 = arith.constant 0 : i32
    %c0_i32_0 = arith.constant 0 : i32
    %c0_i32_1 = arith.constant 0 : i32
    return %c0_i32, %c0_i32_0 : i32, i32
  }
  func.func @transform_3(%arg0: i32, %arg1: i32) -> (i32, i32) {
    %c0_i32 = arith.constant 0 : i32
    %c0_i32_0 = arith.constant 0 : i32
    %c0_i32_1 = arith.constant 0 : i32
    return %c0_i32, %c0_i32_0 : i32, i32
  }
  func.func @transform_4(%arg0: i32, %arg1: i32) -> (i32, i32) {
    %c0_i32 = arith.constant 0 : i32
    %c0_i32_0 = arith.constant 0 : i32
    %c0_i32_1 = arith.constant 0 : i32
    return %c0_i32, %c0_i32_0 : i32, i32
  }
  func.func @transform_5(%arg0: i32, %arg1: i32) -> (i32, i32) {
    %c0_i32 = arith.constant 0 : i32
    %c0_i32_0 = arith.constant 0 : i32
    %c0_i32_1 = arith.constant 0 : i32
    return %c0_i32, %c0_i32_0 : i32, i32
  }
  func.func @transform_6(%arg0: i32, %arg1: i32) -> (i32, i32) {
    %c0_i32 = arith.constant 0 : i32
    %c0_i32_0 = arith.constant 0 : i32
    return %arg0, %c0_i32 : i32, i32
  }
}

module attributes {stable_mosaic.version = 11 : i64} {
  func.func @_lstm_kernel(%arg0: i32, %arg1: i32, %arg2: memref<1x1x64x128xbf16, #tpu.memory_space<vmem>>, %arg3: memref<128x384xbf16, #tpu.memory_space<vmem>>, %arg4: memref<128x384xbf16, #tpu.memory_space<vmem>>, %arg5: memref<1x384xf32, #tpu.memory_space<vmem>>, %arg6: memref<128x128xbf16, #tpu.memory_space<vmem>>, %arg7: memref<1x128xf32, #tpu.memory_space<vmem>>, %arg8: memref<8x128xf32, #tpu.memory_space<vmem>>, %arg9: memref<64x384xf32, #tpu.memory_space<vmem>>, %arg10: memref<8x128xf32, #tpu.memory_space<vmem>>, %arg11: memref<8x128xf32, #tpu.memory_space<vmem>>) attributes {dimension_semantics = [#tpu.dimension_semantics<parallel>, #tpu.dimension_semantics<arbitrary>], iteration_bounds = array<i64: 1, 1>, scalar_prefetch = 0 : i64, scratch_operands = 3 : i64, tpu.core_type = #tpu.core_type<tc>, window_params = [{transform_indices = @transform_0, window_bounds = array<i64: 1, 1, 64, 128>}, {pipeline_mode = #tpu.pipeline_mode<synchronous>, transform_indices = @transform_1, window_bounds = array<i64: 128, 384>}, {pipeline_mode = #tpu.pipeline_mode<synchronous>, transform_indices = @transform_2, window_bounds = array<i64: 128, 384>}, {pipeline_mode = #tpu.pipeline_mode<synchronous>, transform_indices = @transform_3, window_bounds = array<i64: 1, 384>}, {pipeline_mode = #tpu.pipeline_mode<synchronous>, transform_indices = @transform_4, window_bounds = array<i64: 128, 128>}, {pipeline_mode = #tpu.pipeline_mode<synchronous>, transform_indices = @transform_5, window_bounds = array<i64: 1, 128>}, {transform_indices = @transform_6, window_bounds = array<i64: 8, 128>}]} {
    %c0_i32 = arith.constant 0 : i32
    %0 = arith.cmpi eq, %arg1, %c0_i32 : i32
    %1 = arith.extui %0 : i1 to i32
    %c0_i32_0 = arith.constant 0 : i32
    %2 = arith.cmpi ne, %1, %c0_i32_0 : i32
    scf.if %2 {
      %cst_55 = arith.constant 0.000000e+00 : f32
      %187 = vector.broadcast %cst_55 : f32 to vector<8x128xf32>
      %c0_56 = arith.constant 0 : index
      %c0_57 = arith.constant 0 : index
      %188 = vector.load %arg10[%c0_56, %c0_57] : memref<8x128xf32, #tpu.memory_space<vmem>>, vector<8x128xf32>
      tpu.vector_store %arg10[%c0_56, %c0_57], %187 {strides = array<i32>} : memref<8x128xf32, #tpu.memory_space<vmem>>, vector<8x128xf32>,
      %cst_58 = arith.constant 0.000000e+00 : f32
      %189 = vector.broadcast %cst_58 : f32 to vector<8x128xf32>
      %c0_59 = arith.constant 0 : index
      %c0_60 = arith.constant 0 : index
      %190 = vector.load %arg11[%c0_59, %c0_60] : memref<8x128xf32, #tpu.memory_space<vmem>>, vector<8x128xf32>
      tpu.vector_store %arg11[%c0_59, %c0_60], %189 {strides = array<i32>} : memref<8x128xf32, #tpu.memory_space<vmem>>, vector<8x128xf32>,
    } else {
    }
    %c0 = arith.constant 0 : index
    %c0_1 = arith.constant 0 : index
    %c0_2 = arith.constant 0 : index
    %c0_3 = arith.constant 0 : index
    %3 = vector.load %arg2[%c0, %c0_1, %c0_2, %c0_3] : memref<1x1x64x128xbf16, #tpu.memory_space<vmem>>, vector<1x1x64x128xbf16>
    %4 = vector.shape_cast %3 : vector<1x1x64x128xbf16> to vector<64x128xbf16>
    %c0_4 = arith.constant 0 : index
    %c0_5 = arith.constant 0 : index
    %5 = vector.load %arg3[%c0_4, %c0_5] : memref<128x384xbf16, #tpu.memory_space<vmem>>, vector<128x384xbf16>
    %cst = arith.constant dense<0.000000e+00> : vector<64x384xf32>
    %6 = tpu.matmul %4, %5, %cst {dimension_numbers = #tpu.dot_dimension_numbers<[1], [0], [0], [1], [0, 0, 1, 1], [], []>} : vector<64x128xbf16>, vector<128x384xbf16>, vector<64x384xf32> -> vector<64x384xf32>
    %c0_6 = arith.constant 0 : index
    %c0_7 = arith.constant 0 : index
    %7 = vector.load %arg5[%c0_6, %c0_7] : memref<1x384xf32, #tpu.memory_space<vmem>>, vector<1x384xf32>
    %8 = vector.broadcast %7 : vector<1x384xf32> to vector<64x384xf32>
    %9 = arith.addf %6, %8 : vector<64x384xf32>
    %c0_8 = arith.constant 0 : index
    %c0_9 = arith.constant 0 : index
    %10 = vector.load %arg9[%c0_8, %c0_9] : memref<64x384xf32, #tpu.memory_space<vmem>>, vector<64x384xf32>
    tpu.vector_store %arg9[%c0_8, %c0_9], %9 {strides = array<i32>} : memref<64x384xf32, #tpu.memory_space<vmem>>, vector<64x384xf32>,
    %c0_10 = arith.constant 0 : index
    %c0_11 = arith.constant 0 : index
    %11 = vector.load %arg4[%c0_10, %c0_11] : memref<128x384xbf16, #tpu.memory_space<vmem>>, vector<128x384xbf16>
    %c0_12 = arith.constant 0 : index
    %c0_13 = arith.constant 0 : index
    %12 = vector.load %arg10[%c0_12, %c0_13] : memref<8x128xf32, #tpu.memory_space<vmem>>, vector<8x128xf32>
    %c0_14 = arith.constant 0 : index
    %c0_15 = arith.constant 0 : index
    %13 = vector.load %arg11[%c0_14, %c0_15] : memref<8x128xf32, #tpu.memory_space<vmem>>, vector<8x128xf32>
    %c0_i32_16 = arith.constant 0 : i32
    %c8_i32 = arith.constant 8 : i32
    %14 = arith.muli %c0_i32_16, %c8_i32 : i32
    %15 = tpu.assume_multiple %14, 8 : i32
    %16 = arith.index_cast %15 : i32 to index
    %c0_17 = arith.constant 0 : index
    %17 = vector.load %arg9[%16, %c0_17] : memref<64x384xf32, #tpu.memory_space<vmem>>, vector<8x384xf32>
    %18 = arith.truncf %12 : vector<8x128xf32> to vector<8x128xbf16>
    %cst_18 = arith.constant dense<0.000000e+00> : vector<8x384xf32>
    %19 = tpu.matmul %18, %11, %cst_18 {dimension_numbers = #tpu.dot_dimension_numbers<[1], [0], [0], [1], [0, 0, 1, 1], [], []>} : vector<8x128xbf16>, vector<128x384xbf16>, vector<8x384xf32> -> vector<8x384xf32>
    %20 = arith.addf %17, %19 : vector<8x384xf32>
    %21 = vector.extract_strided_slice %20 {offsets = [0, 0], sizes = [8, 256], strides = [1, 1]} : vector<8x384xf32> to vector<8x256xf32>
    %22 = arith.negf %21 : vector<8x256xf32>
    %23 = math.exp %22 : vector<8x256xf32>
    %cst_19 = arith.constant 1.000000e+00 : f32
    %24 = vector.broadcast %cst_19 : f32 to vector<8x256xf32>
    %25 = arith.addf %24, %23 : vector<8x256xf32>
    %26 = arith.divf %24, %25 : vector<8x256xf32>
    %27 = vector.extract_strided_slice %26 {offsets = [0, 0], sizes = [8, 128], strides = [1, 1]} : vector<8x256xf32> to vector<8x128xf32>
    %28 = vector.extract_strided_slice %26 {offsets = [0, 128], sizes = [8, 128], strides = [1, 1]} : vector<8x256xf32> to vector<8x128xf32>
    %29 = vector.extract_strided_slice %20 {offsets = [0, 256], sizes = [8, 128], strides = [1, 1]} : vector<8x384xf32> to vector<8x128xf32>
    %30 = math.tanh %29 : vector<8x128xf32>
    %31 = arith.mulf %28, %13 : vector<8x128xf32>
    %32 = arith.mulf %27, %30 : vector<8x128xf32>
    %33 = arith.addf %31, %32 : vector<8x128xf32>
    %34 = math.tanh %33 : vector<8x128xf32>
    %c1_i32 = arith.constant 1 : i32
    %c8_i32_20 = arith.constant 8 : i32
    %35 = arith.muli %c1_i32, %c8_i32_20 : i32
    %36 = tpu.assume_multiple %35, 8 : i32
    %37 = arith.index_cast %36 : i32 to index
    %c0_21 = arith.constant 0 : index
    %38 = vector.load %arg9[%37, %c0_21] : memref<64x384xf32, #tpu.memory_space<vmem>>, vector<8x384xf32>
    %39 = arith.truncf %34 : vector<8x128xf32> to vector<8x128xbf16>
    %cst_22 = arith.constant dense<0.000000e+00> : vector<8x384xf32>
    %40 = tpu.matmul %39, %11, %cst_22 {dimension_numbers = #tpu.dot_dimension_numbers<[1], [0], [0], [1], [0, 0, 1, 1], [], []>} : vector<8x128xbf16>, vector<128x384xbf16>, vector<8x384xf32> -> vector<8x384xf32>
    %41 = arith.addf %38, %40 : vector<8x384xf32>
    %42 = vector.extract_strided_slice %41 {offsets = [0, 0], sizes = [8, 256], strides = [1, 1]} : vector<8x384xf32> to vector<8x256xf32>
    %43 = arith.negf %42 : vector<8x256xf32>
    %44 = math.exp %43 : vector<8x256xf32>
    %cst_23 = arith.constant 1.000000e+00 : f32
    %45 = vector.broadcast %cst_23 : f32 to vector<8x256xf32>
    %46 = arith.addf %45, %44 : vector<8x256xf32>
    %47 = arith.divf %45, %46 : vector<8x256xf32>
    %48 = vector.extract_strided_slice %47 {offsets = [0, 0], sizes = [8, 128], strides = [1, 1]} : vector<8x256xf32> to vector<8x128xf32>
    %49 = vector.extract_strided_slice %47 {offsets = [0, 128], sizes = [8, 128], strides = [1, 1]} : vector<8x256xf32> to vector<8x128xf32>
    %50 = vector.extract_strided_slice %41 {offsets = [0, 256], sizes = [8, 128], strides = [1, 1]} : vector<8x384xf32> to vector<8x128xf32>
    %51 = math.tanh %50 : vector<8x128xf32>
    %52 = arith.mulf %49, %33 : vector<8x128xf32>
    %53 = arith.mulf %48, %51 : vector<8x128xf32>
    %54 = arith.addf %52, %53 : vector<8x128xf32>
    %55 = math.tanh %54 : vector<8x128xf32>
    %c2_i32 = arith.constant 2 : i32
    %c8_i32_24 = arith.constant 8 : i32
    %56 = arith.muli %c2_i32, %c8_i32_24 : i32
    %57 = tpu.assume_multiple %56, 8 : i32
    %58 = arith.index_cast %57 : i32 to index
    %c0_25 = arith.constant 0 : index
    %59 = vector.load %arg9[%58, %c0_25] : memref<64x384xf32, #tpu.memory_space<vmem>>, vector<8x384xf32>
    %60 = arith.truncf %55 : vector<8x128xf32> to vector<8x128xbf16>
    %cst_26 = arith.constant dense<0.000000e+00> : vector<8x384xf32>
    %61 = tpu.matmul %60, %11, %cst_26 {dimension_numbers = #tpu.dot_dimension_numbers<[1], [0], [0], [1], [0, 0, 1, 1], [], []>} : vector<8x128xbf16>, vector<128x384xbf16>, vector<8x384xf32> -> vector<8x384xf32>
    %62 = arith.addf %59, %61 : vector<8x384xf32>
    %63 = vector.extract_strided_slice %62 {offsets = [0, 0], sizes = [8, 256], strides = [1, 1]} : vector<8x384xf32> to vector<8x256xf32>
    %64 = arith.negf %63 : vector<8x256xf32>
    %65 = math.exp %64 : vector<8x256xf32>
    %cst_27 = arith.constant 1.000000e+00 : f32
    %66 = vector.broadcast %cst_27 : f32 to vector<8x256xf32>
    %67 = arith.addf %66, %65 : vector<8x256xf32>
    %68 = arith.divf %66, %67 : vector<8x256xf32>
    %69 = vector.extract_strided_slice %68 {offsets = [0, 0], sizes = [8, 128], strides = [1, 1]} : vector<8x256xf32> to vector<8x128xf32>
    %70 = vector.extract_strided_slice %68 {offsets = [0, 128], sizes = [8, 128], strides = [1, 1]} : vector<8x256xf32> to vector<8x128xf32>
    %71 = vector.extract_strided_slice %62 {offsets = [0, 256], sizes = [8, 128], strides = [1, 1]} : vector<8x384xf32> to vector<8x128xf32>
    %72 = math.tanh %71 : vector<8x128xf32>
    %73 = arith.mulf %70, %54 : vector<8x128xf32>
    %74 = arith.mulf %69, %72 : vector<8x128xf32>
    %75 = arith.addf %73, %74 : vector<8x128xf32>
    %76 = math.tanh %75 : vector<8x128xf32>
    %c3_i32 = arith.constant 3 : i32
    %c8_i32_28 = arith.constant 8 : i32
    %77 = arith.muli %c3_i32, %c8_i32_28 : i32
    %78 = tpu.assume_multiple %77, 8 : i32
    %79 = arith.index_cast %78 : i32 to index
    %c0_29 = arith.constant 0 : index
    %80 = vector.load %arg9[%79, %c0_29] : memref<64x384xf32, #tpu.memory_space<vmem>>, vector<8x384xf32>
    %81 = arith.truncf %76 : vector<8x128xf32> to vector<8x128xbf16>
    %cst_30 = arith.constant dense<0.000000e+00> : vector<8x384xf32>
    %82 = tpu.matmul %81, %11, %cst_30 {dimension_numbers = #tpu.dot_dimension_numbers<[1], [0], [0], [1], [0, 0, 1, 1], [], []>} : vector<8x128xbf16>, vector<128x384xbf16>, vector<8x384xf32> -> vector<8x384xf32>
    %83 = arith.addf %80, %82 : vector<8x384xf32>
    %84 = vector.extract_strided_slice %83 {offsets = [0, 0], sizes = [8, 256], strides = [1, 1]} : vector<8x384xf32> to vector<8x256xf32>
    %85 = arith.negf %84 : vector<8x256xf32>
    %86 = math.exp %85 : vector<8x256xf32>
    %cst_31 = arith.constant 1.000000e+00 : f32
    %87 = vector.broadcast %cst_31 : f32 to vector<8x256xf32>
    %88 = arith.addf %87, %86 : vector<8x256xf32>
    %89 = arith.divf %87, %88 : vector<8x256xf32>
    %90 = vector.extract_strided_slice %89 {offsets = [0, 0], sizes = [8, 128], strides = [1, 1]} : vector<8x256xf32> to vector<8x128xf32>
    %91 = vector.extract_strided_slice %89 {offsets = [0, 128], sizes = [8, 128], strides = [1, 1]} : vector<8x256xf32> to vector<8x128xf32>
    %92 = vector.extract_strided_slice %83 {offsets = [0, 256], sizes = [8, 128], strides = [1, 1]} : vector<8x384xf32> to vector<8x128xf32>
    %93 = math.tanh %92 : vector<8x128xf32>
    %94 = arith.mulf %91, %75 : vector<8x128xf32>
    %95 = arith.mulf %90, %93 : vector<8x128xf32>
    %96 = arith.addf %94, %95 : vector<8x128xf32>
    %97 = math.tanh %96 : vector<8x128xf32>
    %c4_i32 = arith.constant 4 : i32
    %c8_i32_32 = arith.constant 8 : i32
    %98 = arith.muli %c4_i32, %c8_i32_32 : i32
    %99 = tpu.assume_multiple %98, 8 : i32
    %100 = arith.index_cast %99 : i32 to index
    %c0_33 = arith.constant 0 : index
    %101 = vector.load %arg9[%100, %c0_33] : memref<64x384xf32, #tpu.memory_space<vmem>>, vector<8x384xf32>
    %102 = arith.truncf %97 : vector<8x128xf32> to vector<8x128xbf16>
    %cst_34 = arith.constant dense<0.000000e+00> : vector<8x384xf32>
    %103 = tpu.matmul %102, %11, %cst_34 {dimension_numbers = #tpu.dot_dimension_numbers<[1], [0], [0], [1], [0, 0, 1, 1], [], []>} : vector<8x128xbf16>, vector<128x384xbf16>, vector<8x384xf32> -> vector<8x384xf32>
    %104 = arith.addf %101, %103 : vector<8x384xf32>
    %105 = vector.extract_strided_slice %104 {offsets = [0, 0], sizes = [8, 256], strides = [1, 1]} : vector<8x384xf32> to vector<8x256xf32>
    %106 = arith.negf %105 : vector<8x256xf32>
    %107 = math.exp %106 : vector<8x256xf32>
    %cst_35 = arith.constant 1.000000e+00 : f32
    %108 = vector.broadcast %cst_35 : f32 to vector<8x256xf32>
    %109 = arith.addf %108, %107 : vector<8x256xf32>
    %110 = arith.divf %108, %109 : vector<8x256xf32>
    %111 = vector.extract_strided_slice %110 {offsets = [0, 0], sizes = [8, 128], strides = [1, 1]} : vector<8x256xf32> to vector<8x128xf32>
    %112 = vector.extract_strided_slice %110 {offsets = [0, 128], sizes = [8, 128], strides = [1, 1]} : vector<8x256xf32> to vector<8x128xf32>
    %113 = vector.extract_strided_slice %104 {offsets = [0, 256], sizes = [8, 128], strides = [1, 1]} : vector<8x384xf32> to vector<8x128xf32>
    %114 = math.tanh %113 : vector<8x128xf32>
    %115 = arith.mulf %112, %96 : vector<8x128xf32>
    %116 = arith.mulf %111, %114 : vector<8x128xf32>
    %117 = arith.addf %115, %116 : vector<8x128xf32>
    %118 = math.tanh %117 : vector<8x128xf32>
    %c5_i32 = arith.constant 5 : i32
    %c8_i32_36 = arith.constant 8 : i32
    %119 = arith.muli %c5_i32, %c8_i32_36 : i32
    %120 = tpu.assume_multiple %119, 8 : i32
    %121 = arith.index_cast %120 : i32 to index
    %c0_37 = arith.constant 0 : index
    %122 = vector.load %arg9[%121, %c0_37] : memref<64x384xf32, #tpu.memory_space<vmem>>, vector<8x384xf32>
    %123 = arith.truncf %118 : vector<8x128xf32> to vector<8x128xbf16>
    %cst_38 = arith.constant dense<0.000000e+00> : vector<8x384xf32>
    %124 = tpu.matmul %123, %11, %cst_38 {dimension_numbers = #tpu.dot_dimension_numbers<[1], [0], [0], [1], [0, 0, 1, 1], [], []>} : vector<8x128xbf16>, vector<128x384xbf16>, vector<8x384xf32> -> vector<8x384xf32>
    %125 = arith.addf %122, %124 : vector<8x384xf32>
    %126 = vector.extract_strided_slice %125 {offsets = [0, 0], sizes = [8, 256], strides = [1, 1]} : vector<8x384xf32> to vector<8x256xf32>
    %127 = arith.negf %126 : vector<8x256xf32>
    %128 = math.exp %127 : vector<8x256xf32>
    %cst_39 = arith.constant 1.000000e+00 : f32
    %129 = vector.broadcast %cst_39 : f32 to vector<8x256xf32>
    %130 = arith.addf %129, %128 : vector<8x256xf32>
    %131 = arith.divf %129, %130 : vector<8x256xf32>
    %132 = vector.extract_strided_slice %131 {offsets = [0, 0], sizes = [8, 128], strides = [1, 1]} : vector<8x256xf32> to vector<8x128xf32>
    %133 = vector.extract_strided_slice %131 {offsets = [0, 128], sizes = [8, 128], strides = [1, 1]} : vector<8x256xf32> to vector<8x128xf32>
    %134 = vector.extract_strided_slice %125 {offsets = [0, 256], sizes = [8, 128], strides = [1, 1]} : vector<8x384xf32> to vector<8x128xf32>
    %135 = math.tanh %134 : vector<8x128xf32>
    %136 = arith.mulf %133, %117 : vector<8x128xf32>
    %137 = arith.mulf %132, %135 : vector<8x128xf32>
    %138 = arith.addf %136, %137 : vector<8x128xf32>
    %139 = math.tanh %138 : vector<8x128xf32>
    %c6_i32 = arith.constant 6 : i32
    %c8_i32_40 = arith.constant 8 : i32
    %140 = arith.muli %c6_i32, %c8_i32_40 : i32
    %141 = tpu.assume_multiple %140, 8 : i32
    %142 = arith.index_cast %141 : i32 to index
    %c0_41 = arith.constant 0 : index
    %143 = vector.load %arg9[%142, %c0_41] : memref<64x384xf32, #tpu.memory_space<vmem>>, vector<8x384xf32>
    %144 = arith.truncf %139 : vector<8x128xf32> to vector<8x128xbf16>
    %cst_42 = arith.constant dense<0.000000e+00> : vector<8x384xf32>
    %145 = tpu.matmul %144, %11, %cst_42 {dimension_numbers = #tpu.dot_dimension_numbers<[1], [0], [0], [1], [0, 0, 1, 1], [], []>} : vector<8x128xbf16>, vector<128x384xbf16>, vector<8x384xf32> -> vector<8x384xf32>
    %146 = arith.addf %143, %145 : vector<8x384xf32>
    %147 = vector.extract_strided_slice %146 {offsets = [0, 0], sizes = [8, 256], strides = [1, 1]} : vector<8x384xf32> to vector<8x256xf32>
    %148 = arith.negf %147 : vector<8x256xf32>
    %149 = math.exp %148 : vector<8x256xf32>
    %cst_43 = arith.constant 1.000000e+00 : f32
    %150 = vector.broadcast %cst_43 : f32 to vector<8x256xf32>
    %151 = arith.addf %150, %149 : vector<8x256xf32>
    %152 = arith.divf %150, %151 : vector<8x256xf32>
    %153 = vector.extract_strided_slice %152 {offsets = [0, 0], sizes = [8, 128], strides = [1, 1]} : vector<8x256xf32> to vector<8x128xf32>
    %154 = vector.extract_strided_slice %152 {offsets = [0, 128], sizes = [8, 128], strides = [1, 1]} : vector<8x256xf32> to vector<8x128xf32>
    %155 = vector.extract_strided_slice %146 {offsets = [0, 256], sizes = [8, 128], strides = [1, 1]} : vector<8x384xf32> to vector<8x128xf32>
    %156 = math.tanh %155 : vector<8x128xf32>
    %157 = arith.mulf %154, %138 : vector<8x128xf32>
    %158 = arith.mulf %153, %156 : vector<8x128xf32>
    %159 = arith.addf %157, %158 : vector<8x128xf32>
    %160 = math.tanh %159 : vector<8x128xf32>
    %c7_i32 = arith.constant 7 : i32
    %c8_i32_44 = arith.constant 8 : i32
    %161 = arith.muli %c7_i32, %c8_i32_44 : i32
    %162 = tpu.assume_multiple %161, 8 : i32
    %163 = arith.index_cast %162 : i32 to index
    %c0_45 = arith.constant 0 : index
    %164 = vector.load %arg9[%163, %c0_45] : memref<64x384xf32, #tpu.memory_space<vmem>>, vector<8x384xf32>
    %165 = arith.truncf %160 : vector<8x128xf32> to vector<8x128xbf16>
    %cst_46 = arith.constant dense<0.000000e+00> : vector<8x384xf32>
    %166 = tpu.matmul %165, %11, %cst_46 {dimension_numbers = #tpu.dot_dimension_numbers<[1], [0], [0], [1], [0, 0, 1, 1], [], []>} : vector<8x128xbf16>, vector<128x384xbf16>, vector<8x384xf32> -> vector<8x384xf32>
    %167 = arith.addf %164, %166 : vector<8x384xf32>
    %168 = vector.extract_strided_slice %167 {offsets = [0, 0], sizes = [8, 256], strides = [1, 1]} : vector<8x384xf32> to vector<8x256xf32>
    %169 = arith.negf %168 : vector<8x256xf32>
    %170 = math.exp %169 : vector<8x256xf32>
    %cst_47 = arith.constant 1.000000e+00 : f32
    %171 = vector.broadcast %cst_47 : f32 to vector<8x256xf32>
    %172 = arith.addf %171, %170 : vector<8x256xf32>
    %173 = arith.divf %171, %172 : vector<8x256xf32>
    %174 = vector.extract_strided_slice %173 {offsets = [0, 0], sizes = [8, 128], strides = [1, 1]} : vector<8x256xf32> to vector<8x128xf32>
    %175 = vector.extract_strided_slice %173 {offsets = [0, 128], sizes = [8, 128], strides = [1, 1]} : vector<8x256xf32> to vector<8x128xf32>
    %176 = vector.extract_strided_slice %167 {offsets = [0, 256], sizes = [8, 128], strides = [1, 1]} : vector<8x384xf32> to vector<8x128xf32>
    %177 = math.tanh %176 : vector<8x128xf32>
    %178 = arith.mulf %175, %159 : vector<8x128xf32>
    %179 = arith.mulf %174, %177 : vector<8x128xf32>
    %180 = arith.addf %178, %179 : vector<8x128xf32>
    %181 = math.tanh %180 : vector<8x128xf32>
    %c8_i32_48 = arith.constant 8 : i32
    %c0_49 = arith.constant 0 : index
    %c0_50 = arith.constant 0 : index
    %182 = vector.load %arg10[%c0_49, %c0_50] : memref<8x128xf32, #tpu.memory_space<vmem>>, vector<8x128xf32>
    tpu.vector_store %arg10[%c0_49, %c0_50], %181 {strides = array<i32>} : memref<8x128xf32, #tpu.memory_space<vmem>>, vector<8x128xf32>,
    %c0_51 = arith.constant 0 : index
    %c0_52 = arith.constant 0 : index
    %183 = vector.load %arg11[%c0_51, %c0_52] : memref<8x128xf32, #tpu.memory_space<vmem>>, vector<8x128xf32>
    tpu.vector_store %arg11[%c0_51, %c0_52], %180 {strides = array<i32>} : memref<8x128xf32, #tpu.memory_space<vmem>>, vector<8x128xf32>,
    %c0_i32_53 = arith.constant 0 : i32
    %184 = arith.cmpi eq, %arg1, %c0_i32_53 : i32
    %185 = arith.extui %184 : i1 to i32
    %c0_i32_54 = arith.constant 0 : i32
    %186 = arith.cmpi ne, %185, %c0_i32_54 : i32
    scf.if %186 {
      %187 = arith.truncf %181 : vector<8x128xf32> to vector<8x128xbf16>
      %c0_55 = arith.constant 0 : index
      %c0_56 = arith.constant 0 : index
      %188 = vector.load %arg6[%c0_55, %c0_56] : memref<128x128xbf16, #tpu.memory_space<vmem>>, vector<128x128xbf16>
      %cst_57 = arith.constant dense<0.000000e+00> : vector<8x128xf32>
      %189 = tpu.matmul %187, %188, %cst_57 {dimension_numbers = #tpu.dot_dimension_numbers<[1], [0], [0], [1], [0, 0, 1, 1], [], []>} : vector<8x128xbf16>, vector<128x128xbf16>, vector<8x128xf32> -> vector<8x128xf32>
      %c0_58 = arith.constant 0 : index
      %c0_59 = arith.constant 0 : index
      %190 = vector.load %arg7[%c0_58, %c0_59] : memref<1x128xf32, #tpu.memory_space<vmem>>, vector<1x128xf32>
      %191 = vector.broadcast %190 : vector<1x128xf32> to vector<8x128xf32>
      %192 = arith.addf %189, %191 : vector<8x128xf32>
      %c0_60 = arith.constant 0 : index
      %c0_61 = arith.constant 0 : index
      %193 = vector.load %arg8[%c0_60, %c0_61] : memref<8x128xf32, #tpu.memory_space<vmem>>, vector<8x128xf32>
      tpu.vector_store %arg8[%c0_60, %c0_61], %192 {strides = array<i32>} : memref<8x128xf32, #tpu.memory_space<vmem>>, vector<8x128xf32>,
    } else {
    }
    return
  }
  func.func @transform_0(%arg0: i32, %arg1: i32) -> (i32, i32, i32, i32) {
    %c0_i32 = arith.constant 0 : i32
    %c0_i32_0 = arith.constant 0 : i32
    %c0_i32_1 = arith.constant 0 : i32
    return %arg1, %arg0, %c0_i32, %c0_i32_0 : i32, i32, i32, i32
  }
  func.func @transform_1(%arg0: i32, %arg1: i32) -> (i32, i32) {
    %c0_i32 = arith.constant 0 : i32
    %c0_i32_0 = arith.constant 0 : i32
    %c0_i32_1 = arith.constant 0 : i32
    return %c0_i32, %c0_i32_0 : i32, i32
  }
  func.func @transform_2(%arg0: i32, %arg1: i32) -> (i32, i32) {
    %c0_i32 = arith.constant 0 : i32
    %c0_i32_0 = arith.constant 0 : i32
    %c0_i32_1 = arith.constant 0 : i32
    return %c0_i32, %c0_i32_0 : i32, i32
  }
  func.func @transform_3(%arg0: i32, %arg1: i32) -> (i32, i32) {
    %c0_i32 = arith.constant 0 : i32
    %c0_i32_0 = arith.constant 0 : i32
    %c0_i32_1 = arith.constant 0 : i32
    return %c0_i32, %c0_i32_0 : i32, i32
  }
  func.func @transform_4(%arg0: i32, %arg1: i32) -> (i32, i32) {
    %c0_i32 = arith.constant 0 : i32
    %c0_i32_0 = arith.constant 0 : i32
    %c0_i32_1 = arith.constant 0 : i32
    return %c0_i32, %c0_i32_0 : i32, i32
  }
  func.func @transform_5(%arg0: i32, %arg1: i32) -> (i32, i32) {
    %c0_i32 = arith.constant 0 : i32
    %c0_i32_0 = arith.constant 0 : i32
    %c0_i32_1 = arith.constant 0 : i32
    return %c0_i32, %c0_i32_0 : i32, i32
  }
  func.func @transform_6(%arg0: i32, %arg1: i32) -> (i32, i32) {
    %c0_i32 = arith.constant 0 : i32
    %c0_i32_0 = arith.constant 0 : i32
    return %arg0, %c0_i32 : i32, i32
  }
}

</mosaic_0001>

<llo_original>
// kernel: tpu_custom_call.1
$region0: #{tpu_custom_call.1}
  #allocation0 [shape = 'u32[]', space=smem, size = 0x4, offset = 0x4, fixed_abs, tag = 'smem constant byte address 0x4 - core index']
  #allocation1 [shape = 'u32[144,128]{1,0:T(1,128)}', space=vmem, size = 0x12000, scoped, tag = 'internal scratch']
  #allocation2 [shape = 'f32[64,384]{1,0:T(8,128)}', space=vmem, size = 0x18000, scoped, tag = 'scratch operand']
  #allocation3 [shape = 'f32[8,128]{1,0:T(8,128)}', space=vmem, size = 0x1000, scoped, tag = 'scratch operand']
  #allocation4 [shape = 'f32[8,128]{1,0:T(8,128)}', space=vmem, size = 0x1000, scoped, tag = 'scratch operand']
  %s0 = inlined_call_operand.hbm [shape: bf16[1,1,64,128], index: 0, kind: input, shape index: {}]
  %s1 = inlined_call_operand.hbm [shape: bf16[128,384], index: 1, kind: input, shape index: {}]
  %s2 = inlined_call_operand.hbm [shape: bf16[128,384], index: 2, kind: input, shape index: {}]
  %s3 = inlined_call_operand.vmem [shape: f32[1,384], index: 3, kind: input, shape index: {}]
  %s4 = inlined_call_operand.hbm [shape: bf16[128,128], index: 4, kind: input, shape index: {}]
  %s5 = inlined_call_operand.vmem [shape: f32[1,128], index: 5, kind: input, shape index: {}]
  %s6 = inlined_call_operand.hbm [shape: f32[8,128], index: 6, kind: output, shape index: {}]
  %s7 = sld [smem:[#allocation0]]
  $region58: #{tpu_custom_call.1} parent=0
    _
  %s9 = ssub.s32 1, %s7
  %s10 = scalar_select 0, %s9, %s7
  $region1: #{tpu_custom_call.1} parent=0
    #allocation5 [shape = 'u8[16384]{0}', space=vmem, size = 0x4000, scoped, tag = 'input window, operand 0, single buffered']
    #allocation6 [shape = 's32[1]{0}', space=sflag, size = 0x4, scoped, tag = 'scoped memory for tpu_custom_call.1']
    #allocation7 [shape = 's32[1]{0}', space=sflag, size = 0x4, scoped, tag = 'scoped memory for tpu_custom_call.1']
    #allocation8 [shape = 'u8[98304]{0}', space=vmem, size = 0x18000, scoped, tag = 'input window, operand 1, single buffered']
    #allocation9 [shape = 's32[1]{0}', space=sflag, size = 0x4, scoped, tag = 'scoped memory for tpu_custom_call.1']
    #allocation10 [shape = 'u8[98304]{0}', space=vmem, size = 0x18000, scoped, tag = 'input window, operand 2, single buffered']
    #allocation11 [shape = 'u8[32768]{0}', space=vmem, size = 0x8000, scoped, tag = 'input window, operand 4, single buffered']
    #allocation12 [shape = 's32[1]{0}', space=sflag, size = 0x4, scoped, tag = 'scoped memory for tpu_custom_call.1']
    #allocation13 [shape = 'u8[4096]{0}', space=vmem, size = 0x1000, scoped, tag = 'output window, operand 0, single buffered']
    %11 = vsyncpa [#allocation6], 0
    %12 = vsyncpa [#allocation9], 0
    %13 = vsyncpa [#allocation12], 0
    %14 = vsyncpa [#allocation7], 0
    // Predicated region
    $region2: #{tpu_custom_call.1} parent=1 // pred_check
      _
    $region3: #{tpu_custom_call.1} parent=1 // pred_check_branch
      %16 = sbr.rel (0) target = $region5
    $region4: #{tpu_custom_call.1} parent=1 // pred_region
      %s18 = ssub.s32 512, 512
      %19 = vsyncadd [#allocation6], %s18
      %s20 = sshll.u32 [#allocation5], 4
      %s21 = int_to_ptr.vmem [resolvable:$true] %s20
      %26 = dma.hbm_to_vmem [thread:$0]  %s0, 512, %s21, [#allocation6], 64, 64, 4
    $region5: #{tpu_custom_call.1} parent=1 // pred_fallthru
      _
    // Predicated region
    $region6: #{tpu_custom_call.1} parent=1 // pred_check
      _
    $region7: #{tpu_custom_call.1} parent=1 // pred_check_branch
      %28 = sbr.rel (0) target = $region9
    $region8: #{tpu_custom_call.1} parent=1 // pred_region
      %s30 = ssub.s32 3072, 3072
      %31 = vsyncadd [#allocation9], %s30
      %s32 = sshll.u32 [#allocation8], 4
      %s33 = int_to_ptr.vmem [resolvable:$true] %s32
      %38 = dma.hbm_to_vmem [thread:$0]  %s1, 3072, %s33, [#allocation9], 192, 192, 12
    $region9: #{tpu_custom_call.1} parent=1 // pred_fallthru
      _
    // Predicated region
    $region10: #{tpu_custom_call.1} parent=1 // pred_check
      _
    $region11: #{tpu_custom_call.1} parent=1 // pred_check_branch
      %40 = sbr.rel (0) target = $region13
    $region12: #{tpu_custom_call.1} parent=1 // pred_region
      %s42 = ssub.s32 3072, 3072
      %43 = vsyncadd [#allocation9], %s42
      %s44 = sshll.u32 [#allocation10], 4
      %s45 = int_to_ptr.vmem [resolvable:$true] %s44
      %50 = dma.hbm_to_vmem [thread:$0]  %s2, 3072, %s45, [#allocation9], 192, 192, 12
    $region13: #{tpu_custom_call.1} parent=1 // pred_fallthru
      _
    // Predicated region
    $region14: #{tpu_custom_call.1} parent=1 // pred_check
      _
    $region15: #{tpu_custom_call.1} parent=1 // pred_check_branch
      %52 = sbr.rel (0) target = $region17
    $region16: #{tpu_custom_call.1} parent=1 // pred_region
      _
    $region17: #{tpu_custom_call.1} parent=1 // pred_fallthru
      _
    // Predicated region
    $region18: #{tpu_custom_call.1} parent=1 // pred_check
      _
    $region19: #{tpu_custom_call.1} parent=1 // pred_check_branch
      %54 = sbr.rel (0) target = $region21
    $region20: #{tpu_custom_call.1} parent=1 // pred_region
      %s56 = ssub.s32 1024, 1024
      %57 = vsyncadd [#allocation12], %s56
      %s58 = sshll.u32 [#allocation11], 4
      %s59 = int_to_ptr.vmem [resolvable:$true] %s58
      %64 = dma.hbm_to_vmem [thread:$0]  %s4, 1024, %s59, [#allocation12], 64, 64, 4
    $region21: #{tpu_custom_call.1} parent=1 // pred_fallthru
      _
    // Predicated region
    $region22: #{tpu_custom_call.1} parent=1 // pred_check
      _
    $region23: #{tpu_custom_call.1} parent=1 // pred_check_branch
      %66 = sbr.rel (0) target = $region25
    $region24: #{tpu_custom_call.1} parent=1 // pred_region
      _
    $region25: #{tpu_custom_call.1} parent=1 // pred_fallthru
      _
    // Predicated region
    $region26: #{tpu_custom_call.1} parent=1 // pred_check
      _
    $region27: #{tpu_custom_call.1} parent=1 // pred_check_branch
      %68 = sbr.rel (0) target = $region29
    $region28: #{tpu_custom_call.1} parent=1 // pred_region
      %69 = dma.done [#allocation6], 512
    $region29: #{tpu_custom_call.1} parent=1 // pred_fallthru
      _
    // Predicated region
    $region30: #{tpu_custom_call.1} parent=1 // pred_check
      _
    $region31: #{tpu_custom_call.1} parent=1 // pred_check_branch
      %71 = sbr.rel (0) target = $region33
    $region32: #{tpu_custom_call.1} parent=1 // pred_region
      %72 = dma.done [#allocation9], 3072
    $region33: #{tpu_custom_call.1} parent=1 // pred_fallthru
      _
    // Predicated region
    $region34: #{tpu_custom_call.1} parent=1 // pred_check
      _
    $region35: #{tpu_custom_call.1} parent=1 // pred_check_branch
      %74 = sbr.rel (0) target = $region37
    $region36: #{tpu_custom_call.1} parent=1 // pred_region
      %75 = dma.done [#allocation9], 3072
    $region37: #{tpu_custom_call.1} parent=1 // pred_fallthru
      _
    // Predicated region
    $region38: #{tpu_custom_call.1} parent=1 // pred_check
      _
    $region39: #{tpu_custom_call.1} parent=1 // pred_check_branch
      %77 = sbr.rel (0) target = $region41
    $region40: #{tpu_custom_call.1} parent=1 // pred_region
      %78 = dma.done [#allocation12], 1024
    $region41: #{tpu_custom_call.1} parent=1 // pred_fallthru
      _
    %p80 = scmp.eq.s32.totalorder 0, 0
    // Predicated region
    $region42: #{tpu_custom_call.1} parent=1 // pred_check
      %p81 = pneg %p80
    $region43: #{tpu_custom_call.1} parent=1 // pred_check_branch
      %83 = sbr.rel (%p81) target = $region45
    $region44: #{tpu_custom_call.1} parent=1 // pred_region
      %84 = vst [vmem:[#allocation3] sm:$0xff] 0.0
      %85 = vst [vmem:[#allocation4] sm:$0xff] 0.0
    $region45: #{tpu_custom_call.1} parent=1 // pred_fallthru
      _
    %v86 = vld [vmem:[#allocation5] sm:$0xf]
    %v87 = vld [vmem:[#allocation5 + $0x4] sm:$0xf]
    %v88 = vld [vmem:[#allocation5 + $0x8] sm:$0xf]
    %v89 = vld [vmem:[#allocation5 + $0xc] sm:$0xf]
    %v90 = vld [vmem:[#allocation5 + $0x10] sm:$0xf]
    %v91 = vld [vmem:[#allocation5 + $0x14] sm:$0xf]
    %v92 = vld [vmem:[#allocation5 + $0x18] sm:$0xf]
    %v93 = vld [vmem:[#allocation5 + $0x1c] sm:$0xf]
    %v94 = vld [vmem:[#allocation8] sm:$0xff]
    %v95 = vld [vmem:[#allocation8 + $0x8] sm:$0xf]
    %v96 = vld [vmem:[#allocation8 + $0xc] sm:$0xff]
    %v97 = vld [vmem:[#allocation8 + $0x14] sm:$0xf]
    %v98 = vld [vmem:[#allocation8 + $0x18] sm:$0xff]
    %v99 = vld [vmem:[#allocation8 + $0x20] sm:$0xf]
    %v100 = vld [vmem:[#allocation8 + $0x24] sm:$0xff]
    %v101 = vld [vmem:[#allocation8 + $0x2c] sm:$0xf]
    %v102 = vld [vmem:[#allocation8 + $0x30] sm:$0xff]
    %v103 = vld [vmem:[#allocation8 + $0x38] sm:$0xf]
    %v104 = vld [vmem:[#allocation8 + $0x3c] sm:$0xff]
    %v105 = vld [vmem:[#allocation8 + $0x44] sm:$0xf]
    %v106 = vld [vmem:[#allocation8 + $0x48] sm:$0xff]
    %v107 = vld [vmem:[#allocation8 + $0x50] sm:$0xf]
    %v108 = vld [vmem:[#allocation8 + $0x54] sm:$0xff]
    %v109 = vld [vmem:[#allocation8 + $0x5c] sm:$0xf]
    %v110 = vld [vmem:[#allocation8 + $0x60] sm:$0xff]
    %v111 = vld [vmem:[#allocation8 + $0x68] sm:$0xf]
    %v112 = vld [vmem:[#allocation8 + $0x6c] sm:$0xff]
    %v113 = vld [vmem:[#allocation8 + $0x74] sm:$0xf]
    %v114 = vld [vmem:[#allocation8 + $0x78] sm:$0xff]
    %v115 = vld [vmem:[#allocation8 + $0x80] sm:$0xf]
    %v116 = vld [vmem:[#allocation8 + $0x84] sm:$0xff]
    %v117 = vld [vmem:[#allocation8 + $0x8c] sm:$0xf]
    %v118 = vld [vmem:[#allocation8 + $0x90] sm:$0xff]
    %v119 = vld [vmem:[#allocation8 + $0x98] sm:$0xf]
    %v120 = vld [vmem:[#allocation8 + $0x9c] sm:$0xff]
    %v121 = vld [vmem:[#allocation8 + $0xa4] sm:$0xf]
    %v122 = vld [vmem:[#allocation8 + $0xa8] sm:$0xff]
    %v123 = vld [vmem:[#allocation8 + $0xb0] sm:$0xf]
    %v124 = vld [vmem:[#allocation8 + $0xb4] sm:$0xff]
    %v125 = vld [vmem:[#allocation8 + $0xbc] sm:$0xf]
    %v126 = vld [vmem:[%s3] sm:$0x7]
    %v128 = vlaneseq
    %v129 = vshrl.u32 %v128, 7
    %v130 = vsub.s32 0, %v129
    %v131 = vrot.slane %v126, %v130
    %v132 = vlaneseq
    %v133 = vshrl.u32 %v132, 7
    %v134 = vsub.s32 1, %v133
    %v135 = vrot.slane %v126, %v134
    %v136 = vlaneseq
    %v137 = vshrl.u32 %v136, 7
    %v138 = vsub.s32 2, %v137
    %v139 = vrot.slane %v126, %v138
    %v151 = vunpack.c.l.b16 %v86
    %v152 = vunpack.c.l.b16 %v87
    %v153 = vunpack.c.l.b16 %v88
    %v154 = vunpack.c.l.b16 %v89
    %v155 = vunpack.c.l.b16 %v90
    %v156 = vunpack.c.l.b16 %v91
    %v157 = vunpack.c.l.b16 %v92
    %v158 = vunpack.c.l.b16 %v93
    %v159 = vpack.c.b16 %v152, %v151
    %v160 = vpack.c.b16 %v154, %v153
    %v161 = vpack.c.b16 %v156, %v155
    %v162 = vpack.c.b16 %v158, %v157
    %v199 = vunpack.c.l.b16 %v94
    %v200 = vunpack.c.h.b16 %v94
    %v201 = vunpack.c.l.b16 %v95
    %v202 = vunpack.c.l.b16 %v96
    %v203 = vunpack.c.h.b16 %v96
    %v204 = vunpack.c.l.b16 %v97
    %v205 = vunpack.c.l.b16 %v98
    %v206 = vunpack.c.h.b16 %v98
    %v207 = vunpack.c.l.b16 %v99
    %v208 = vunpack.c.l.b16 %v100
    %v209 = vunpack.c.h.b16 %v100
    %v210 = vunpack.c.l.b16 %v101
    %v211 = vunpack.c.l.b16 %v102
    %v212 = vunpack.c.h.b16 %v102
    %v213 = vunpack.c.l.b16 %v103
    %v214 = vunpack.c.l.b16 %v104
    %v215 = vunpack.c.h.b16 %v104
    %v216 = vunpack.c.l.b16 %v105
    %v217 = vunpack.c.l.b16 %v106
    %v218 = vunpack.c.h.b16 %v106
    %v219 = vunpack.c.l.b16 %v107
    %v220 = vunpack.c.l.b16 %v108
    %v221 = vunpack.c.h.b16 %v108
    %v222 = vunpack.c.l.b16 %v109
    %v223 = vunpack.c.l.b16 %v110
    %v224 = vunpack.c.h.b16 %v110
    %v225 = vunpack.c.l.b16 %v111
    %v226 = vunpack.c.l.b16 %v112
    %v227 = vunpack.c.h.b16 %v112
    %v228 = vunpack.c.l.b16 %v113
    %v229 = vunpack.c.l.b16 %v114
    %v230 = vunpack.c.h.b16 %v114
    %v231 = vunpack.c.l.b16 %v115
    %v232 = vunpack.c.l.b16 %v116
    %v233 = vunpack.c.h.b16 %v116
    %v234 = vunpack.c.l.b16 %v117
    %v235 = vunpack.c.l.b16 %v118
    %v236 = vunpack.c.h.b16 %v118
    %v237 = vunpack.c.l.b16 %v119
    %v238 = vunpack.c.l.b16 %v120
    %v239 = vunpack.c.h.b16 %v120
    %v240 = vunpack.c.l.b16 %v121
    %v241 = vunpack.c.l.b16 %v122
    %v242 = vunpack.c.h.b16 %v122
    %v243 = vunpack.c.l.b16 %v123
    %v244 = vunpack.c.l.b16 %v124
    %v245 = vunpack.c.h.b16 %v124
    %v246 = vunpack.c.l.b16 %v125
    %v247 = vpack.c.b16 %v202, %v199
    %v248 = vpack.c.b16 %v203, %v200
    %v249 = vpack.c.b16 %v204, %v201
    %v250 = vpack.c.b16 %v208, %v205
    %v251 = vpack.c.b16 %v209, %v206
    %v252 = vpack.c.b16 %v210, %v207
    %v253 = vpack.c.b16 %v214, %v211
    %v254 = vpack.c.b16 %v215, %v212
    %v255 = vpack.c.b16 %v216, %v213
    %v256 = vpack.c.b16 %v220, %v217
    %v257 = vpack.c.b16 %v221, %v218
    %v258 = vpack.c.b16 %v222, %v219
    %v259 = vpack.c.b16 %v226, %v223
    %v260 = vpack.c.b16 %v227, %v224
    %v261 = vpack.c.b16 %v228, %v225
    %v262 = vpack.c.b16 %v232, %v229
    %v263 = vpack.c.b16 %v233, %v230
    %v264 = vpack.c.b16 %v234, %v231
    %v265 = vpack.c.b16 %v238, %v235
    %v266 = vpack.c.b16 %v239, %v236
    %v267 = vpack.c.b16 %v240, %v237
    %v268 = vpack.c.b16 %v244, %v241
    %v269 = vpack.c.b16 %v245, %v242
    %v270 = vpack.c.b16 %v246, %v243
    %295 = vmatprep.subr.bf16.mxu0 %v248
    %296 = vmatpush1.bf16.msra.mxu0 %v247
    %297 = vmatprep.subr.bf16.mxu0 %v251
    %298 = vmatpush1.bf16.msra.mxu0 %v250
    %299 = vmatprep.subr.bf16.mxu0 %v254
    %300 = vmatpush1.bf16.msra.mxu0 %v253
    %301 = vmatprep.subr.bf16.mxu0 %v257
    %302 = vmatpush1.bf16.msra.mxu0 %v256
    %303 = vmatprep.subr.bf16.mxu0 %v260
    %304 = vmatpush1.bf16.msra.mxu0 %v259
    %305 = vmatprep.subr.bf16.mxu0 %v263
    %306 = vmatpush1.bf16.msra.mxu0 %v262
    %307 = vmatprep.subr.bf16.mxu0 %v266
    %308 = vmatpush1.bf16.msra.mxu0 %v265
    %309 = vmatprep.subr.bf16.mxu0 %v269
    %310 = vmatpush1.bf16.msra.mxu0 %v268
    %311 = vmatprep.subr.bf16.mxu0 0
    %312 = vmatpush1.bf16.msra.mxu0 0
    %313 = vmatprep.subr.bf16.mxu0 0
    %314 = vmatpush1.bf16.msra.mxu0 0
    %315 = vmatprep.subr.bf16.mxu0 0
    %316 = vmatpush1.bf16.msra.mxu0 0
    %317 = vmatprep.subr.bf16.mxu0 0
    %318 = vmatpush1.bf16.msra.mxu0 0
    %319 = vmatprep.subr.bf16.mxu0 0
    %320 = vmatpush1.bf16.msra.mxu0 0
    %321 = vmatprep.subr.bf16.mxu0 0
    %322 = vmatpush1.bf16.msra.mxu0 0
    %323 = vmatprep.subr.bf16.mxu0 0
    %324 = vmatpush1.bf16.msra.mxu0 0
    %325 = vmatprep.subr.bf16.mxu0 0
    %326 = vmatpush1.bf16.msra.mxu0 0
    %327 = vmatprep.mubr.bf16.mxu0 0
    %328 = vmatmul.mubr.bf16.gmra.mrb[0].mxu0 %v159
    %v329 = vpop.f32.mrb[0].mxu0
    %v330 = vadd.f32 %v131, %v329
    %v331 = vpop.f32.mrb[0].mxu0
    %v332 = vadd.f32 %v135, %v331
    %v333 = vpop.f32.mrb[0].mxu0
    %v334 = vadd.f32 %v131, %v333
    %v335 = vpop.f32.mrb[0].mxu0
    %v336 = vadd.f32 %v135, %v335
    %337 = vmatprep.mubr.bf16.mxu0 0
    %338 = vmatmul.mubr.bf16.gmra.mrb[0].mxu0 %v160
    %v339 = vpop.f32.mrb[0].mxu0
    %v340 = vadd.f32 %v131, %v339
    %v341 = vpop.f32.mrb[0].mxu0
    %v342 = vadd.f32 %v135, %v341
    %v343 = vpop.f32.mrb[0].mxu0
    %v344 = vadd.f32 %v131, %v343
    %v345 = vpop.f32.mrb[0].mxu0
    %v346 = vadd.f32 %v135, %v345
    %347 = vmatprep.mubr.bf16.mxu0 0
    %348 = vmatmul.mubr.bf16.gmra.mrb[0].mxu0 %v161
    %v349 = vpop.f32.mrb[0].mxu0
    %v350 = vadd.f32 %v131, %v349
    %v351 = vpop.f32.mrb[0].mxu0
    %v352 = vadd.f32 %v135, %v351
    %v353 = vpop.f32.mrb[0].mxu0
    %v354 = vadd.f32 %v131, %v353
    %v355 = vpop.f32.mrb[0].mxu0
    %v356 = vadd.f32 %v135, %v355
    %357 = vmatprep.mubr.bf16.mxu0 0
    %358 = vmatmul.mubr.bf16.gmra.mrb[0].mxu0 %v162
    %v359 = vpop.f32.mrb[0].mxu0
    %v360 = vadd.f32 %v131, %v359
    %v361 = vpop.f32.mrb[0].mxu0
    %v362 = vadd.f32 %v135, %v361
    %v363 = vpop.f32.mrb[0].mxu0
    %v364 = vadd.f32 %v131, %v363
    %v365 = vpop.f32.mrb[0].mxu0
    %v366 = vadd.f32 %v135, %v365
    %367 = vdwg.mxu0
    %368 = vmatprep.subr.bf16.mxu0 0
    %369 = vmatpush1.bf16.msra.mxu0 %v249
    %370 = vmatprep.subr.bf16.mxu0 0
    %371 = vmatpush1.bf16.msra.mxu0 %v252
    %372 = vmatprep.subr.bf16.mxu0 0
    %373 = vmatpush1.bf16.msra.mxu0 %v255
    %374 = vmatprep.subr.bf16.mxu0 0
    %375 = vmatpush1.bf16.msra.mxu0 %v258
    %376 = vmatprep.subr.bf16.mxu0 0
    %377 = vmatpush1.bf16.msra.mxu0 %v261
    %378 = vmatprep.subr.bf16.mxu0 0
    %379 = vmatpush1.bf16.msra.mxu0 %v264
    %380 = vmatprep.subr.bf16.mxu0 0
    %381 = vmatpush1.bf16.msra.mxu0 %v267
    %382 = vmatprep.subr.bf16.mxu0 0
    %383 = vmatpush1.bf16.msra.mxu0 %v270
    %384 = vmatprep.subr.bf16.mxu0 0
    %385 = vmatpush1.bf16.msra.mxu0 0
    %386 = vmatprep.subr.bf16.mxu0 0
    %387 = vmatpush1.bf16.msra.mxu0 0
    %388 = vmatprep.subr.bf16.mxu0 0
    %389 = vmatpush1.bf16.msra.mxu0 0
    %390 = vmatprep.subr.bf16.mxu0 0
    %391 = vmatpush1.bf16.msra.mxu0 0
    %392 = vmatprep.subr.bf16.mxu0 0
    %393 = vmatpush1.bf16.msra.mxu0 0
    %394 = vmatprep.subr.bf16.mxu0 0
    %395 = vmatpush1.bf16.msra.mxu0 0
    %396 = vmatprep.subr.bf16.mxu0 0
    %397 = vmatpush1.bf16.msra.mxu0 0
    %398 = vmatprep.subr.bf16.mxu0 0
    %399 = vmatpush1.bf16.msra.mxu0 0
    %400 = vmatprep.mubr.bf16.mxu0 0
    %401 = vmatmul.mubr.bf16.gmra.mrb[0].mxu0 %v159
    %v402 = vpop.f32.mrb[0].mxu0
    %v403 = vadd.f32 %v139, %v402
    %v404 = vpop.f32.mrb[0].mxu0
    %v405 = vpop.f32.mrb[0].mxu0
    %v406 = vadd.f32 %v139, %v405
    %v407 = vpop.f32.mrb[0].mxu0
    %408 = vmatprep.mubr.bf16.mxu0 0
    %409 = vmatmul.mubr.bf16.gmra.mrb[0].mxu0 %v160
    %v410 = vpop.f32.mrb[0].mxu0
    %v411 = vadd.f32 %v139, %v410
    %v412 = vpop.f32.mrb[0].mxu0
    %v413 = vpop.f32.mrb[0].mxu0
    %v414 = vadd.f32 %v139, %v413
    %v415 = vpop.f32.mrb[0].mxu0
    %416 = vmatprep.mubr.bf16.mxu0 0
    %417 = vmatmul.mubr.bf16.gmra.mrb[0].mxu0 %v161
    %v418 = vpop.f32.mrb[0].mxu0
    %v419 = vadd.f32 %v139, %v418
    %v420 = vpop.f32.mrb[0].mxu0
    %v421 = vpop.f32.mrb[0].mxu0
    %v422 = vadd.f32 %v139, %v421
    %v423 = vpop.f32.mrb[0].mxu0
    %424 = vmatprep.mubr.bf16.mxu0 0
    %425 = vmatmul.mubr.bf16.gmra.mrb[0].mxu0 %v162
    %v426 = vpop.f32.mrb[0].mxu0
    %v427 = vadd.f32 %v139, %v426
    %v428 = vpop.f32.mrb[0].mxu0
    %v429 = vpop.f32.mrb[0].mxu0
    %v430 = vadd.f32 %v139, %v429
    %v431 = vpop.f32.mrb[0].mxu0
    %432 = vdwg.mxu0
    %433 = vst [vmem:[#allocation2] sm:$0xff] %v330
    %434 = vst [vmem:[#allocation2 + $0x8] sm:$0xff] %v332
    %435 = vst [vmem:[#allocation2 + $0x10] sm:$0xff] %v403
    %436 = vst [vmem:[#allocation2 + $0x18] sm:$0xff] %v334
    %437 = vst [vmem:[#allocation2 + $0x20] sm:$0xff] %v336
    %438 = vst [vmem:[#allocation2 + $0x28] sm:$0xff] %v406
    %439 = vst [vmem:[#allocation2 + $0x30] sm:$0xff] %v340
    %440 = vst [vmem:[#allocation2 + $0x38] sm:$0xff] %v342
    %441 = vst [vmem:[#allocation2 + $0x40] sm:$0xff] %v411
    %442 = vst [vmem:[#allocation2 + $0x48] sm:$0xff] %v344
    %443 = vst [vmem:[#allocation2 + $0x50] sm:$0xff] %v346
    %444 = vst [vmem:[#allocation2 + $0x58] sm:$0xff] %v414
    %445 = vst [vmem:[#allocation2 + $0x60] sm:$0xff] %v350
    %446 = vst [vmem:[#allocation2 + $0x68] sm:$0xff] %v352
    %447 = vst [vmem:[#allocation2 + $0x70] sm:$0xff] %v419
    %448 = vst [vmem:[#allocation2 + $0x78] sm:$0xff] %v354
    %449 = vst [vmem:[#allocation2 + $0x80] sm:$0xff] %v356
    %450 = vst [vmem:[#allocation2 + $0x88] sm:$0xff] %v422
    %451 = vst [vmem:[#allocation2 + $0x90] sm:$0xff] %v360
    %452 = vst [vmem:[#allocation2 + $0x98] sm:$0xff] %v362
    %453 = vst [vmem:[#allocation2 + $0xa0] sm:$0xff] %v427
    %454 = vst [vmem:[#allocation2 + $0xa8] sm:$0xff] %v364
    %455 = vst [vmem:[#allocation2 + $0xb0] sm:$0xff] %v366
    %456 = vst [vmem:[#allocation2 + $0xb8] sm:$0xff] %v430
    %v457 = vld [vmem:[#allocation10] sm:$0xff]
    %v458 = vld [vmem:[#allocation10 + $0x8] sm:$0xf]
    %v459 = vld [vmem:[#allocation10 + $0xc] sm:$0xff]
    %v460 = vld [vmem:[#allocation10 + $0x14] sm:$0xf]
    %v461 = vld [vmem:[#allocation10 + $0x18] sm:$0xff]
    %v462 = vld [vmem:[#allocation10 + $0x20] sm:$0xf]
    %v463 = vld [vmem:[#allocation10 + $0x24] sm:$0xff]
    %v464 = vld [vmem:[#allocation10 + $0x2c] sm:$0xf]
    %v465 = vld [vmem:[#allocation10 + $0x30] sm:$0xff]
    %v466 = vld [vmem:[#allocation10 + $0x38] sm:$0xf]
    %v467 = vld [vmem:[#allocation10 + $0x3c] sm:$0xff]
    %v468 = vld [vmem:[#allocation10 + $0x44] sm:$0xf]
    %v469 = vld [vmem:[#allocation10 + $0x48] sm:$0xff]
    %v470 = vld [vmem:[#allocation10 + $0x50] sm:$0xf]
    %v471 = vld [vmem:[#allocation10 + $0x54] sm:$0xff]
    %v472 = vld [vmem:[#allocation10 + $0x5c] sm:$0xf]
    %v473 = vld [vmem:[#allocation10 + $0x60] sm:$0xff]
    %v474 = vld [vmem:[#allocation10 + $0x68] sm:$0xf]
    %v475 = vld [vmem:[#allocation10 + $0x6c] sm:$0xff]
    %v476 = vld [vmem:[#allocation10 + $0x74] sm:$0xf]
    %v477 = vld [vmem:[#allocation10 + $0x78] sm:$0xff]
    %v478 = vld [vmem:[#allocation10 + $0x80] sm:$0xf]
    %v479 = vld [vmem:[#allocation10 + $0x84] sm:$0xff]
    %v480 = vld [vmem:[#allocation10 + $0x8c] sm:$0xf]
    %v481 = vld [vmem:[#allocation10 + $0x90] sm:$0xff]
    %v482 = vld [vmem:[#allocation10 + $0x98] sm:$0xf]
    %v483 = vld [vmem:[#allocation10 + $0x9c] sm:$0xff]
    %v484 = vld [vmem:[#allocation10 + $0xa4] sm:$0xf]
    %v485 = vld [vmem:[#allocation10 + $0xa8] sm:$0xff]
    %v486 = vld [vmem:[#allocation10 + $0xb0] sm:$0xf]
    %v487 = vld [vmem:[#allocation10 + $0xb4] sm:$0xff]
    %v488 = vld [vmem:[#allocation10 + $0xbc] sm:$0xf]
    %v489 = vld [vmem:[#allocation3] sm:$0xff]
    %v490 = vld [vmem:[#allocation4] sm:$0xff]
    %s491 = smul.u32 0, 3
    %s492 = smul.addr %s491, 8
    %s493 = scalar_lea.vmem [#allocation2], %s492
    %v494 = vld [vmem:[%s493] sm:$0xff]
    %v495 = vld [vmem:[%s493 + $0x8] sm:$0xff]
    %v496 = vld [vmem:[%s493 + $0x10] sm:$0xff]
    %v497 = vpack.c.bf16 %v489, %v489
    %v530 = vunpack.c.l.b16 %v457
    %v531 = vunpack.c.h.b16 %v457
    %v532 = vunpack.c.l.b16 %v458
    %v533 = vunpack.c.l.b16 %v459
    %v534 = vunpack.c.h.b16 %v459
    %v535 = vunpack.c.l.b16 %v460
    %v536 = vunpack.c.l.b16 %v461
    %v537 = vunpack.c.h.b16 %v461
    %v538 = vunpack.c.l.b16 %v462
    %v539 = vunpack.c.l.b16 %v463
    %v540 = vunpack.c.h.b16 %v463
    %v541 = vunpack.c.l.b16 %v464
    %v542 = vunpack.c.l.b16 %v465
    %v543 = vunpack.c.h.b16 %v465
    %v544 = vunpack.c.l.b16 %v466
    %v545 = vunpack.c.l.b16 %v467
    %v546 = vunpack.c.h.b16 %v467
    %v547 = vunpack.c.l.b16 %v468
    %v548 = vunpack.c.l.b16 %v469
    %v549 = vunpack.c.h.b16 %v469
    %v550 = vunpack.c.l.b16 %v470
    %v551 = vunpack.c.l.b16 %v471
    %v552 = vunpack.c.h.b16 %v471
    %v553 = vunpack.c.l.b16 %v472
    %v554 = vunpack.c.l.b16 %v473
    %v555 = vunpack.c.h.b16 %v473
    %v556 = vunpack.c.l.b16 %v474
    %v557 = vunpack.c.l.b16 %v475
    %v558 = vunpack.c.h.b16 %v475
    %v559 = vunpack.c.l.b16 %v476
    %v560 = vunpack.c.l.b16 %v477
    %v561 = vunpack.c.h.b16 %v477
    %v562 = vunpack.c.l.b16 %v478
    %v563 = vunpack.c.l.b16 %v479
    %v564 = vunpack.c.h.b16 %v479
    %v565 = vunpack.c.l.b16 %v480
    %v566 = vunpack.c.l.b16 %v481
    %v567 = vunpack.c.h.b16 %v481
    %v568 = vunpack.c.l.b16 %v482
    %v569 = vunpack.c.l.b16 %v483
    %v570 = vunpack.c.h.b16 %v483
    %v571 = vunpack.c.l.b16 %v484
    %v572 = vunpack.c.l.b16 %v485
    %v573 = vunpack.c.h.b16 %v485
    %v574 = vunpack.c.l.b16 %v486
    %v575 = vunpack.c.l.b16 %v487
    %v576 = vunpack.c.h.b16 %v487
    %v577 = vunpack.c.l.b16 %v488
    %v578 = vpack.c.b16 %v533, %v530
    %v579 = vpack.c.b16 %v534, %v531
    %v580 = vpack.c.b16 %v535, %v532
    %v581 = vpack.c.b16 %v539, %v536
    %v582 = vpack.c.b16 %v540, %v537
    %v583 = vpack.c.b16 %v541, %v538
    %v584 = vpack.c.b16 %v545, %v542
    %v585 = vpack.c.b16 %v546, %v543
    %v586 = vpack.c.b16 %v547, %v544
    %v587 = vpack.c.b16 %v551, %v548
    %v588 = vpack.c.b16 %v552, %v549
    %v589 = vpack.c.b16 %v553, %v550
    %v590 = vpack.c.b16 %v557, %v554
    %v591 = vpack.c.b16 %v558, %v555
    %v592 = vpack.c.b16 %v559, %v556
    %v593 = vpack.c.b16 %v563, %v560
    %v594 = vpack.c.b16 %v564, %v561
    %v595 = vpack.c.b16 %v565, %v562
    %v596 = vpack.c.b16 %v569, %v566
    %v597 = vpack.c.b16 %v570, %v567
    %v598 = vpack.c.b16 %v571, %v568
    %v599 = vpack.c.b16 %v575, %v572
    %v600 = vpack.c.b16 %v576, %v573
    %v601 = vpack.c.b16 %v577, %v574
    %626 = vmatprep.subr.bf16.mxu0 %v579
    %627 = vmatpush1.bf16.msra.mxu0 %v578
    %628 = vmatprep.subr.bf16.mxu0 %v582
    %629 = vmatpush1.bf16.msra.mxu0 %v581
    %630 = vmatprep.subr.bf16.mxu0 %v585
    %631 = vmatpush1.bf16.msra.mxu0 %v584
    %632 = vmatprep.subr.bf16.mxu0 %v588
    %633 = vmatpush1.bf16.msra.mxu0 %v587
    %634 = vmatprep.subr.bf16.mxu0 %v591
    %635 = vmatpush1.bf16.msra.mxu0 %v590
    %636 = vmatprep.subr.bf16.mxu0 %v594
    %637 = vmatpush1.bf16.msra.mxu0 %v593
    %638 = vmatprep.subr.bf16.mxu0 %v597
    %639 = vmatpush1.bf16.msra.mxu0 %v596
    %640 = vmatprep.subr.bf16.mxu0 %v600
    %641 = vmatpush1.bf16.msra.mxu0 %v599
    %642 = vmatprep.subr.bf16.mxu0 0
    %643 = vmatpush1.bf16.msra.mxu0 0
    %644 = vmatprep.subr.bf16.mxu0 0
    %645 = vmatpush1.bf16.msra.mxu0 0
    %646 = vmatprep.subr.bf16.mxu0 0
    %647 = vmatpush1.bf16.msra.mxu0 0
    %648 = vmatprep.subr.bf16.mxu0 0
    %649 = vmatpush1.bf16.msra.mxu0 0
    %650 = vmatprep.subr.bf16.mxu0 0
    %651 = vmatpush1.bf16.msra.mxu0 0
    %652 = vmatprep.subr.bf16.mxu0 0
    %653 = vmatpush1.bf16.msra.mxu0 0
    %654 = vmatprep.subr.bf16.mxu0 0
    %655 = vmatpush1.bf16.msra.mxu0 0
    %656 = vmatprep.subr.bf16.mxu0 0
    %657 = vmatpush1.bf16.msra.mxu0 0
    %658 = vmatprep.mubr.bf16.mxu0 0
    %659 = vmatmul.mubr.bf16.gmra.mrb[0].mxu0 %v497
    %v660 = vpop.f32.mrb[0].mxu0
    %v661 = vadd.f32 0.0, %v660
    %v662 = vpop.f32.mrb[0].mxu0
    %v663 = vadd.f32 0.0, %v662
    %v664 = vpop.f32.mrb[0].mxu0
    %v665 = vpop.f32.mrb[0].mxu0
    %666 = vdwg.mxu0
    %667 = vmatprep.subr.bf16.mxu0 0
    %668 = vmatpush1.bf16.msra.mxu0 %v580
    %669 = vmatprep.subr.bf16.mxu0 0
    %670 = vmatpush1.bf16.msra.mxu0 %v583
    %671 = vmatprep.subr.bf16.mxu0 0
    %672 = vmatpush1.bf16.msra.mxu0 %v586
    %673 = vmatprep.subr.bf16.mxu0 0
    %674 = vmatpush1.bf16.msra.mxu0 %v589
    %675 = vmatprep.subr.bf16.mxu0 0
    %676 = vmatpush1.bf16.msra.mxu0 %v592
    %677 = vmatprep.subr.bf16.mxu0 0
    %678 = vmatpush1.bf16.msra.mxu0 %v595
    %679 = vmatprep.subr.bf16.mxu0 0
    %680 = vmatpush1.bf16.msra.mxu0 %v598
    %681 = vmatprep.subr.bf16.mxu0 0
    %682 = vmatpush1.bf16.msra.mxu0 %v601
    %683 = vmatprep.subr.bf16.mxu0 0
    %684 = vmatpush1.bf16.msra.mxu0 0
    %685 = vmatprep.subr.bf16.mxu0 0
    %686 = vmatpush1.bf16.msra.mxu0 0
    %687 = vmatprep.subr.bf16.mxu0 0
    %688 = vmatpush1.bf16.msra.mxu0 0
    %689 = vmatprep.subr.bf16.mxu0 0
    %690 = vmatpush1.bf16.msra.mxu0 0
    %691 = vmatprep.subr.bf16.mxu0 0
    %692 = vmatpush1.bf16.msra.mxu0 0
    %693 = vmatprep.subr.bf16.mxu0 0
    %694 = vmatpush1.bf16.msra.mxu0 0
    %695 = vmatprep.subr.bf16.mxu0 0
    %696 = vmatpush1.bf16.msra.mxu0 0
    %697 = vmatprep.subr.bf16.mxu0 0
    %698 = vmatpush1.bf16.msra.mxu0 0
    %699 = vmatprep.mubr.bf16.mxu0 0
    %700 = vmatmul.mubr.bf16.gmra.mrb[0].mxu0 %v497
    %v701 = vpop.f32.mrb[0].mxu0
    %v702 = vadd.f32 0.0, %v701
    %v703 = vpop.f32.mrb[0].mxu0
    %v704 = vpop.f32.mrb[0].mxu0
    %v705 = vpop.f32.mrb[0].mxu0
    %706 = vdwg.mxu0
    %v707 = vadd.f32 %v494, %v661
    %v708 = vadd.f32 %v495, %v663
    %v709 = vadd.f32 %v496, %v702
    %v710 = vxor.u32 %v707, 2147483648
    %v711 = vxor.u32 %v708, 2147483648
    %v712 = vmul.f32 %v710, 1.442695
    %v713 = vpow.pop %v712
    %v714 = vmul.f32 %v711, 1.442695
    %v715 = vpow.pop %v714
    %v716 = vadd.f32 %v713, 1.0
    %v717 = vadd.f32 %v715, 1.0
    %v718 = vrcp.pop %v716
    %v719 = vmul.f32 1.0, %v718
    %v720 = vrcp.pop %v717
    %v721 = vmul.f32 1.0, %v720
    %v722 = vtanh.pop %v709
    %v723 = vmul.f32 %v721, %v490
    %v724 = vmul.f32 %v719, %v722
    %v725 = vadd.f32 %v723, %v724
    %v726 = vtanh.pop %v725
    %s727 = smul.u32 1, 3
    %s728 = smul.addr %s727, 8
    %s729 = scalar_lea.vmem [#allocation2], %s728
    %v730 = vld [vmem:[%s729] sm:$0xff]
    %v731 = vld [vmem:[%s729 + $0x8] sm:$0xff]
    %v732 = vld [vmem:[%s729 + $0x10] sm:$0xff]
    %v733 = vpack.c.bf16 %v726, %v726
    %734 = vmatprep.subr.bf16.mxu0 %v579
    %735 = vmatpush1.bf16.msra.mxu0 %v578
    %736 = vmatprep.subr.bf16.mxu0 %v582
    %737 = vmatpush1.bf16.msra.mxu0 %v581
    %738 = vmatprep.subr.bf16.mxu0 %v585
    %739 = vmatpush1.bf16.msra.mxu0 %v584
    %740 = vmatprep.subr.bf16.mxu0 %v588
    %741 = vmatpush1.bf16.msra.mxu0 %v587
    %742 = vmatprep.subr.bf16.mxu0 %v591
    %743 = vmatpush1.bf16.msra.mxu0 %v590
    %744 = vmatprep.subr.bf16.mxu0 %v594
    %745 = vmatpush1.bf16.msra.mxu0 %v593
    %746 = vmatprep.subr.bf16.mxu0 %v597
    %747 = vmatpush1.bf16.msra.mxu0 %v596
    %748 = vmatprep.subr.bf16.mxu0 %v600
    %749 = vmatpush1.bf16.msra.mxu0 %v599
    %750 = vmatprep.subr.bf16.mxu0 0
    %751 = vmatpush1.bf16.msra.mxu0 0
    %752 = vmatprep.subr.bf16.mxu0 0
    %753 = vmatpush1.bf16.msra.mxu0 0
    %754 = vmatprep.subr.bf16.mxu0 0
    %755 = vmatpush1.bf16.msra.mxu0 0
    %756 = vmatprep.subr.bf16.mxu0 0
    %757 = vmatpush1.bf16.msra.mxu0 0
    %758 = vmatprep.subr.bf16.mxu0 0
    %759 = vmatpush1.bf16.msra.mxu0 0
    %760 = vmatprep.subr.bf16.mxu0 0
    %761 = vmatpush1.bf16.msra.mxu0 0
    %762 = vmatprep.subr.bf16.mxu0 0
    %763 = vmatpush1.bf16.msra.mxu0 0
    %764 = vmatprep.subr.bf16.mxu0 0
    %765 = vmatpush1.bf16.msra.mxu0 0
    %766 = vmatprep.mubr.bf16.mxu0 0
    %767 = vmatmul.mubr.bf16.gmra.mrb[0].mxu0 %v733
    %v768 = vpop.f32.mrb[0].mxu0
    %v769 = vadd.f32 0.0, %v768
    %v770 = vpop.f32.mrb[0].mxu0
    %v771 = vadd.f32 0.0, %v770
    %v772 = vpop.f32.mrb[0].mxu0
    %v773 = vpop.f32.mrb[0].mxu0
    %774 = vdwg.mxu0
    %775 = vmatprep.subr.bf16.mxu0 0
    %776 = vmatpush1.bf16.msra.mxu0 %v580
    %777 = vmatprep.subr.bf16.mxu0 0
    %778 = vmatpush1.bf16.msra.mxu0 %v583
    %779 = vmatprep.subr.bf16.mxu0 0
    %780 = vmatpush1.bf16.msra.mxu0 %v586
    %781 = vmatprep.subr.bf16.mxu0 0
    %782 = vmatpush1.bf16.msra.mxu0 %v589
    %783 = vmatprep.subr.bf16.mxu0 0
    %784 = vmatpush1.bf16.msra.mxu0 %v592
    %785 = vmatprep.subr.bf16.mxu0 0
    %786 = vmatpush1.bf16.msra.mxu0 %v595
    %787 = vmatprep.subr.bf16.mxu0 0
    %788 = vmatpush1.bf16.msra.mxu0 %v598
    %789 = vmatprep.subr.bf16.mxu0 0
    %790 = vmatpush1.bf16.msra.mxu0 %v601
    %791 = vmatprep.subr.bf16.mxu0 0
    %792 = vmatpush1.bf16.msra.mxu0 0
    %793 = vmatprep.subr.bf16.mxu0 0
    %794 = vmatpush1.bf16.msra.mxu0 0
    %795 = vmatprep.subr.bf16.mxu0 0
    %796 = vmatpush1.bf16.msra.mxu0 0
    %797 = vmatprep.subr.bf16.mxu0 0
    %798 = vmatpush1.bf16.msra.mxu0 0
    %799 = vmatprep.subr.bf16.mxu0 0
    %800 = vmatpush1.bf16.msra.mxu0 0
    %801 = vmatprep.subr.bf16.mxu0 0
    %802 = vmatpush1.bf16.msra.mxu0 0
    %803 = vmatprep.subr.bf16.mxu0 0
    %804 = vmatpush1.bf16.msra.mxu0 0
    %805 = vmatprep.subr.bf16.mxu0 0
    %806 = vmatpush1.bf16.msra.mxu0 0
    %807 = vmatprep.mubr.bf16.mxu0 0
    %808 = vmatmul.mubr.bf16.gmra.mrb[0].mxu0 %v733
    %v809 = vpop.f32.mrb[0].mxu0
    %v810 = vadd.f32 0.0, %v809
    %v811 = vpop.f32.mrb[0].mxu0
    %v812 = vpop.f32.mrb[0].mxu0
    %v813 = vpop.f32.mrb[0].mxu0
    %814 = vdwg.mxu0
    %v815 = vadd.f32 %v730, %v769
    %v816 = vadd.f32 %v731, %v771
    %v817 = vadd.f32 %v732, %v810
    %v818 = vxor.u32 %v815, 2147483648
    %v819 = vxor.u32 %v816, 2147483648
    %v820 = vmul.f32 %v818, 1.442695
    %v821 = vpow.pop %v820
    %v822 = vmul.f32 %v819, 1.442695
    %v823 = vpow.pop %v822
    %v824 = vadd.f32 %v821, 1.0
    %v825 = vadd.f32 %v823, 1.0
    %v826 = vrcp.pop %v824
    %v827 = vmul.f32 1.0, %v826
    %v828 = vrcp.pop %v825
    %v829 = vmul.f32 1.0, %v828
    %v830 = vtanh.pop %v817
    %v831 = vmul.f32 %v829, %v725
    %v832 = vmul.f32 %v827, %v830
    %v833 = vadd.f32 %v831, %v832
    %v834 = vtanh.pop %v833
    %s835 = smul.u32 2, 3
    %s836 = smul.addr %s835, 8
    %s837 = scalar_lea.vmem [#allocation2], %s836
    %v838 = vld [vmem:[%s837] sm:$0xff]
    %v839 = vld [vmem:[%s837 + $0x8] sm:$0xff]
    %v840 = vld [vmem:[%s837 + $0x10] sm:$0xff]
    %v841 = vpack.c.bf16 %v834, %v834
    %842 = vmatprep.subr.bf16.mxu0 %v579
    %843 = vmatpush1.bf16.msra.mxu0 %v578
    %844 = vmatprep.subr.bf16.mxu0 %v582
    %845 = vmatpush1.bf16.msra.mxu0 %v581
    %846 = vmatprep.subr.bf16.mxu0 %v585
    %847 = vmatpush1.bf16.msra.mxu0 %v584
    %848 = vmatprep.subr.bf16.mxu0 %v588
    %849 = vmatpush1.bf16.msra.mxu0 %v587
    %850 = vmatprep.subr.bf16.mxu0 %v591
    %851 = vmatpush1.bf16.msra.mxu0 %v590
    %852 = vmatprep.subr.bf16.mxu0 %v594
    %853 = vmatpush1.bf16.msra.mxu0 %v593
    %854 = vmatprep.subr.bf16.mxu0 %v597
    %855 = vmatpush1.bf16.msra.mxu0 %v596
    %856 = vmatprep.subr.bf16.mxu0 %v600
    %857 = vmatpush1.bf16.msra.mxu0 %v599
    %858 = vmatprep.subr.bf16.mxu0 0
    %859 = vmatpush1.bf16.msra.mxu0 0
    %860 = vmatprep.subr.bf16.mxu0 0
    %861 = vmatpush1.bf16.msra.mxu0 0
    %862 = vmatprep.subr.bf16.mxu0 0
    %863 = vmatpush1.bf16.msra.mxu0 0
    %864 = vmatprep.subr.bf16.mxu0 0
    %865 = vmatpush1.bf16.msra.mxu0 0
    %866 = vmatprep.subr.bf16.mxu0 0
    %867 = vmatpush1.bf16.msra.mxu0 0
    %868 = vmatprep.subr.bf16.mxu0 0
    %869 = vmatpush1.bf16.msra.mxu0 0
    %870 = vmatprep.subr.bf16.mxu0 0
    %871 = vmatpush1.bf16.msra.mxu0 0
    %872 = vmatprep.subr.bf16.mxu0 0
    %873 = vmatpush1.bf16.msra.mxu0 0
    %874 = vmatprep.mubr.bf16.mxu0 0
    %875 = vmatmul.mubr.bf16.gmra.mrb[0].mxu0 %v841
    %v876 = vpop.f32.mrb[0].mxu0
    %v877 = vadd.f32 0.0, %v876
    %v878 = vpop.f32.mrb[0].mxu0
    %v879 = vadd.f32 0.0, %v878
    %v880 = vpop.f32.mrb[0].mxu0
    %v881 = vpop.f32.mrb[0].mxu0
    %882 = vdwg.mxu0
    %883 = vmatprep.subr.bf16.mxu0 0
    %884 = vmatpush1.bf16.msra.mxu0 %v580
    %885 = vmatprep.subr.bf16.mxu0 0
    %886 = vmatpush1.bf16.msra.mxu0 %v583
    %887 = vmatprep.subr.bf16.mxu0 0
    %888 = vmatpush1.bf16.msra.mxu0 %v586
    %889 = vmatprep.subr.bf16.mxu0 0
    %890 = vmatpush1.bf16.msra.mxu0 %v589
    %891 = vmatprep.subr.bf16.mxu0 0
    %892 = vmatpush1.bf16.msra.mxu0 %v592
    %893 = vmatprep.subr.bf16.mxu0 0
    %894 = vmatpush1.bf16.msra.mxu0 %v595
    %895 = vmatprep.subr.bf16.mxu0 0
    %896 = vmatpush1.bf16.msra.mxu0 %v598
    %897 = vmatprep.subr.bf16.mxu0 0
    %898 = vmatpush1.bf16.msra.mxu0 %v601
    %899 = vmatprep.subr.bf16.mxu0 0
    %900 = vmatpush1.bf16.msra.mxu0 0
    %901 = vmatprep.subr.bf16.mxu0 0
    %902 = vmatpush1.bf16.msra.mxu0 0
    %903 = vmatprep.subr.bf16.mxu0 0
    %904 = vmatpush1.bf16.msra.mxu0 0
    %905 = vmatprep.subr.bf16.mxu0 0
    %906 = vmatpush1.bf16.msra.mxu0 0
    %907 = vmatprep.subr.bf16.mxu0 0
    %908 = vmatpush1.bf16.msra.mxu0 0
    %909 = vmatprep.subr.bf16.mxu0 0
    %910 = vmatpush1.bf16.msra.mxu0 0
    %911 = vmatprep.subr.bf16.mxu0 0
    %912 = vmatpush1.bf16.msra.mxu0 0
    %913 = vmatprep.subr.bf16.mxu0 0
    %914 = vmatpush1.bf16.msra.mxu0 0
    %915 = vmatprep.mubr.bf16.mxu0 0
    %916 = vmatmul.mubr.bf16.gmra.mrb[0].mxu0 %v841
    %v917 = vpop.f32.mrb[0].mxu0
    %v918 = vadd.f32 0.0, %v917
    %v919 = vpop.f32.mrb[0].mxu0
    %v920 = vpop.f32.mrb[0].mxu0
    %v921 = vpop.f32.mrb[0].mxu0
    %922 = vdwg.mxu0
    %v923 = vadd.f32 %v838, %v877
    %v924 = vadd.f32 %v839, %v879
    %v925 = vadd.f32 %v840, %v918
    %v926 = vxor.u32 %v923, 2147483648
    %v927 = vxor.u32 %v924, 2147483648
    %v928 = vmul.f32 %v926, 1.442695
    %v929 = vpow.pop %v928
    %v930 = vmul.f32 %v927, 1.442695
    %v931 = vpow.pop %v930
    %v932 = vadd.f32 %v929, 1.0
    %v933 = vadd.f32 %v931, 1.0
    %v934 = vrcp.pop %v932
    %v935 = vmul.f32 1.0, %v934
    %v936 = vrcp.pop %v933
    %v937 = vmul.f32 1.0, %v936
    %v938 = vtanh.pop %v925
    %v939 = vmul.f32 %v937, %v833
    %v940 = vmul.f32 %v935, %v938
    %v941 = vadd.f32 %v939, %v940
    %v942 = vtanh.pop %v941
    %s943 = smul.u32 3, 3
    %s944 = smul.addr %s943, 8
    %s945 = scalar_lea.vmem [#allocation2], %s944
    %v946 = vld [vmem:[%s945] sm:$0xff]
    %v947 = vld [vmem:[%s945 + $0x8] sm:$0xff]
    %v948 = vld [vmem:[%s945 + $0x10] sm:$0xff]
    %v949 = vpack.c.bf16 %v942, %v942
    %950 = vmatprep.subr.bf16.mxu0 %v579
    %951 = vmatpush1.bf16.msra.mxu0 %v578
    %952 = vmatprep.subr.bf16.mxu0 %v582
    %953 = vmatpush1.bf16.msra.mxu0 %v581
    %954 = vmatprep.subr.bf16.mxu0 %v585
    %955 = vmatpush1.bf16.msra.mxu0 %v584
    %956 = vmatprep.subr.bf16.mxu0 %v588
    %957 = vmatpush1.bf16.msra.mxu0 %v587
    %958 = vmatprep.subr.bf16.mxu0 %v591
    %959 = vmatpush1.bf16.msra.mxu0 %v590
    %960 = vmatprep.subr.bf16.mxu0 %v594
    %961 = vmatpush1.bf16.msra.mxu0 %v593
    %962 = vmatprep.subr.bf16.mxu0 %v597
    %963 = vmatpush1.bf16.msra.mxu0 %v596
    %964 = vmatprep.subr.bf16.mxu0 %v600
    %965 = vmatpush1.bf16.msra.mxu0 %v599
    %966 = vmatprep.subr.bf16.mxu0 0
    %967 = vmatpush1.bf16.msra.mxu0 0
    %968 = vmatprep.subr.bf16.mxu0 0
    %969 = vmatpush1.bf16.msra.mxu0 0
    %970 = vmatprep.subr.bf16.mxu0 0
    %971 = vmatpush1.bf16.msra.mxu0 0
    %972 = vmatprep.subr.bf16.mxu0 0
    %973 = vmatpush1.bf16.msra.mxu0 0
    %974 = vmatprep.subr.bf16.mxu0 0
    %975 = vmatpush1.bf16.msra.mxu0 0
    %976 = vmatprep.subr.bf16.mxu0 0
    %977 = vmatpush1.bf16.msra.mxu0 0
    %978 = vmatprep.subr.bf16.mxu0 0
    %979 = vmatpush1.bf16.msra.mxu0 0
    %980 = vmatprep.subr.bf16.mxu0 0
    %981 = vmatpush1.bf16.msra.mxu0 0
    %982 = vmatprep.mubr.bf16.mxu0 0
    %983 = vmatmul.mubr.bf16.gmra.mrb[0].mxu0 %v949
    %v984 = vpop.f32.mrb[0].mxu0
    %v985 = vadd.f32 0.0, %v984
    %v986 = vpop.f32.mrb[0].mxu0
    %v987 = vadd.f32 0.0, %v986
    %v988 = vpop.f32.mrb[0].mxu0
    %v989 = vpop.f32.mrb[0].mxu0
    %990 = vdwg.mxu0
    %991 = vmatprep.subr.bf16.mxu0 0
    %992 = vmatpush1.bf16.msra.mxu0 %v580
    %993 = vmatprep.subr.bf16.mxu0 0
    %994 = vmatpush1.bf16.msra.mxu0 %v583
    %995 = vmatprep.subr.bf16.mxu0 0
    %996 = vmatpush1.bf16.msra.mxu0 %v586
    %997 = vmatprep.subr.bf16.mxu0 0
    %998 = vmatpush1.bf16.msra.mxu0 %v589
    %999 = vmatprep.subr.bf16.mxu0 0
    %1000 = vmatpush1.bf16.msra.mxu0 %v592
    %1001 = vmatprep.subr.bf16.mxu0 0
    %1002 = vmatpush1.bf16.msra.mxu0 %v595
    %1003 = vmatprep.subr.bf16.mxu0 0
    %1004 = vmatpush1.bf16.msra.mxu0 %v598
    %1005 = vmatprep.subr.bf16.mxu0 0
    %1006 = vmatpush1.bf16.msra.mxu0 %v601
    %1007 = vmatprep.subr.bf16.mxu0 0
    %1008 = vmatpush1.bf16.msra.mxu0 0
    %1009 = vmatprep.subr.bf16.mxu0 0
    %1010 = vmatpush1.bf16.msra.mxu0 0
    %1011 = vmatprep.subr.bf16.mxu0 0
    %1012 = vmatpush1.bf16.msra.mxu0 0
    %1013 = vmatprep.subr.bf16.mxu0 0
    %1014 = vmatpush1.bf16.msra.mxu0 0
    %1015 = vmatprep.subr.bf16.mxu0 0
    %1016 = vmatpush1.bf16.msra.mxu0 0
    %1017 = vmatprep.subr.bf16.mxu0 0
    %1018 = vmatpush1.bf16.msra.mxu0 0
    %1019 = vmatprep.subr.bf16.mxu0 0
    %1020 = vmatpush1.bf16.msra.mxu0 0
    %1021 = vmatprep.subr.bf16.mxu0 0
    %1022 = vmatpush1.bf16.msra.mxu0 0
    %1023 = vmatprep.mubr.bf16.mxu0 0
    %1024 = vmatmul.mubr.bf16.gmra.mrb[0].mxu0 %v949
    %v1025 = vpop.f32.mrb[0].mxu0
    %v1026 = vadd.f32 0.0, %v1025
    %v1027 = vpop.f32.mrb[0].mxu0
    %v1028 = vpop.f32.mrb[0].mxu0
    %v1029 = vpop.f32.mrb[0].mxu0
    %1030 = vdwg.mxu0
    %v1031 = vadd.f32 %v946, %v985
    %v1032 = vadd.f32 %v947, %v987
    %v1033 = vadd.f32 %v948, %v1026
    %v1034 = vxor.u32 %v1031, 2147483648
    %v1035 = vxor.u32 %v1032, 2147483648
    %v1036 = vmul.f32 %v1034, 1.442695
    %v1037 = vpow.pop %v1036
    %v1038 = vmul.f32 %v1035, 1.442695
    %v1039 = vpow.pop %v1038
    %v1040 = vadd.f32 %v1037, 1.0
    %v1041 = vadd.f32 %v1039, 1.0
    %v1042 = vrcp.pop %v1040
    %v1043 = vmul.f32 1.0, %v1042
    %v1044 = vrcp.pop %v1041
    %v1045 = vmul.f32 1.0, %v1044
    %v1046 = vtanh.pop %v1033
    %v1047 = vmul.f32 %v1045, %v941
    %v1048 = vmul.f32 %v1043, %v1046
    %v1049 = vadd.f32 %v1047, %v1048
    %v1050 = vtanh.pop %v1049
    %s1051 = smul.u32 4, 3
    %s1052 = smul.addr %s1051, 8
    %s1053 = scalar_lea.vmem [#allocation2], %s1052
    %v1054 = vld [vmem:[%s1053] sm:$0xff]
    %v1055 = vld [vmem:[%s1053 + $0x8] sm:$0xff]
    %v1056 = vld [vmem:[%s1053 + $0x10] sm:$0xff]
    %v1057 = vpack.c.bf16 %v1050, %v1050
    %1058 = vmatprep.subr.bf16.mxu0 %v579
    %1059 = vmatpush1.bf16.msra.mxu0 %v578
    %1060 = vmatprep.subr.bf16.mxu0 %v582
    %1061 = vmatpush1.bf16.msra.mxu0 %v581
    %1062 = vmatprep.subr.bf16.mxu0 %v585
    %1063 = vmatpush1.bf16.msra.mxu0 %v584
    %1064 = vmatprep.subr.bf16.mxu0 %v588
    %1065 = vmatpush1.bf16.msra.mxu0 %v587
    %1066 = vmatprep.subr.bf16.mxu0 %v591
    %1067 = vmatpush1.bf16.msra.mxu0 %v590
    %1068 = vmatprep.subr.bf16.mxu0 %v594
    %1069 = vmatpush1.bf16.msra.mxu0 %v593
    %1070 = vmatprep.subr.bf16.mxu0 %v597
    %1071 = vmatpush1.bf16.msra.mxu0 %v596
    %1072 = vmatprep.subr.bf16.mxu0 %v600
    %1073 = vmatpush1.bf16.msra.mxu0 %v599
    %1074 = vmatprep.subr.bf16.mxu0 0
    %1075 = vmatpush1.bf16.msra.mxu0 0
    %1076 = vmatprep.subr.bf16.mxu0 0
    %1077 = vmatpush1.bf16.msra.mxu0 0
    %1078 = vmatprep.subr.bf16.mxu0 0
    %1079 = vmatpush1.bf16.msra.mxu0 0
    %1080 = vmatprep.subr.bf16.mxu0 0
    %1081 = vmatpush1.bf16.msra.mxu0 0
    %1082 = vmatprep.subr.bf16.mxu0 0
    %1083 = vmatpush1.bf16.msra.mxu0 0
    %1084 = vmatprep.subr.bf16.mxu0 0
    %1085 = vmatpush1.bf16.msra.mxu0 0
    %1086 = vmatprep.subr.bf16.mxu0 0
    %1087 = vmatpush1.bf16.msra.mxu0 0
    %1088 = vmatprep.subr.bf16.mxu0 0
    %1089 = vmatpush1.bf16.msra.mxu0 0
    %1090 = vmatprep.mubr.bf16.mxu0 0
    %1091 = vmatmul.mubr.bf16.gmra.mrb[0].mxu0 %v1057
    %v1092 = vpop.f32.mrb[0].mxu0
    %v1093 = vadd.f32 0.0, %v1092
    %v1094 = vpop.f32.mrb[0].mxu0
    %v1095 = vadd.f32 0.0, %v1094
    %v1096 = vpop.f32.mrb[0].mxu0
    %v1097 = vpop.f32.mrb[0].mxu0
    %1098 = vdwg.mxu0
    %1099 = vmatprep.subr.bf16.mxu0 0
    %1100 = vmatpush1.bf16.msra.mxu0 %v580
    %1101 = vmatprep.subr.bf16.mxu0 0
    %1102 = vmatpush1.bf16.msra.mxu0 %v583
    %1103 = vmatprep.subr.bf16.mxu0 0
    %1104 = vmatpush1.bf16.msra.mxu0 %v586
    %1105 = vmatprep.subr.bf16.mxu0 0
    %1106 = vmatpush1.bf16.msra.mxu0 %v589
    %1107 = vmatprep.subr.bf16.mxu0 0
    %1108 = vmatpush1.bf16.msra.mxu0 %v592
    %1109 = vmatprep.subr.bf16.mxu0 0
    %1110 = vmatpush1.bf16.msra.mxu0 %v595
    %1111 = vmatprep.subr.bf16.mxu0 0
    %1112 = vmatpush1.bf16.msra.mxu0 %v598
    %1113 = vmatprep.subr.bf16.mxu0 0
    %1114 = vmatpush1.bf16.msra.mxu0 %v601
    %1115 = vmatprep.subr.bf16.mxu0 0
    %1116 = vmatpush1.bf16.msra.mxu0 0
    %1117 = vmatprep.subr.bf16.mxu0 0
    %1118 = vmatpush1.bf16.msra.mxu0 0
    %1119 = vmatprep.subr.bf16.mxu0 0
    %1120 = vmatpush1.bf16.msra.mxu0 0
    %1121 = vmatprep.subr.bf16.mxu0 0
    %1122 = vmatpush1.bf16.msra.mxu0 0
    %1123 = vmatprep.subr.bf16.mxu0 0
    %1124 = vmatpush1.bf16.msra.mxu0 0
    %1125 = vmatprep.subr.bf16.mxu0 0
    %1126 = vmatpush1.bf16.msra.mxu0 0
    %1127 = vmatprep.subr.bf16.mxu0 0
    %1128 = vmatpush1.bf16.msra.mxu0 0
    %1129 = vmatprep.subr.bf16.mxu0 0
    %1130 = vmatpush1.bf16.msra.mxu0 0
    %1131 = vmatprep.mubr.bf16.mxu0 0
    %1132 = vmatmul.mubr.bf16.gmra.mrb[0].mxu0 %v1057
    %v1133 = vpop.f32.mrb[0].mxu0
    %v1134 = vadd.f32 0.0, %v1133
    %v1135 = vpop.f32.mrb[0].mxu0
    %v1136 = vpop.f32.mrb[0].mxu0
    %v1137 = vpop.f32.mrb[0].mxu0
    %1138 = vdwg.mxu0
    %v1139 = vadd.f32 %v1054, %v1093
    %v1140 = vadd.f32 %v1055, %v1095
    %v1141 = vadd.f32 %v1056, %v1134
    %v1142 = vxor.u32 %v1139, 2147483648
    %v1143 = vxor.u32 %v1140, 2147483648
    %v1144 = vmul.f32 %v1142, 1.442695
    %v1145 = vpow.pop %v1144
    %v1146 = vmul.f32 %v1143, 1.442695
    %v1147 = vpow.pop %v1146
    %v1148 = vadd.f32 %v1145, 1.0
    %v1149 = vadd.f32 %v1147, 1.0
    %v1150 = vrcp.pop %v1148
    %v1151 = vmul.f32 1.0, %v1150
    %v1152 = vrcp.pop %v1149
    %v1153 = vmul.f32 1.0, %v1152
    %v1154 = vtanh.pop %v1141
    %v1155 = vmul.f32 %v1153, %v1049
    %v1156 = vmul.f32 %v1151, %v1154
    %v1157 = vadd.f32 %v1155, %v1156
    %v1158 = vtanh.pop %v1157
    %s1159 = smul.u32 5, 3
    %s1160 = smul.addr %s1159, 8
    %s1161 = scalar_lea.vmem [#allocation2], %s1160
    %v1162 = vld [vmem:[%s1161] sm:$0xff]
    %v1163 = vld [vmem:[%s1161 + $0x8] sm:$0xff]
    %v1164 = vld [vmem:[%s1161 + $0x10] sm:$0xff]
    %v1165 = vpack.c.bf16 %v1158, %v1158
    %1166 = vmatprep.subr.bf16.mxu0 %v579
    %1167 = vmatpush1.bf16.msra.mxu0 %v578
    %1168 = vmatprep.subr.bf16.mxu0 %v582
    %1169 = vmatpush1.bf16.msra.mxu0 %v581
    %1170 = vmatprep.subr.bf16.mxu0 %v585
    %1171 = vmatpush1.bf16.msra.mxu0 %v584
    %1172 = vmatprep.subr.bf16.mxu0 %v588
    %1173 = vmatpush1.bf16.msra.mxu0 %v587
    %1174 = vmatprep.subr.bf16.mxu0 %v591
    %1175 = vmatpush1.bf16.msra.mxu0 %v590
    %1176 = vmatprep.subr.bf16.mxu0 %v594
    %1177 = vmatpush1.bf16.msra.mxu0 %v593
    %1178 = vmatprep.subr.bf16.mxu0 %v597
    %1179 = vmatpush1.bf16.msra.mxu0 %v596
    %1180 = vmatprep.subr.bf16.mxu0 %v600
    %1181 = vmatpush1.bf16.msra.mxu0 %v599
    %1182 = vmatprep.subr.bf16.mxu0 0
    %1183 = vmatpush1.bf16.msra.mxu0 0
    %1184 = vmatprep.subr.bf16.mxu0 0
    %1185 = vmatpush1.bf16.msra.mxu0 0
    %1186 = vmatprep.subr.bf16.mxu0 0
    %1187 = vmatpush1.bf16.msra.mxu0 0
    %1188 = vmatprep.subr.bf16.mxu0 0
    %1189 = vmatpush1.bf16.msra.mxu0 0
    %1190 = vmatprep.subr.bf16.mxu0 0
    %1191 = vmatpush1.bf16.msra.mxu0 0
    %1192 = vmatprep.subr.bf16.mxu0 0
    %1193 = vmatpush1.bf16.msra.mxu0 0
    %1194 = vmatprep.subr.bf16.mxu0 0
    %1195 = vmatpush1.bf16.msra.mxu0 0
    %1196 = vmatprep.subr.bf16.mxu0 0
    %1197 = vmatpush1.bf16.msra.mxu0 0
    %1198 = vmatprep.mubr.bf16.mxu0 0
    %1199 = vmatmul.mubr.bf16.gmra.mrb[0].mxu0 %v1165
    %v1200 = vpop.f32.mrb[0].mxu0
    %v1201 = vadd.f32 0.0, %v1200
    %v1202 = vpop.f32.mrb[0].mxu0
    %v1203 = vadd.f32 0.0, %v1202
    %v1204 = vpop.f32.mrb[0].mxu0
    %v1205 = vpop.f32.mrb[0].mxu0
    %1206 = vdwg.mxu0
    %1207 = vmatprep.subr.bf16.mxu0 0
    %1208 = vmatpush1.bf16.msra.mxu0 %v580
    %1209 = vmatprep.subr.bf16.mxu0 0
    %1210 = vmatpush1.bf16.msra.mxu0 %v583
    %1211 = vmatprep.subr.bf16.mxu0 0
    %1212 = vmatpush1.bf16.msra.mxu0 %v586
    %1213 = vmatprep.subr.bf16.mxu0 0
    %1214 = vmatpush1.bf16.msra.mxu0 %v589
    %1215 = vmatprep.subr.bf16.mxu0 0
    %1216 = vmatpush1.bf16.msra.mxu0 %v592
    %1217 = vmatprep.subr.bf16.mxu0 0
    %1218 = vmatpush1.bf16.msra.mxu0 %v595
    %1219 = vmatprep.subr.bf16.mxu0 0
    %1220 = vmatpush1.bf16.msra.mxu0 %v598
    %1221 = vmatprep.subr.bf16.mxu0 0
    %1222 = vmatpush1.bf16.msra.mxu0 %v601
    %1223 = vmatprep.subr.bf16.mxu0 0
    %1224 = vmatpush1.bf16.msra.mxu0 0
    %1225 = vmatprep.subr.bf16.mxu0 0
    %1226 = vmatpush1.bf16.msra.mxu0 0
    %1227 = vmatprep.subr.bf16.mxu0 0
    %1228 = vmatpush1.bf16.msra.mxu0 0
    %1229 = vmatprep.subr.bf16.mxu0 0
    %1230 = vmatpush1.bf16.msra.mxu0 0
    %1231 = vmatprep.subr.bf16.mxu0 0
    %1232 = vmatpush1.bf16.msra.mxu0 0
    %1233 = vmatprep.subr.bf16.mxu0 0
    %1234 = vmatpush1.bf16.msra.mxu0 0
    %1235 = vmatprep.subr.bf16.mxu0 0
    %1236 = vmatpush1.bf16.msra.mxu0 0
    %1237 = vmatprep.subr.bf16.mxu0 0
    %1238 = vmatpush1.bf16.msra.mxu0 0
    %1239 = vmatprep.mubr.bf16.mxu0 0
    %1240 = vmatmul.mubr.bf16.gmra.mrb[0].mxu0 %v1165
    %v1241 = vpop.f32.mrb[0].mxu0
    %v1242 = vadd.f32 0.0, %v1241
    %v1243 = vpop.f32.mrb[0].mxu0
    %v1244 = vpop.f32.mrb[0].mxu0
    %v1245 = vpop.f32.mrb[0].mxu0
    %1246 = vdwg.mxu0
    %v1247 = vadd.f32 %v1162, %v1201
    %v1248 = vadd.f32 %v1163, %v1203
    %v1249 = vadd.f32 %v1164, %v1242
    %v1250 = vxor.u32 %v1247, 2147483648
    %v1251 = vxor.u32 %v1248, 2147483648
    %v1252 = vmul.f32 %v1250, 1.442695
    %v1253 = vpow.pop %v1252
    %v1254 = vmul.f32 %v1251, 1.442695
    %v1255 = vpow.pop %v1254
    %v1256 = vadd.f32 %v1253, 1.0
    %v1257 = vadd.f32 %v1255, 1.0
    %v1258 = vrcp.pop %v1256
    %v1259 = vmul.f32 1.0, %v1258
    %v1260 = vrcp.pop %v1257
    %v1261 = vmul.f32 1.0, %v1260
    %v1262 = vtanh.pop %v1249
    %v1263 = vmul.f32 %v1261, %v1157
    %v1264 = vmul.f32 %v1259, %v1262
    %v1265 = vadd.f32 %v1263, %v1264
    %v1266 = vtanh.pop %v1265
    %s1267 = smul.u32 6, 3
    %s1268 = smul.addr %s1267, 8
    %s1269 = scalar_lea.vmem [#allocation2], %s1268
    %v1270 = vld [vmem:[%s1269] sm:$0xff]
    %v1271 = vld [vmem:[%s1269 + $0x8] sm:$0xff]
    %v1272 = vld [vmem:[%s1269 + $0x10] sm:$0xff]
    %v1273 = vpack.c.bf16 %v1266, %v1266
    %1274 = vmatprep.subr.bf16.mxu0 %v579
    %1275 = vmatpush1.bf16.msra.mxu0 %v578
    %1276 = vmatprep.subr.bf16.mxu0 %v582
    %1277 = vmatpush1.bf16.msra.mxu0 %v581
    %1278 = vmatprep.subr.bf16.mxu0 %v585
    %1279 = vmatpush1.bf16.msra.mxu0 %v584
    %1280 = vmatprep.subr.bf16.mxu0 %v588
    %1281 = vmatpush1.bf16.msra.mxu0 %v587
    %1282 = vmatprep.subr.bf16.mxu0 %v591
    %1283 = vmatpush1.bf16.msra.mxu0 %v590
    %1284 = vmatprep.subr.bf16.mxu0 %v594
    %1285 = vmatpush1.bf16.msra.mxu0 %v593
    %1286 = vmatprep.subr.bf16.mxu0 %v597
    %1287 = vmatpush1.bf16.msra.mxu0 %v596
    %1288 = vmatprep.subr.bf16.mxu0 %v600
    %1289 = vmatpush1.bf16.msra.mxu0 %v599
    %1290 = vmatprep.subr.bf16.mxu0 0
    %1291 = vmatpush1.bf16.msra.mxu0 0
    %1292 = vmatprep.subr.bf16.mxu0 0
    %1293 = vmatpush1.bf16.msra.mxu0 0
    %1294 = vmatprep.subr.bf16.mxu0 0
    %1295 = vmatpush1.bf16.msra.mxu0 0
    %1296 = vmatprep.subr.bf16.mxu0 0
    %1297 = vmatpush1.bf16.msra.mxu0 0
    %1298 = vmatprep.subr.bf16.mxu0 0
    %1299 = vmatpush1.bf16.msra.mxu0 0
    %1300 = vmatprep.subr.bf16.mxu0 0
    %1301 = vmatpush1.bf16.msra.mxu0 0
    %1302 = vmatprep.subr.bf16.mxu0 0
    %1303 = vmatpush1.bf16.msra.mxu0 0
    %1304 = vmatprep.subr.bf16.mxu0 0
    %1305 = vmatpush1.bf16.msra.mxu0 0
    %1306 = vmatprep.mubr.bf16.mxu0 0
    %1307 = vmatmul.mubr.bf16.gmra.mrb[0].mxu0 %v1273
    %v1308 = vpop.f32.mrb[0].mxu0
    %v1309 = vadd.f32 0.0, %v1308
    %v1310 = vpop.f32.mrb[0].mxu0
    %v1311 = vadd.f32 0.0, %v1310
    %v1312 = vpop.f32.mrb[0].mxu0
    %v1313 = vpop.f32.mrb[0].mxu0
    %1314 = vdwg.mxu0
    %1315 = vmatprep.subr.bf16.mxu0 0
    %1316 = vmatpush1.bf16.msra.mxu0 %v580
    %1317 = vmatprep.subr.bf16.mxu0 0
    %1318 = vmatpush1.bf16.msra.mxu0 %v583
    %1319 = vmatprep.subr.bf16.mxu0 0
    %1320 = vmatpush1.bf16.msra.mxu0 %v586
    %1321 = vmatprep.subr.bf16.mxu0 0
    %1322 = vmatpush1.bf16.msra.mxu0 %v589
    %1323 = vmatprep.subr.bf16.mxu0 0
    %1324 = vmatpush1.bf16.msra.mxu0 %v592
    %1325 = vmatprep.subr.bf16.mxu0 0
    %1326 = vmatpush1.bf16.msra.mxu0 %v595
    %1327 = vmatprep.subr.bf16.mxu0 0
    %1328 = vmatpush1.bf16.msra.mxu0 %v598
    %1329 = vmatprep.subr.bf16.mxu0 0
    %1330 = vmatpush1.bf16.msra.mxu0 %v601
    %1331 = vmatprep.subr.bf16.mxu0 0
    %1332 = vmatpush1.bf16.msra.mxu0 0
    %1333 = vmatprep.subr.bf16.mxu0 0
    %1334 = vmatpush1.bf16.msra.mxu0 0
    %1335 = vmatprep.subr.bf16.mxu0 0
    %1336 = vmatpush1.bf16.msra.mxu0 0
    %1337 = vmatprep.subr.bf16.mxu0 0
    %1338 = vmatpush1.bf16.msra.mxu0 0
    %1339 = vmatprep.subr.bf16.mxu0 0
    %1340 = vmatpush1.bf16.msra.mxu0 0
    %1341 = vmatprep.subr.bf16.mxu0 0
    %1342 = vmatpush1.bf16.msra.mxu0 0
    %1343 = vmatprep.subr.bf16.mxu0 0
    %1344 = vmatpush1.bf16.msra.mxu0 0
    %1345 = vmatprep.subr.bf16.mxu0 0
    %1346 = vmatpush1.bf16.msra.mxu0 0
    %1347 = vmatprep.mubr.bf16.mxu0 0
    %1348 = vmatmul.mubr.bf16.gmra.mrb[0].mxu0 %v1273
    %v1349 = vpop.f32.mrb[0].mxu0
    %v1350 = vadd.f32 0.0, %v1349
    %v1351 = vpop.f32.mrb[0].mxu0
    %v1352 = vpop.f32.mrb[0].mxu0
    %v1353 = vpop.f32.mrb[0].mxu0
    %1354 = vdwg.mxu0
    %v1355 = vadd.f32 %v1270, %v1309
    %v1356 = vadd.f32 %v1271, %v1311
    %v1357 = vadd.f32 %v1272, %v1350
    %v1358 = vxor.u32 %v1355, 2147483648
    %v1359 = vxor.u32 %v1356, 2147483648
    %v1360 = vmul.f32 %v1358, 1.442695
    %v1361 = vpow.pop %v1360
    %v1362 = vmul.f32 %v1359, 1.442695
    %v1363 = vpow.pop %v1362
    %v1364 = vadd.f32 %v1361, 1.0
    %v1365 = vadd.f32 %v1363, 1.0
    %v1366 = vrcp.pop %v1364
    %v1367 = vmul.f32 1.0, %v1366
    %v1368 = vrcp.pop %v1365
    %v1369 = vmul.f32 1.0, %v1368
    %v1370 = vtanh.pop %v1357
    %v1371 = vmul.f32 %v1369, %v1265
    %v1372 = vmul.f32 %v1367, %v1370
    %v1373 = vadd.f32 %v1371, %v1372
    %v1374 = vtanh.pop %v1373
    %s1375 = smul.u32 7, 3
    %s1376 = smul.addr %s1375, 8
    %s1377 = scalar_lea.vmem [#allocation2], %s1376
    %v1378 = vld [vmem:[%s1377] sm:$0xff]
    %v1379 = vld [vmem:[%s1377 + $0x8] sm:$0xff]
    %v1380 = vld [vmem:[%s1377 + $0x10] sm:$0xff]
    %v1381 = vpack.c.bf16 %v1374, %v1374
    %1382 = vmatprep.subr.bf16.mxu0 %v579
    %1383 = vmatpush1.bf16.msra.mxu0 %v578
    %1384 = vmatprep.subr.bf16.mxu0 %v582
    %1385 = vmatpush1.bf16.msra.mxu0 %v581
    %1386 = vmatprep.subr.bf16.mxu0 %v585
    %1387 = vmatpush1.bf16.msra.mxu0 %v584
    %1388 = vmatprep.subr.bf16.mxu0 %v588
    %1389 = vmatpush1.bf16.msra.mxu0 %v587
    %1390 = vmatprep.subr.bf16.mxu0 %v591
    %1391 = vmatpush1.bf16.msra.mxu0 %v590
    %1392 = vmatprep.subr.bf16.mxu0 %v594
    %1393 = vmatpush1.bf16.msra.mxu0 %v593
    %1394 = vmatprep.subr.bf16.mxu0 %v597
    %1395 = vmatpush1.bf16.msra.mxu0 %v596
    %1396 = vmatprep.subr.bf16.mxu0 %v600
    %1397 = vmatpush1.bf16.msra.mxu0 %v599
    %1398 = vmatprep.subr.bf16.mxu0 0
    %1399 = vmatpush1.bf16.msra.mxu0 0
    %1400 = vmatprep.subr.bf16.mxu0 0
    %1401 = vmatpush1.bf16.msra.mxu0 0
    %1402 = vmatprep.subr.bf16.mxu0 0
    %1403 = vmatpush1.bf16.msra.mxu0 0
    %1404 = vmatprep.subr.bf16.mxu0 0
    %1405 = vmatpush1.bf16.msra.mxu0 0
    %1406 = vmatprep.subr.bf16.mxu0 0
    %1407 = vmatpush1.bf16.msra.mxu0 0
    %1408 = vmatprep.subr.bf16.mxu0 0
    %1409 = vmatpush1.bf16.msra.mxu0 0
    %1410 = vmatprep.subr.bf16.mxu0 0
    %1411 = vmatpush1.bf16.msra.mxu0 0
    %1412 = vmatprep.subr.bf16.mxu0 0
    %1413 = vmatpush1.bf16.msra.mxu0 0
    %1414 = vmatprep.mubr.bf16.mxu0 0
    %1415 = vmatmul.mubr.bf16.gmra.mrb[0].mxu0 %v1381
    %v1416 = vpop.f32.mrb[0].mxu0
    %v1417 = vadd.f32 0.0, %v1416
    %v1418 = vpop.f32.mrb[0].mxu0
    %v1419 = vadd.f32 0.0, %v1418
    %v1420 = vpop.f32.mrb[0].mxu0
    %v1421 = vpop.f32.mrb[0].mxu0
    %1422 = vdwg.mxu0
    %1423 = vmatprep.subr.bf16.mxu0 0
    %1424 = vmatpush1.bf16.msra.mxu0 %v580
    %1425 = vmatprep.subr.bf16.mxu0 0
    %1426 = vmatpush1.bf16.msra.mxu0 %v583
    %1427 = vmatprep.subr.bf16.mxu0 0
    %1428 = vmatpush1.bf16.msra.mxu0 %v586
    %1429 = vmatprep.subr.bf16.mxu0 0
    %1430 = vmatpush1.bf16.msra.mxu0 %v589
    %1431 = vmatprep.subr.bf16.mxu0 0
    %1432 = vmatpush1.bf16.msra.mxu0 %v592
    %1433 = vmatprep.subr.bf16.mxu0 0
    %1434 = vmatpush1.bf16.msra.mxu0 %v595
    %1435 = vmatprep.subr.bf16.mxu0 0
    %1436 = vmatpush1.bf16.msra.mxu0 %v598
    %1437 = vmatprep.subr.bf16.mxu0 0
    %1438 = vmatpush1.bf16.msra.mxu0 %v601
    %1439 = vmatprep.subr.bf16.mxu0 0
    %1440 = vmatpush1.bf16.msra.mxu0 0
    %1441 = vmatprep.subr.bf16.mxu0 0
    %1442 = vmatpush1.bf16.msra.mxu0 0
    %1443 = vmatprep.subr.bf16.mxu0 0
    %1444 = vmatpush1.bf16.msra.mxu0 0
    %1445 = vmatprep.subr.bf16.mxu0 0
    %1446 = vmatpush1.bf16.msra.mxu0 0
    %1447 = vmatprep.subr.bf16.mxu0 0
    %1448 = vmatpush1.bf16.msra.mxu0 0
    %1449 = vmatprep.subr.bf16.mxu0 0
    %1450 = vmatpush1.bf16.msra.mxu0 0
    %1451 = vmatprep.subr.bf16.mxu0 0
    %1452 = vmatpush1.bf16.msra.mxu0 0
    %1453 = vmatprep.subr.bf16.mxu0 0
    %1454 = vmatpush1.bf16.msra.mxu0 0
    %1455 = vmatprep.mubr.bf16.mxu0 0
    %1456 = vmatmul.mubr.bf16.gmra.mrb[0].mxu0 %v1381
    %v1457 = vpop.f32.mrb[0].mxu0
    %v1458 = vadd.f32 0.0, %v1457
    %v1459 = vpop.f32.mrb[0].mxu0
    %v1460 = vpop.f32.mrb[0].mxu0
    %v1461 = vpop.f32.mrb[0].mxu0
    %1462 = vdwg.mxu0
    %v1463 = vadd.f32 %v1378, %v1417
    %v1464 = vadd.f32 %v1379, %v1419
    %v1465 = vadd.f32 %v1380, %v1458
    %v1466 = vxor.u32 %v1463, 2147483648
    %v1467 = vxor.u32 %v1464, 2147483648
    %v1468 = vmul.f32 %v1466, 1.442695
    %v1469 = vpow.pop %v1468
    %v1470 = vmul.f32 %v1467, 1.442695
    %v1471 = vpow.pop %v1470
    %v1472 = vadd.f32 %v1469, 1.0
    %v1473 = vadd.f32 %v1471, 1.0
    %v1474 = vrcp.pop %v1472
    %v1475 = vmul.f32 1.0, %v1474
    %v1476 = vrcp.pop %v1473
    %v1477 = vmul.f32 1.0, %v1476
    %v1478 = vtanh.pop %v1465
    %v1479 = vmul.f32 %v1477, %v1373
    %v1480 = vmul.f32 %v1475, %v1478
    %v1481 = vadd.f32 %v1479, %v1480
    %v1482 = vtanh.pop %v1481
    %1483 = vst [vmem:[#allocation3] sm:$0xff] %v1482
    %1484 = vst [vmem:[#allocation4] sm:$0xff] %v1481
    // Predicated region
    $region46: #{tpu_custom_call.1} parent=1 // pred_check
      %p1485 = pneg %p80
    $region47: #{tpu_custom_call.1} parent=1 // pred_check_branch
      %1487 = sbr.rel (%p1485) target = $region49
    $region48: #{tpu_custom_call.1} parent=1 // pred_region
      %v1488 = vpack.c.bf16 %v1482, %v1482
      %v1489 = vld [vmem:[#allocation11] sm:$0xf]
      %v1490 = vld [vmem:[#allocation11 + $0x4] sm:$0xf]
      %v1491 = vld [vmem:[#allocation11 + $0x8] sm:$0xf]
      %v1492 = vld [vmem:[#allocation11 + $0xc] sm:$0xf]
      %v1493 = vld [vmem:[#allocation11 + $0x10] sm:$0xf]
      %v1494 = vld [vmem:[#allocation11 + $0x14] sm:$0xf]
      %v1495 = vld [vmem:[#allocation11 + $0x18] sm:$0xf]
      %v1496 = vld [vmem:[#allocation11 + $0x1c] sm:$0xf]
      %v1497 = vld [vmem:[#allocation11 + $0x20] sm:$0xf]
      %v1498 = vld [vmem:[#allocation11 + $0x24] sm:$0xf]
      %v1499 = vld [vmem:[#allocation11 + $0x28] sm:$0xf]
      %v1500 = vld [vmem:[#allocation11 + $0x2c] sm:$0xf]
      %v1501 = vld [vmem:[#allocation11 + $0x30] sm:$0xf]
      %v1502 = vld [vmem:[#allocation11 + $0x34] sm:$0xf]
      %v1503 = vld [vmem:[#allocation11 + $0x38] sm:$0xf]
      %v1504 = vld [vmem:[#allocation11 + $0x3c] sm:$0xf]
      %v1505 = vld [vmem:[%s5] sm:$0x1]
      %v1507 = vlaneseq
      %v1508 = vshrl.u32 %v1507, 7
      %v1509 = vsub.s32 0, %v1508
      %v1510 = vrot.slane %v1505, %v1509
      %v1528 = vunpack.c.l.b16 %v1489
      %v1529 = vunpack.c.l.b16 %v1490
      %v1530 = vunpack.c.l.b16 %v1491
      %v1531 = vunpack.c.l.b16 %v1492
      %v1532 = vunpack.c.l.b16 %v1493
      %v1533 = vunpack.c.l.b16 %v1494
      %v1534 = vunpack.c.l.b16 %v1495
      %v1535 = vunpack.c.l.b16 %v1496
      %v1536 = vunpack.c.l.b16 %v1497
      %v1537 = vunpack.c.l.b16 %v1498
      %v1538 = vunpack.c.l.b16 %v1499
      %v1539 = vunpack.c.l.b16 %v1500
      %v1540 = vunpack.c.l.b16 %v1501
      %v1541 = vunpack.c.l.b16 %v1502
      %v1542 = vunpack.c.l.b16 %v1503
      %v1543 = vunpack.c.l.b16 %v1504
      %v1544 = vpack.c.b16 %v1529, %v1528
      %v1545 = vpack.c.b16 %v1531, %v1530
      %v1546 = vpack.c.b16 %v1533, %v1532
      %v1547 = vpack.c.b16 %v1535, %v1534
      %v1548 = vpack.c.b16 %v1537, %v1536
      %v1549 = vpack.c.b16 %v1539, %v1538
      %v1550 = vpack.c.b16 %v1541, %v1540
      %v1551 = vpack.c.b16 %v1543, %v1542
      %1560 = vmatprep.subr.bf16.mxu0 0
      %1561 = vmatpush1.bf16.msra.mxu0 %v1544
      %1562 = vmatprep.subr.bf16.mxu0 0
      %1563 = vmatpush1.bf16.msra.mxu0 %v1545
      %1564 = vmatprep.subr.bf16.mxu0 0
      %1565 = vmatpush1.bf16.msra.mxu0 %v1546
      %1566 = vmatprep.subr.bf16.mxu0 0
      %1567 = vmatpush1.bf16.msra.mxu0 %v1547
      %1568 = vmatprep.subr.bf16.mxu0 0
      %1569 = vmatpush1.bf16.msra.mxu0 %v1548
      %1570 = vmatprep.subr.bf16.mxu0 0
      %1571 = vmatpush1.bf16.msra.mxu0 %v1549
      %1572 = vmatprep.subr.bf16.mxu0 0
      %1573 = vmatpush1.bf16.msra.mxu0 %v1550
      %1574 = vmatprep.subr.bf16.mxu0 0
      %1575 = vmatpush1.bf16.msra.mxu0 %v1551
      %1576 = vmatprep.subr.bf16.mxu0 0
      %1577 = vmatpush1.bf16.msra.mxu0 0
      %1578 = vmatprep.subr.bf16.mxu0 0
      %1579 = vmatpush1.bf16.msra.mxu0 0
      %1580 = vmatprep.subr.bf16.mxu0 0
      %1581 = vmatpush1.bf16.msra.mxu0 0
      %1582 = vmatprep.subr.bf16.mxu0 0
      %1583 = vmatpush1.bf16.msra.mxu0 0
      %1584 = vmatprep.subr.bf16.mxu0 0
      %1585 = vmatpush1.bf16.msra.mxu0 0
      %1586 = vmatprep.subr.bf16.mxu0 0
      %1587 = vmatpush1.bf16.msra.mxu0 0
      %1588 = vmatprep.subr.bf16.mxu0 0
      %1589 = vmatpush1.bf16.msra.mxu0 0
      %1590 = vmatprep.subr.bf16.mxu0 0
      %1591 = vmatpush1.bf16.msra.mxu0 0
      %1592 = vmatprep.mubr.bf16.mxu0 0
      %1593 = vmatmul.mubr.bf16.gmra.mrb[0].mxu0 %v1488
      %v1594 = vpop.f32.mrb[0].mxu0
      %v1595 = vadd.f32 %v1510, %v1594
      %v1596 = vpop.f32.mrb[0].mxu0
      %v1597 = vpop.f32.mrb[0].mxu0
      %v1598 = vpop.f32.mrb[0].mxu0
      %1599 = vdwg.mxu0
      %1600 = vst [vmem:[#allocation13] sm:$0xff] %v1595
    $region49: #{tpu_custom_call.1} parent=1 // pred_fallthru
      _
    // Predicated region
    $region50: #{tpu_custom_call.1} parent=1 // pred_check
      _
    $region51: #{tpu_custom_call.1} parent=1 // pred_check_branch
      %1602 = sbr.rel (0) target = $region53
    $region52: #{tpu_custom_call.1} parent=1 // pred_region
      %s1604 = ssub.s32 128, 128
      %1605 = vsyncadd [#allocation7], %s1604
      %s1607 = sshll.u32 [#allocation13], 4
      %s1608 = int_to_ptr.vmem [resolvable:$true] %s1607
      %1610 = dma.vmem_to_hbm [thread:$0]  %s1608, 128, %s6, [#allocation7]
    $region53: #{tpu_custom_call.1} parent=1 // pred_fallthru
      _
    // Predicated region
    $region54: #{tpu_custom_call.1} parent=1 // pred_check
      _
    $region55: #{tpu_custom_call.1} parent=1 // pred_check_branch
      %1612 = sbr.rel (0) target = $region57
    $region56: #{tpu_custom_call.1} parent=1 // pred_region
      %1613 = dma.done [#allocation7], 128
    $region57: #{tpu_custom_call.1} parent=1 // pred_fallthru
      _
    %1614 = vsyncpa [#allocation6], 1
    %1615 = vsyncpa [#allocation9], 1
    %1616 = vsyncpa [#allocation12], 1
    %1617 = vsyncpa [#allocation7], 1

// kernel: tpu_custom_call.1
$region0: #{tpu_custom_call.1}
  #allocation0 [shape = 'u32[]', space=smem, size = 0x4, offset = 0x4, fixed_abs, tag = 'smem constant byte address 0x4 - core index']
  #allocation1 [shape = 'u32[144,128]{1,0:T(1,128)}', space=vmem, size = 0x12000, scoped, tag = 'internal scratch']
  #allocation2 [shape = 'f32[64,384]{1,0:T(8,128)}', space=vmem, size = 0x18000, scoped, tag = 'scratch operand']
  #allocation3 [shape = 'f32[8,128]{1,0:T(8,128)}', space=vmem, size = 0x1000, scoped, tag = 'scratch operand']
  #allocation4 [shape = 'f32[8,128]{1,0:T(8,128)}', space=vmem, size = 0x1000, scoped, tag = 'scratch operand']
  %s0 = inlined_call_operand.hbm [shape: bf16[1,1,64,128], index: 0, kind: input, shape index: {}]
  %s1 = inlined_call_operand.hbm [shape: bf16[128,384], index: 1, kind: input, shape index: {}]
  %s2 = inlined_call_operand.hbm [shape: bf16[128,384], index: 2, kind: input, shape index: {}]
  %s3 = inlined_call_operand.vmem [shape: f32[1,384], index: 3, kind: input, shape index: {}]
  %s4 = inlined_call_operand.hbm [shape: bf16[128,128], index: 4, kind: input, shape index: {}]
  %s5 = inlined_call_operand.vmem [shape: f32[1,128], index: 5, kind: input, shape index: {}]
  %s6 = inlined_call_operand.hbm [shape: f32[8,128], index: 6, kind: output, shape index: {}]
  %s7 = sld [smem:[#allocation0]]
  $region58: #{tpu_custom_call.1} parent=0
    _
  %s9 = ssub.s32 1, %s7
  %s10 = scalar_select 0, %s9, %s7
  $region1: #{tpu_custom_call.1} parent=0
    #allocation5 [shape = 'u8[16384]{0}', space=vmem, size = 0x4000, scoped, tag = 'input window, operand 0, single buffered']
    #allocation6 [shape = 's32[1]{0}', space=sflag, size = 0x4, scoped, tag = 'scoped memory for tpu_custom_call.1']
    #allocation7 [shape = 's32[1]{0}', space=sflag, size = 0x4, scoped, tag = 'scoped memory for tpu_custom_call.1']
    #allocation8 [shape = 'u8[98304]{0}', space=vmem, size = 0x18000, scoped, tag = 'input window, operand 1, single buffered']
    #allocation9 [shape = 's32[1]{0}', space=sflag, size = 0x4, scoped, tag = 'scoped memory for tpu_custom_call.1']
    #allocation10 [shape = 'u8[98304]{0}', space=vmem, size = 0x18000, scoped, tag = 'input window, operand 2, single buffered']
    #allocation11 [shape = 'u8[32768]{0}', space=vmem, size = 0x8000, scoped, tag = 'input window, operand 4, single buffered']
    #allocation12 [shape = 's32[1]{0}', space=sflag, size = 0x4, scoped, tag = 'scoped memory for tpu_custom_call.1']
    #allocation13 [shape = 'u8[4096]{0}', space=vmem, size = 0x1000, scoped, tag = 'output window, operand 0, single buffered']
    %11 = vsyncpa [#allocation6], 0
    %12 = vsyncpa [#allocation9], 0
    %13 = vsyncpa [#allocation12], 0
    %14 = vsyncpa [#allocation7], 0
    // Predicated region
    $region2: #{tpu_custom_call.1} parent=1 // pred_check
      _
    $region3: #{tpu_custom_call.1} parent=1 // pred_check_branch
      %16 = sbr.rel (0) target = $region5
    $region4: #{tpu_custom_call.1} parent=1 // pred_region
      %s18 = ssub.s32 512, 512
      %19 = vsyncadd [#allocation6], %s18
      %s20 = sshll.u32 [#allocation5], 4
      %s21 = int_to_ptr.vmem [resolvable:$true] %s20
      %26 = dma.hbm_to_vmem [thread:$0]  %s0, 512, %s21, [#allocation6], 64, 64, 4
    $region5: #{tpu_custom_call.1} parent=1 // pred_fallthru
      _
    // Predicated region
    $region6: #{tpu_custom_call.1} parent=1 // pred_check
      _
    $region7: #{tpu_custom_call.1} parent=1 // pred_check_branch
      %28 = sbr.rel (0) target = $region9
    $region8: #{tpu_custom_call.1} parent=1 // pred_region
      %s30 = ssub.s32 3072, 3072
      %31 = vsyncadd [#allocation9], %s30
      %s32 = sshll.u32 [#allocation8], 4
      %s33 = int_to_ptr.vmem [resolvable:$true] %s32
      %38 = dma.hbm_to_vmem [thread:$0]  %s1, 3072, %s33, [#allocation9], 192, 192, 12
    $region9: #{tpu_custom_call.1} parent=1 // pred_fallthru
      _
    // Predicated region
    $region10: #{tpu_custom_call.1} parent=1 // pred_check
      _
    $region11: #{tpu_custom_call.1} parent=1 // pred_check_branch
      %40 = sbr.rel (0) target = $region13
    $region12: #{tpu_custom_call.1} parent=1 // pred_region
      %s42 = ssub.s32 3072, 3072
      %43 = vsyncadd [#allocation9], %s42
      %s44 = sshll.u32 [#allocation10], 4
      %s45 = int_to_ptr.vmem [resolvable:$true] %s44
      %50 = dma.hbm_to_vmem [thread:$0]  %s2, 3072, %s45, [#allocation9], 192, 192, 12
    $region13: #{tpu_custom_call.1} parent=1 // pred_fallthru
      _
    // Predicated region
    $region14: #{tpu_custom_call.1} parent=1 // pred_check
      _
    $region15: #{tpu_custom_call.1} parent=1 // pred_check_branch
      %52 = sbr.rel (0) target = $region17
    $region16: #{tpu_custom_call.1} parent=1 // pred_region
      _
    $region17: #{tpu_custom_call.1} parent=1 // pred_fallthru
      _
    // Predicated region
    $region18: #{tpu_custom_call.1} parent=1 // pred_check
      _
    $region19: #{tpu_custom_call.1} parent=1 // pred_check_branch
      %54 = sbr.rel (0) target = $region21
    $region20: #{tpu_custom_call.1} parent=1 // pred_region
      %s56 = ssub.s32 1024, 1024
      %57 = vsyncadd [#allocation12], %s56
      %s58 = sshll.u32 [#allocation11], 4
      %s59 = int_to_ptr.vmem [resolvable:$true] %s58
      %64 = dma.hbm_to_vmem [thread:$0]  %s4, 1024, %s59, [#allocation12], 64, 64, 4
    $region21: #{tpu_custom_call.1} parent=1 // pred_fallthru
      _
    // Predicated region
    $region22: #{tpu_custom_call.1} parent=1 // pred_check
      _
    $region23: #{tpu_custom_call.1} parent=1 // pred_check_branch
      %66 = sbr.rel (0) target = $region25
    $region24: #{tpu_custom_call.1} parent=1 // pred_region
      _
    $region25: #{tpu_custom_call.1} parent=1 // pred_fallthru
      _
    // Predicated region
    $region26: #{tpu_custom_call.1} parent=1 // pred_check
      _
    $region27: #{tpu_custom_call.1} parent=1 // pred_check_branch
      %68 = sbr.rel (0) target = $region29
    $region28: #{tpu_custom_call.1} parent=1 // pred_region
      %69 = dma.done [#allocation6], 512
    $region29: #{tpu_custom_call.1} parent=1 // pred_fallthru
      _
    // Predicated region
    $region30: #{tpu_custom_call.1} parent=1 // pred_check
      _
    $region31: #{tpu_custom_call.1} parent=1 // pred_check_branch
      %71 = sbr.rel (0) target = $region33
    $region32: #{tpu_custom_call.1} parent=1 // pred_region
      %72 = dma.done [#allocation9], 3072
    $region33: #{tpu_custom_call.1} parent=1 // pred_fallthru
      _
    // Predicated region
    $region34: #{tpu_custom_call.1} parent=1 // pred_check
      _
    $region35: #{tpu_custom_call.1} parent=1 // pred_check_branch
      %74 = sbr.rel (0) target = $region37
    $region36: #{tpu_custom_call.1} parent=1 // pred_region
      %75 = dma.done [#allocation9], 3072
    $region37: #{tpu_custom_call.1} parent=1 // pred_fallthru
      _
    // Predicated region
    $region38: #{tpu_custom_call.1} parent=1 // pred_check
      _
    $region39: #{tpu_custom_call.1} parent=1 // pred_check_branch
      %77 = sbr.rel (0) target = $region41
    $region40: #{tpu_custom_call.1} parent=1 // pred_region
      %78 = dma.done [#allocation12], 1024
    $region41: #{tpu_custom_call.1} parent=1 // pred_fallthru
      _
    %p80 = scmp.eq.s32.totalorder 0, 0
    // Predicated region
    $region42: #{tpu_custom_call.1} parent=1 // pred_check
      %p81 = pneg %p80
    $region43: #{tpu_custom_call.1} parent=1 // pred_check_branch
      %83 = sbr.rel (%p81) target = $region45
    $region44: #{tpu_custom_call.1} parent=1 // pred_region
      %84 = vst [vmem:[#allocation3] sm:$0xff] 0.0
      %85 = vst [vmem:[#allocation4] sm:$0xff] 0.0
    $region45: #{tpu_custom_call.1} parent=1 // pred_fallthru
      _
    %v86 = vld [vmem:[#allocation5] sm:$0xf]
    %v87 = vld [vmem:[#allocation5 + $0x4] sm:$0xf]
    %v88 = vld [vmem:[#allocation5 + $0x8] sm:$0xf]
    %v89 = vld [vmem:[#allocation5 + $0xc] sm:$0xf]
    %v90 = vld [vmem:[#allocation5 + $0x10] sm:$0xf]
    %v91 = vld [vmem:[#allocation5 + $0x14] sm:$0xf]
    %v92 = vld [vmem:[#allocation5 + $0x18] sm:$0xf]
    %v93 = vld [vmem:[#allocation5 + $0x1c] sm:$0xf]
    %v94 = vld [vmem:[#allocation8] sm:$0xff]
    %v95 = vld [vmem:[#allocation8 + $0x8] sm:$0xf]
    %v96 = vld [vmem:[#allocation8 + $0xc] sm:$0xff]
    %v97 = vld [vmem:[#allocation8 + $0x14] sm:$0xf]
    %v98 = vld [vmem:[#allocation8 + $0x18] sm:$0xff]
    %v99 = vld [vmem:[#allocation8 + $0x20] sm:$0xf]
    %v100 = vld [vmem:[#allocation8 + $0x24] sm:$0xff]
    %v101 = vld [vmem:[#allocation8 + $0x2c] sm:$0xf]
    %v102 = vld [vmem:[#allocation8 + $0x30] sm:$0xff]
    %v103 = vld [vmem:[#allocation8 + $0x38] sm:$0xf]
    %v104 = vld [vmem:[#allocation8 + $0x3c] sm:$0xff]
    %v105 = vld [vmem:[#allocation8 + $0x44] sm:$0xf]
    %v106 = vld [vmem:[#allocation8 + $0x48] sm:$0xff]
    %v107 = vld [vmem:[#allocation8 + $0x50] sm:$0xf]
    %v108 = vld [vmem:[#allocation8 + $0x54] sm:$0xff]
    %v109 = vld [vmem:[#allocation8 + $0x5c] sm:$0xf]
    %v110 = vld [vmem:[#allocation8 + $0x60] sm:$0xff]
    %v111 = vld [vmem:[#allocation8 + $0x68] sm:$0xf]
    %v112 = vld [vmem:[#allocation8 + $0x6c] sm:$0xff]
    %v113 = vld [vmem:[#allocation8 + $0x74] sm:$0xf]
    %v114 = vld [vmem:[#allocation8 + $0x78] sm:$0xff]
    %v115 = vld [vmem:[#allocation8 + $0x80] sm:$0xf]
    %v116 = vld [vmem:[#allocation8 + $0x84] sm:$0xff]
    %v117 = vld [vmem:[#allocation8 + $0x8c] sm:$0xf]
    %v118 = vld [vmem:[#allocation8 + $0x90] sm:$0xff]
    %v119 = vld [vmem:[#allocation8 + $0x98] sm:$0xf]
    %v120 = vld [vmem:[#allocation8 + $0x9c] sm:$0xff]
    %v121 = vld [vmem:[#allocation8 + $0xa4] sm:$0xf]
    %v122 = vld [vmem:[#allocation8 + $0xa8] sm:$0xff]
    %v123 = vld [vmem:[#allocation8 + $0xb0] sm:$0xf]
    %v124 = vld [vmem:[#allocation8 + $0xb4] sm:$0xff]
    %v125 = vld [vmem:[#allocation8 + $0xbc] sm:$0xf]
    %v126 = vld [vmem:[%s3] sm:$0x7]
    %v128 = vlaneseq
    %v129 = vshrl.u32 %v128, 7
    %v130 = vsub.s32 0, %v129
    %v131 = vrot.slane %v126, %v130
    %v132 = vlaneseq
    %v133 = vshrl.u32 %v132, 7
    %v134 = vsub.s32 1, %v133
    %v135 = vrot.slane %v126, %v134
    %v136 = vlaneseq
    %v137 = vshrl.u32 %v136, 7
    %v138 = vsub.s32 2, %v137
    %v139 = vrot.slane %v126, %v138
    %v151 = vunpack.c.l.b16 %v86
    %v152 = vunpack.c.l.b16 %v87
    %v153 = vunpack.c.l.b16 %v88
    %v154 = vunpack.c.l.b16 %v89
    %v155 = vunpack.c.l.b16 %v90
    %v156 = vunpack.c.l.b16 %v91
    %v157 = vunpack.c.l.b16 %v92
    %v158 = vunpack.c.l.b16 %v93
    %v159 = vpack.c.b16 %v152, %v151
    %v160 = vpack.c.b16 %v154, %v153
    %v161 = vpack.c.b16 %v156, %v155
    %v162 = vpack.c.b16 %v158, %v157
    %v199 = vunpack.c.l.b16 %v94
    %v200 = vunpack.c.h.b16 %v94
    %v201 = vunpack.c.l.b16 %v95
    %v202 = vunpack.c.l.b16 %v96
    %v203 = vunpack.c.h.b16 %v96
    %v204 = vunpack.c.l.b16 %v97
    %v205 = vunpack.c.l.b16 %v98
    %v206 = vunpack.c.h.b16 %v98
    %v207 = vunpack.c.l.b16 %v99
    %v208 = vunpack.c.l.b16 %v100
    %v209 = vunpack.c.h.b16 %v100
    %v210 = vunpack.c.l.b16 %v101
    %v211 = vunpack.c.l.b16 %v102
    %v212 = vunpack.c.h.b16 %v102
    %v213 = vunpack.c.l.b16 %v103
    %v214 = vunpack.c.l.b16 %v104
    %v215 = vunpack.c.h.b16 %v104
    %v216 = vunpack.c.l.b16 %v105
    %v217 = vunpack.c.l.b16 %v106
    %v218 = vunpack.c.h.b16 %v106
    %v219 = vunpack.c.l.b16 %v107
    %v220 = vunpack.c.l.b16 %v108
    %v221 = vunpack.c.h.b16 %v108
    %v222 = vunpack.c.l.b16 %v109
    %v223 = vunpack.c.l.b16 %v110
    %v224 = vunpack.c.h.b16 %v110
    %v225 = vunpack.c.l.b16 %v111
    %v226 = vunpack.c.l.b16 %v112
    %v227 = vunpack.c.h.b16 %v112
    %v228 = vunpack.c.l.b16 %v113
    %v229 = vunpack.c.l.b16 %v114
    %v230 = vunpack.c.h.b16 %v114
    %v231 = vunpack.c.l.b16 %v115
    %v232 = vunpack.c.l.b16 %v116
    %v233 = vunpack.c.h.b16 %v116
    %v234 = vunpack.c.l.b16 %v117
    %v235 = vunpack.c.l.b16 %v118
    %v236 = vunpack.c.h.b16 %v118
    %v237 = vunpack.c.l.b16 %v119
    %v238 = vunpack.c.l.b16 %v120
    %v239 = vunpack.c.h.b16 %v120
    %v240 = vunpack.c.l.b16 %v121
    %v241 = vunpack.c.l.b16 %v122
    %v242 = vunpack.c.h.b16 %v122
    %v243 = vunpack.c.l.b16 %v123
    %v244 = vunpack.c.l.b16 %v124
    %v245 = vunpack.c.h.b16 %v124
    %v246 = vunpack.c.l.b16 %v125
    %v247 = vpack.c.b16 %v202, %v199
    %v248 = vpack.c.b16 %v203, %v200
    %v249 = vpack.c.b16 %v204, %v201
    %v250 = vpack.c.b16 %v208, %v205
    %v251 = vpack.c.b16 %v209, %v206
    %v252 = vpack.c.b16 %v210, %v207
    %v253 = vpack.c.b16 %v214, %v211
    %v254 = vpack.c.b16 %v215, %v212
    %v255 = vpack.c.b16 %v216, %v213
    %v256 = vpack.c.b16 %v220, %v217
    %v257 = vpack.c.b16 %v221, %v218
    %v258 = vpack.c.b16 %v222, %v219
    %v259 = vpack.c.b16 %v226, %v223
    %v260 = vpack.c.b16 %v227, %v224
    %v261 = vpack.c.b16 %v228, %v225
    %v262 = vpack.c.b16 %v232, %v229
    %v263 = vpack.c.b16 %v233, %v230
    %v264 = vpack.c.b16 %v234, %v231
    %v265 = vpack.c.b16 %v238, %v235
    %v266 = vpack.c.b16 %v239, %v236
    %v267 = vpack.c.b16 %v240, %v237
    %v268 = vpack.c.b16 %v244, %v241
    %v269 = vpack.c.b16 %v245, %v242
    %v270 = vpack.c.b16 %v246, %v243
    %295 = vmatprep.subr.bf16.mxu0 %v248
    %296 = vmatpush1.bf16.msra.mxu0 %v247
    %297 = vmatprep.subr.bf16.mxu0 %v251
    %298 = vmatpush1.bf16.msra.mxu0 %v250
    %299 = vmatprep.subr.bf16.mxu0 %v254
    %300 = vmatpush1.bf16.msra.mxu0 %v253
    %301 = vmatprep.subr.bf16.mxu0 %v257
    %302 = vmatpush1.bf16.msra.mxu0 %v256
    %303 = vmatprep.subr.bf16.mxu0 %v260
    %304 = vmatpush1.bf16.msra.mxu0 %v259
    %305 = vmatprep.subr.bf16.mxu0 %v263
    %306 = vmatpush1.bf16.msra.mxu0 %v262
    %307 = vmatprep.subr.bf16.mxu0 %v266
    %308 = vmatpush1.bf16.msra.mxu0 %v265
    %309 = vmatprep.subr.bf16.mxu0 %v269
    %310 = vmatpush1.bf16.msra.mxu0 %v268
    %311 = vmatprep.subr.bf16.mxu0 0
    %312 = vmatpush1.bf16.msra.mxu0 0
    %313 = vmatprep.subr.bf16.mxu0 0
    %314 = vmatpush1.bf16.msra.mxu0 0
    %315 = vmatprep.subr.bf16.mxu0 0
    %316 = vmatpush1.bf16.msra.mxu0 0
    %317 = vmatprep.subr.bf16.mxu0 0
    %318 = vmatpush1.bf16.msra.mxu0 0
    %319 = vmatprep.subr.bf16.mxu0 0
    %320 = vmatpush1.bf16.msra.mxu0 0
    %321 = vmatprep.subr.bf16.mxu0 0
    %322 = vmatpush1.bf16.msra.mxu0 0
    %323 = vmatprep.subr.bf16.mxu0 0
    %324 = vmatpush1.bf16.msra.mxu0 0
    %325 = vmatprep.subr.bf16.mxu0 0
    %326 = vmatpush1.bf16.msra.mxu0 0
    %327 = vmatprep.mubr.bf16.mxu0 0
    %328 = vmatmul.mubr.bf16.gmra.mrb[0].mxu0 %v159
    %v329 = vpop.f32.mrb[0].mxu0
    %v330 = vadd.f32 %v131, %v329
    %v331 = vpop.f32.mrb[0].mxu0
    %v332 = vadd.f32 %v135, %v331
    %v333 = vpop.f32.mrb[0].mxu0
    %v334 = vadd.f32 %v131, %v333
    %v335 = vpop.f32.mrb[0].mxu0
    %v336 = vadd.f32 %v135, %v335
    %337 = vmatprep.mubr.bf16.mxu0 0
    %338 = vmatmul.mubr.bf16.gmra.mrb[0].mxu0 %v160
    %v339 = vpop.f32.mrb[0].mxu0
    %v340 = vadd.f32 %v131, %v339
    %v341 = vpop.f32.mrb[0].mxu0
    %v342 = vadd.f32 %v135, %v341
    %v343 = vpop.f32.mrb[0].mxu0
    %v344 = vadd.f32 %v131, %v343
    %v345 = vpop.f32.mrb[0].mxu0
    %v346 = vadd.f32 %v135, %v345
    %347 = vmatprep.mubr.bf16.mxu0 0
    %348 = vmatmul.mubr.bf16.gmra.mrb[0].mxu0 %v161
    %v349 = vpop.f32.mrb[0].mxu0
    %v350 = vadd.f32 %v131, %v349
    %v351 = vpop.f32.mrb[0].mxu0
    %v352 = vadd.f32 %v135, %v351
    %v353 = vpop.f32.mrb[0].mxu0
    %v354 = vadd.f32 %v131, %v353
    %v355 = vpop.f32.mrb[0].mxu0
    %v356 = vadd.f32 %v135, %v355
    %357 = vmatprep.mubr.bf16.mxu0 0
    %358 = vmatmul.mubr.bf16.gmra.mrb[0].mxu0 %v162
    %v359 = vpop.f32.mrb[0].mxu0
    %v360 = vadd.f32 %v131, %v359
    %v361 = vpop.f32.mrb[0].mxu0
    %v362 = vadd.f32 %v135, %v361
    %v363 = vpop.f32.mrb[0].mxu0
    %v364 = vadd.f32 %v131, %v363
    %v365 = vpop.f32.mrb[0].mxu0
    %v366 = vadd.f32 %v135, %v365
    %367 = vdwg.mxu0
    %368 = vmatprep.subr.bf16.mxu0 0
    %369 = vmatpush1.bf16.msra.mxu0 %v249
    %370 = vmatprep.subr.bf16.mxu0 0
    %371 = vmatpush1.bf16.msra.mxu0 %v252
    %372 = vmatprep.subr.bf16.mxu0 0
    %373 = vmatpush1.bf16.msra.mxu0 %v255
    %374 = vmatprep.subr.bf16.mxu0 0
    %375 = vmatpush1.bf16.msra.mxu0 %v258
    %376 = vmatprep.subr.bf16.mxu0 0
    %377 = vmatpush1.bf16.msra.mxu0 %v261
    %378 = vmatprep.subr.bf16.mxu0 0
    %379 = vmatpush1.bf16.msra.mxu0 %v264
    %380 = vmatprep.subr.bf16.mxu0 0
    %381 = vmatpush1.bf16.msra.mxu0 %v267
    %382 = vmatprep.subr.bf16.mxu0 0
    %383 = vmatpush1.bf16.msra.mxu0 %v270
    %384 = vmatprep.subr.bf16.mxu0 0
    %385 = vmatpush1.bf16.msra.mxu0 0
    %386 = vmatprep.subr.bf16.mxu0 0
    %387 = vmatpush1.bf16.msra.mxu0 0
    %388 = vmatprep.subr.bf16.mxu0 0
    %389 = vmatpush1.bf16.msra.mxu0 0
    %390 = vmatprep.subr.bf16.mxu0 0
    %391 = vmatpush1.bf16.msra.mxu0 0
    %392 = vmatprep.subr.bf16.mxu0 0
    %393 = vmatpush1.bf16.msra.mxu0 0
    %394 = vmatprep.subr.bf16.mxu0 0
    %395 = vmatpush1.bf16.msra.mxu0 0
    %396 = vmatprep.subr.bf16.mxu0 0
    %397 = vmatpush1.bf16.msra.mxu0 0
    %398 = vmatprep.subr.bf16.mxu0 0
    %399 = vmatpush1.bf16.msra.mxu0 0
    %400 = vmatprep.mubr.bf16.mxu0 0
    %401 = vmatmul.mubr.bf16.gmra.mrb[0].mxu0 %v159
    %v402 = vpop.f32.mrb[0].mxu0
    %v403 = vadd.f32 %v139, %v402
    %v404 = vpop.f32.mrb[0].mxu0
    %v405 = vpop.f32.mrb[0].mxu0
    %v406 = vadd.f32 %v139, %v405
    %v407 = vpop.f32.mrb[0].mxu0
    %408 = vmatprep.mubr.bf16.mxu0 0
    %409 = vmatmul.mubr.bf16.gmra.mrb[0].mxu0 %v160
    %v410 = vpop.f32.mrb[0].mxu0
    %v411 = vadd.f32 %v139, %v410
    %v412 = vpop.f32.mrb[0].mxu0
    %v413 = vpop.f32.mrb[0].mxu0
    %v414 = vadd.f32 %v139, %v413
    %v415 = vpop.f32.mrb[0].mxu0
    %416 = vmatprep.mubr.bf16.mxu0 0
    %417 = vmatmul.mubr.bf16.gmra.mrb[0].mxu0 %v161
    %v418 = vpop.f32.mrb[0].mxu0
    %v419 = vadd.f32 %v139, %v418
    %v420 = vpop.f32.mrb[0].mxu0
    %v421 = vpop.f32.mrb[0].mxu0
    %v422 = vadd.f32 %v139, %v421
    %v423 = vpop.f32.mrb[0].mxu0
    %424 = vmatprep.mubr.bf16.mxu0 0
    %425 = vmatmul.mubr.bf16.gmra.mrb[0].mxu0 %v162
    %v426 = vpop.f32.mrb[0].mxu0
    %v427 = vadd.f32 %v139, %v426
    %v428 = vpop.f32.mrb[0].mxu0
    %v429 = vpop.f32.mrb[0].mxu0
    %v430 = vadd.f32 %v139, %v429
    %v431 = vpop.f32.mrb[0].mxu0
    %432 = vdwg.mxu0
    %433 = vst [vmem:[#allocation2] sm:$0xff] %v330
    %434 = vst [vmem:[#allocation2 + $0x8] sm:$0xff] %v332
    %435 = vst [vmem:[#allocation2 + $0x10] sm:$0xff] %v403
    %436 = vst [vmem:[#allocation2 + $0x18] sm:$0xff] %v334
    %437 = vst [vmem:[#allocation2 + $0x20] sm:$0xff] %v336
    %438 = vst [vmem:[#allocation2 + $0x28] sm:$0xff] %v406
    %439 = vst [vmem:[#allocation2 + $0x30] sm:$0xff] %v340
    %440 = vst [vmem:[#allocation2 + $0x38] sm:$0xff] %v342
    %441 = vst [vmem:[#allocation2 + $0x40] sm:$0xff] %v411
    %442 = vst [vmem:[#allocation2 + $0x48] sm:$0xff] %v344
    %443 = vst [vmem:[#allocation2 + $0x50] sm:$0xff] %v346
    %444 = vst [vmem:[#allocation2 + $0x58] sm:$0xff] %v414
    %445 = vst [vmem:[#allocation2 + $0x60] sm:$0xff] %v350
    %446 = vst [vmem:[#allocation2 + $0x68] sm:$0xff] %v352
    %447 = vst [vmem:[#allocation2 + $0x70] sm:$0xff] %v419
    %448 = vst [vmem:[#allocation2 + $0x78] sm:$0xff] %v354
    %449 = vst [vmem:[#allocation2 + $0x80] sm:$0xff] %v356
    %450 = vst [vmem:[#allocation2 + $0x88] sm:$0xff] %v422
    %451 = vst [vmem:[#allocation2 + $0x90] sm:$0xff] %v360
    %452 = vst [vmem:[#allocation2 + $0x98] sm:$0xff] %v362
    %453 = vst [vmem:[#allocation2 + $0xa0] sm:$0xff] %v427
    %454 = vst [vmem:[#allocation2 + $0xa8] sm:$0xff] %v364
    %455 = vst [vmem:[#allocation2 + $0xb0] sm:$0xff] %v366
    %456 = vst [vmem:[#allocation2 + $0xb8] sm:$0xff] %v430
    %v457 = vld [vmem:[#allocation10] sm:$0xff]
    %v458 = vld [vmem:[#allocation10 + $0x8] sm:$0xf]
    %v459 = vld [vmem:[#allocation10 + $0xc] sm:$0xff]
    %v460 = vld [vmem:[#allocation10 + $0x14] sm:$0xf]
    %v461 = vld [vmem:[#allocation10 + $0x18] sm:$0xff]
    %v462 = vld [vmem:[#allocation10 + $0x20] sm:$0xf]
    %v463 = vld [vmem:[#allocation10 + $0x24] sm:$0xff]
    %v464 = vld [vmem:[#allocation10 + $0x2c] sm:$0xf]
    %v465 = vld [vmem:[#allocation10 + $0x30] sm:$0xff]
    %v466 = vld [vmem:[#allocation10 + $0x38] sm:$0xf]
    %v467 = vld [vmem:[#allocation10 + $0x3c] sm:$0xff]
    %v468 = vld [vmem:[#allocation10 + $0x44] sm:$0xf]
    %v469 = vld [vmem:[#allocation10 + $0x48] sm:$0xff]
    %v470 = vld [vmem:[#allocation10 + $0x50] sm:$0xf]
    %v471 = vld [vmem:[#allocation10 + $0x54] sm:$0xff]
    %v472 = vld [vmem:[#allocation10 + $0x5c] sm:$0xf]
    %v473 = vld [vmem:[#allocation10 + $0x60] sm:$0xff]
    %v474 = vld [vmem:[#allocation10 + $0x68] sm:$0xf]
    %v475 = vld [vmem:[#allocation10 + $0x6c] sm:$0xff]
    %v476 = vld [vmem:[#allocation10 + $0x74] sm:$0xf]
    %v477 = vld [vmem:[#allocation10 + $0x78] sm:$0xff]
    %v478 = vld [vmem:[#allocation10 + $0x80] sm:$0xf]
    %v479 = vld [vmem:[#allocation10 + $0x84] sm:$0xff]
    %v480 = vld [vmem:[#allocation10 + $0x8c] sm:$0xf]
    %v481 = vld [vmem:[#allocation10 + $0x90] sm:$0xff]
    %v482 = vld [vmem:[#allocation10 + $0x98] sm:$0xf]
    %v483 = vld [vmem:[#allocation10 + $0x9c] sm:$0xff]
    %v484 = vld [vmem:[#allocation10 + $0xa4] sm:$0xf]
    %v485 = vld [vmem:[#allocation10 + $0xa8] sm:$0xff]
    %v486 = vld [vmem:[#allocation10 + $0xb0] sm:$0xf]
    %v487 = vld [vmem:[#allocation10 + $0xb4] sm:$0xff]
    %v488 = vld [vmem:[#allocation10 + $0xbc] sm:$0xf]
    %v489 = vld [vmem:[#allocation3] sm:$0xff]
    %v490 = vld [vmem:[#allocation4] sm:$0xff]
    %s491 = smul.u32 0, 3
    %s492 = smul.addr %s491, 8
    %s493 = scalar_lea.vmem [#allocation2], %s492
    %v494 = vld [vmem:[%s493] sm:$0xff]
    %v495 = vld [vmem:[%s493 + $0x8] sm:$0xff]
    %v496 = vld [vmem:[%s493 + $0x10] sm:$0xff]
    %v497 = vpack.c.bf16 %v489, %v489
    %v530 = vunpack.c.l.b16 %v457
    %v531 = vunpack.c.h.b16 %v457
    %v532 = vunpack.c.l.b16 %v458
    %v533 = vunpack.c.l.b16 %v459
    %v534 = vunpack.c.h.b16 %v459
    %v535 = vunpack.c.l.b16 %v460
    %v536 = vunpack.c.l.b16 %v461
    %v537 = vunpack.c.h.b16 %v461
    %v538 = vunpack.c.l.b16 %v462
    %v539 = vunpack.c.l.b16 %v463
    %v540 = vunpack.c.h.b16 %v463
    %v541 = vunpack.c.l.b16 %v464
    %v542 = vunpack.c.l.b16 %v465
    %v543 = vunpack.c.h.b16 %v465
    %v544 = vunpack.c.l.b16 %v466
    %v545 = vunpack.c.l.b16 %v467
    %v546 = vunpack.c.h.b16 %v467
    %v547 = vunpack.c.l.b16 %v468
    %v548 = vunpack.c.l.b16 %v469
    %v549 = vunpack.c.h.b16 %v469
    %v550 = vunpack.c.l.b16 %v470
    %v551 = vunpack.c.l.b16 %v471
    %v552 = vunpack.c.h.b16 %v471
    %v553 = vunpack.c.l.b16 %v472
    %v554 = vunpack.c.l.b16 %v473
    %v555 = vunpack.c.h.b16 %v473
    %v556 = vunpack.c.l.b16 %v474
    %v557 = vunpack.c.l.b16 %v475
    %v558 = vunpack.c.h.b16 %v475
    %v559 = vunpack.c.l.b16 %v476
    %v560 = vunpack.c.l.b16 %v477
    %v561 = vunpack.c.h.b16 %v477
    %v562 = vunpack.c.l.b16 %v478
    %v563 = vunpack.c.l.b16 %v479
    %v564 = vunpack.c.h.b16 %v479
    %v565 = vunpack.c.l.b16 %v480
    %v566 = vunpack.c.l.b16 %v481
    %v567 = vunpack.c.h.b16 %v481
    %v568 = vunpack.c.l.b16 %v482
    %v569 = vunpack.c.l.b16 %v483
    %v570 = vunpack.c.h.b16 %v483
    %v571 = vunpack.c.l.b16 %v484
    %v572 = vunpack.c.l.b16 %v485
    %v573 = vunpack.c.h.b16 %v485
    %v574 = vunpack.c.l.b16 %v486
    %v575 = vunpack.c.l.b16 %v487
    %v576 = vunpack.c.h.b16 %v487
    %v577 = vunpack.c.l.b16 %v488
    %v578 = vpack.c.b16 %v533, %v530
    %v579 = vpack.c.b16 %v534, %v531
    %v580 = vpack.c.b16 %v535, %v532
    %v581 = vpack.c.b16 %v539, %v536
    %v582 = vpack.c.b16 %v540, %v537
    %v583 = vpack.c.b16 %v541, %v538
    %v584 = vpack.c.b16 %v545, %v542
    %v585 = vpack.c.b16 %v546, %v543
    %v586 = vpack.c.b16 %v547, %v544
    %v587 = vpack.c.b16 %v551, %v548
    %v588 = vpack.c.b16 %v552, %v549
    %v589 = vpack.c.b16 %v553, %v550
    %v590 = vpack.c.b16 %v557, %v554
    %v591 = vpack.c.b16 %v558, %v555
    %v592 = vpack.c.b16 %v559, %v556
    %v593 = vpack.c.b16 %v563, %v560
    %v594 = vpack.c.b16 %v564, %v561
    %v595 = vpack.c.b16 %v565, %v562
    %v596 = vpack.c.b16 %v569, %v566
    %v597 = vpack.c.b16 %v570, %v567
    %v598 = vpack.c.b16 %v571, %v568
    %v599 = vpack.c.b16 %v575, %v572
    %v600 = vpack.c.b16 %v576, %v573
    %v601 = vpack.c.b16 %v577, %v574
    %626 = vmatprep.subr.bf16.mxu0 %v579
    %627 = vmatpush1.bf16.msra.mxu0 %v578
    %628 = vmatprep.subr.bf16.mxu0 %v582
    %629 = vmatpush1.bf16.msra.mxu0 %v581
    %630 = vmatprep.subr.bf16.mxu0 %v585
    %631 = vmatpush1.bf16.msra.mxu0 %v584
    %632 = vmatprep.subr.bf16.mxu0 %v588
    %633 = vmatpush1.bf16.msra.mxu0 %v587
    %634 = vmatprep.subr.bf16.mxu0 %v591
    %635 = vmatpush1.bf16.msra.mxu0 %v590
    %636 = vmatprep.subr.bf16.mxu0 %v594
    %637 = vmatpush1.bf16.msra.mxu0 %v593
    %638 = vmatprep.subr.bf16.mxu0 %v597
    %639 = vmatpush1.bf16.msra.mxu0 %v596
    %640 = vmatprep.subr.bf16.mxu0 %v600
    %641 = vmatpush1.bf16.msra.mxu0 %v599
    %642 = vmatprep.subr.bf16.mxu0 0
    %643 = vmatpush1.bf16.msra.mxu0 0
    %644 = vmatprep.subr.bf16.mxu0 0
    %645 = vmatpush1.bf16.msra.mxu0 0
    %646 = vmatprep.subr.bf16.mxu0 0
    %647 = vmatpush1.bf16.msra.mxu0 0
    %648 = vmatprep.subr.bf16.mxu0 0
    %649 = vmatpush1.bf16.msra.mxu0 0
    %650 = vmatprep.subr.bf16.mxu0 0
    %651 = vmatpush1.bf16.msra.mxu0 0
    %652 = vmatprep.subr.bf16.mxu0 0
    %653 = vmatpush1.bf16.msra.mxu0 0
    %654 = vmatprep.subr.bf16.mxu0 0
    %655 = vmatpush1.bf16.msra.mxu0 0
    %656 = vmatprep.subr.bf16.mxu0 0
    %657 = vmatpush1.bf16.msra.mxu0 0
    %658 = vmatprep.mubr.bf16.mxu0 0
    %659 = vmatmul.mubr.bf16.gmra.mrb[0].mxu0 %v497
    %v660 = vpop.f32.mrb[0].mxu0
    %v661 = vadd.f32 0.0, %v660
    %v662 = vpop.f32.mrb[0].mxu0
    %v663 = vadd.f32 0.0, %v662
    %v664 = vpop.f32.mrb[0].mxu0
    %v665 = vpop.f32.mrb[0].mxu0
    %666 = vdwg.mxu0
    %667 = vmatprep.subr.bf16.mxu0 0
    %668 = vmatpush1.bf16.msra.mxu0 %v580
    %669 = vmatprep.subr.bf16.mxu0 0
    %670 = vmatpush1.bf16.msra.mxu0 %v583
    %671 = vmatprep.subr.bf16.mxu0 0
    %672 = vmatpush1.bf16.msra.mxu0 %v586
    %673 = vmatprep.subr.bf16.mxu0 0
    %674 = vmatpush1.bf16.msra.mxu0 %v589
    %675 = vmatprep.subr.bf16.mxu0 0
    %676 = vmatpush1.bf16.msra.mxu0 %v592
    %677 = vmatprep.subr.bf16.mxu0 0
    %678 = vmatpush1.bf16.msra.mxu0 %v595
    %679 = vmatprep.subr.bf16.mxu0 0
    %680 = vmatpush1.bf16.msra.mxu0 %v598
    %681 = vmatprep.subr.bf16.mxu0 0
    %682 = vmatpush1.bf16.msra.mxu0 %v601
    %683 = vmatprep.subr.bf16.mxu0 0
    %684 = vmatpush1.bf16.msra.mxu0 0
    %685 = vmatprep.subr.bf16.mxu0 0
    %686 = vmatpush1.bf16.msra.mxu0 0
    %687 = vmatprep.subr.bf16.mxu0 0
    %688 = vmatpush1.bf16.msra.mxu0 0
    %689 = vmatprep.subr.bf16.mxu0 0
    %690 = vmatpush1.bf16.msra.mxu0 0
    %691 = vmatprep.subr.bf16.mxu0 0
    %692 = vmatpush1.bf16.msra.mxu0 0
    %693 = vmatprep.subr.bf16.mxu0 0
    %694 = vmatpush1.bf16.msra.mxu0 0
    %695 = vmatprep.subr.bf16.mxu0 0
    %696 = vmatpush1.bf16.msra.mxu0 0
    %697 = vmatprep.subr.bf16.mxu0 0
    %698 = vmatpush1.bf16.msra.mxu0 0
    %699 = vmatprep.mubr.bf16.mxu0 0
    %700 = vmatmul.mubr.bf16.gmra.mrb[0].mxu0 %v497
    %v701 = vpop.f32.mrb[0].mxu0
    %v702 = vadd.f32 0.0, %v701
    %v703 = vpop.f32.mrb[0].mxu0
    %v704 = vpop.f32.mrb[0].mxu0
    %v705 = vpop.f32.mrb[0].mxu0
    %706 = vdwg.mxu0
    %v707 = vadd.f32 %v494, %v661
    %v708 = vadd.f32 %v495, %v663
    %v709 = vadd.f32 %v496, %v702
    %v710 = vxor.u32 %v707, 2147483648
    %v711 = vxor.u32 %v708, 2147483648
    %v712 = vmul.f32 %v710, 1.442695
    %v713 = vpow.pop %v712
    %v714 = vmul.f32 %v711, 1.442695
    %v715 = vpow.pop %v714
    %v716 = vadd.f32 %v713, 1.0
    %v717 = vadd.f32 %v715, 1.0
    %v718 = vrcp.pop %v716
    %v719 = vmul.f32 1.0, %v718
    %v720 = vrcp.pop %v717
    %v721 = vmul.f32 1.0, %v720
    %v722 = vtanh.pop %v709
    %v723 = vmul.f32 %v721, %v490
    %v724 = vmul.f32 %v719, %v722
    %v725 = vadd.f32 %v723, %v724
    %v726 = vtanh.pop %v725
    %s727 = smul.u32 1, 3
    %s728 = smul.addr %s727, 8
    %s729 = scalar_lea.vmem [#allocation2], %s728
    %v730 = vld [vmem:[%s729] sm:$0xff]
    %v731 = vld [vmem:[%s729 + $0x8] sm:$0xff]
    %v732 = vld [vmem:[%s729 + $0x10] sm:$0xff]
    %v733 = vpack.c.bf16 %v726, %v726
    %734 = vmatprep.subr.bf16.mxu0 %v579
    %735 = vmatpush1.bf16.msra.mxu0 %v578
    %736 = vmatprep.subr.bf16.mxu0 %v582
    %737 = vmatpush1.bf16.msra.mxu0 %v581
    %738 = vmatprep.subr.bf16.mxu0 %v585
    %739 = vmatpush1.bf16.msra.mxu0 %v584
    %740 = vmatprep.subr.bf16.mxu0 %v588
    %741 = vmatpush1.bf16.msra.mxu0 %v587
    %742 = vmatprep.subr.bf16.mxu0 %v591
    %743 = vmatpush1.bf16.msra.mxu0 %v590
    %744 = vmatprep.subr.bf16.mxu0 %v594
    %745 = vmatpush1.bf16.msra.mxu0 %v593
    %746 = vmatprep.subr.bf16.mxu0 %v597
    %747 = vmatpush1.bf16.msra.mxu0 %v596
    %748 = vmatprep.subr.bf16.mxu0 %v600
    %749 = vmatpush1.bf16.msra.mxu0 %v599
    %750 = vmatprep.subr.bf16.mxu0 0
    %751 = vmatpush1.bf16.msra.mxu0 0
    %752 = vmatprep.subr.bf16.mxu0 0
    %753 = vmatpush1.bf16.msra.mxu0 0
    %754 = vmatprep.subr.bf16.mxu0 0
    %755 = vmatpush1.bf16.msra.mxu0 0
    %756 = vmatprep.subr.bf16.mxu0 0
    %757 = vmatpush1.bf16.msra.mxu0 0
    %758 = vmatprep.subr.bf16.mxu0 0
    %759 = vmatpush1.bf16.msra.mxu0 0
    %760 = vmatprep.subr.bf16.mxu0 0
    %761 = vmatpush1.bf16.msra.mxu0 0
    %762 = vmatprep.subr.bf16.mxu0 0
    %763 = vmatpush1.bf16.msra.mxu0 0
    %764 = vmatprep.subr.bf16.mxu0 0
    %765 = vmatpush1.bf16.msra.mxu0 0
    %766 = vmatprep.mubr.bf16.mxu0 0
    %767 = vmatmul.mubr.bf16.gmra.mrb[0].mxu0 %v733
    %v768 = vpop.f32.mrb[0].mxu0
    %v769 = vadd.f32 0.0, %v768
    %v770 = vpop.f32.mrb[0].mxu0
    %v771 = vadd.f32 0.0, %v770
    %v772 = vpop.f32.mrb[0].mxu0
    %v773 = vpop.f32.mrb[0].mxu0
    %774 = vdwg.mxu0
    %775 = vmatprep.subr.bf16.mxu0 0
    %776 = vmatpush1.bf16.msra.mxu0 %v580
    %777 = vmatprep.subr.bf16.mxu0 0
    %778 = vmatpush1.bf16.msra.mxu0 %v583
    %779 = vmatprep.subr.bf16.mxu0 0
    %780 = vmatpush1.bf16.msra.mxu0 %v586
    %781 = vmatprep.subr.bf16.mxu0 0
    %782 = vmatpush1.bf16.msra.mxu0 %v589
    %783 = vmatprep.subr.bf16.mxu0 0
    %784 = vmatpush1.bf16.msra.mxu0 %v592
    %785 = vmatprep.subr.bf16.mxu0 0
    %786 = vmatpush1.bf16.msra.mxu0 %v595
    %787 = vmatprep.subr.bf16.mxu0 0
    %788 = vmatpush1.bf16.msra.mxu0 %v598
    %789 = vmatprep.subr.bf16.mxu0 0
    %790 = vmatpush1.bf16.msra.mxu0 %v601
    %791 = vmatprep.subr.bf16.mxu0 0
    %792 = vmatpush1.bf16.msra.mxu0 0
    %793 = vmatprep.subr.bf16.mxu0 0
    %794 = vmatpush1.bf16.msra.mxu0 0
    %795 = vmatprep.subr.bf16.mxu0 0
    %796 = vmatpush1.bf16.msra.mxu0 0
    %797 = vmatprep.subr.bf16.mxu0 0
    %798 = vmatpush1.bf16.msra.mxu0 0
    %799 = vmatprep.subr.bf16.mxu0 0
    %800 = vmatpush1.bf16.msra.mxu0 0
    %801 = vmatprep.subr.bf16.mxu0 0
    %802 = vmatpush1.bf16.msra.mxu0 0
    %803 = vmatprep.subr.bf16.mxu0 0
    %804 = vmatpush1.bf16.msra.mxu0 0
    %805 = vmatprep.subr.bf16.mxu0 0
    %806 = vmatpush1.bf16.msra.mxu0 0
    %807 = vmatprep.mubr.bf16.mxu0 0
    %808 = vmatmul.mubr.bf16.gmra.mrb[0].mxu0 %v733
    %v809 = vpop.f32.mrb[0].mxu0
    %v810 = vadd.f32 0.0, %v809
    %v811 = vpop.f32.mrb[0].mxu0
    %v812 = vpop.f32.mrb[0].mxu0
    %v813 = vpop.f32.mrb[0].mxu0
    %814 = vdwg.mxu0
    %v815 = vadd.f32 %v730, %v769
    %v816 = vadd.f32 %v731, %v771
    %v817 = vadd.f32 %v732, %v810
    %v818 = vxor.u32 %v815, 2147483648
    %v819 = vxor.u32 %v816, 2147483648
    %v820 = vmul.f32 %v818, 1.442695
    %v821 = vpow.pop %v820
    %v822 = vmul.f32 %v819, 1.442695
    %v823 = vpow.pop %v822
    %v824 = vadd.f32 %v821, 1.0
    %v825 = vadd.f32 %v823, 1.0
    %v826 = vrcp.pop %v824
    %v827 = vmul.f32 1.0, %v826
    %v828 = vrcp.pop %v825
    %v829 = vmul.f32 1.0, %v828
    %v830 = vtanh.pop %v817
    %v831 = vmul.f32 %v829, %v725
    %v832 = vmul.f32 %v827, %v830
    %v833 = vadd.f32 %v831, %v832
    %v834 = vtanh.pop %v833
    %s835 = smul.u32 2, 3
    %s836 = smul.addr %s835, 8
    %s837 = scalar_lea.vmem [#allocation2], %s836
    %v838 = vld [vmem:[%s837] sm:$0xff]
    %v839 = vld [vmem:[%s837 + $0x8] sm:$0xff]
    %v840 = vld [vmem:[%s837 + $0x10] sm:$0xff]
    %v841 = vpack.c.bf16 %v834, %v834
    %842 = vmatprep.subr.bf16.mxu0 %v579
    %843 = vmatpush1.bf16.msra.mxu0 %v578
    %844 = vmatprep.subr.bf16.mxu0 %v582
    %845 = vmatpush1.bf16.msra.mxu0 %v581
    %846 = vmatprep.subr.bf16.mxu0 %v585
    %847 = vmatpush1.bf16.msra.mxu0 %v584
    %848 = vmatprep.subr.bf16.mxu0 %v588
    %849 = vmatpush1.bf16.msra.mxu0 %v587
    %850 = vmatprep.subr.bf16.mxu0 %v591
    %851 = vmatpush1.bf16.msra.mxu0 %v590
    %852 = vmatprep.subr.bf16.mxu0 %v594
    %853 = vmatpush1.bf16.msra.mxu0 %v593
    %854 = vmatprep.subr.bf16.mxu0 %v597
    %855 = vmatpush1.bf16.msra.mxu0 %v596
    %856 = vmatprep.subr.bf16.mxu0 %v600
    %857 = vmatpush1.bf16.msra.mxu0 %v599
    %858 = vmatprep.subr.bf16.mxu0 0
    %859 = vmatpush1.bf16.msra.mxu0 0
    %860 = vmatprep.subr.bf16.mxu0 0
    %861 = vmatpush1.bf16.msra.mxu0 0
    %862 = vmatprep.subr.bf16.mxu0 0
    %863 = vmatpush1.bf16.msra.mxu0 0
    %864 = vmatprep.subr.bf16.mxu0 0
    %865 = vmatpush1.bf16.msra.mxu0 0
    %866 = vmatprep.subr.bf16.mxu0 0
    %867 = vmatpush1.bf16.msra.mxu0 0
    %868 = vmatprep.subr.bf16.mxu0 0
    %869 = vmatpush1.bf16.msra.mxu0 0
    %870 = vmatprep.subr.bf16.mxu0 0
    %871 = vmatpush1.bf16.msra.mxu0 0
    %872 = vmatprep.subr.bf16.mxu0 0
    %873 = vmatpush1.bf16.msra.mxu0 0
    %874 = vmatprep.mubr.bf16.mxu0 0
    %875 = vmatmul.mubr.bf16.gmra.mrb[0].mxu0 %v841
    %v876 = vpop.f32.mrb[0].mxu0
    %v877 = vadd.f32 0.0, %v876
    %v878 = vpop.f32.mrb[0].mxu0
    %v879 = vadd.f32 0.0, %v878
    %v880 = vpop.f32.mrb[0].mxu0
    %v881 = vpop.f32.mrb[0].mxu0
    %882 = vdwg.mxu0
    %883 = vmatprep.subr.bf16.mxu0 0
    %884 = vmatpush1.bf16.msra.mxu0 %v580
    %885 = vmatprep.subr.bf16.mxu0 0
    %886 = vmatpush1.bf16.msra.mxu0 %v583
    %887 = vmatprep.subr.bf16.mxu0 0
    %888 = vmatpush1.bf16.msra.mxu0 %v586
    %889 = vmatprep.subr.bf16.mxu0 0
    %890 = vmatpush1.bf16.msra.mxu0 %v589
    %891 = vmatprep.subr.bf16.mxu0 0
    %892 = vmatpush1.bf16.msra.mxu0 %v592
    %893 = vmatprep.subr.bf16.mxu0 0
    %894 = vmatpush1.bf16.msra.mxu0 %v595
    %895 = vmatprep.subr.bf16.mxu0 0
    %896 = vmatpush1.bf16.msra.mxu0 %v598
    %897 = vmatprep.subr.bf16.mxu0 0
    %898 = vmatpush1.bf16.msra.mxu0 %v601
    %899 = vmatprep.subr.bf16.mxu0 0
    %900 = vmatpush1.bf16.msra.mxu0 0
    %901 = vmatprep.subr.bf16.mxu0 0
    %902 = vmatpush1.bf16.msra.mxu0 0
    %903 = vmatprep.subr.bf16.mxu0 0
    %904 = vmatpush1.bf16.msra.mxu0 0
    %905 = vmatprep.subr.bf16.mxu0 0
    %906 = vmatpush1.bf16.msra.mxu0 0
    %907 = vmatprep.subr.bf16.mxu0 0
    %908 = vmatpush1.bf16.msra.mxu0 0
    %909 = vmatprep.subr.bf16.mxu0 0
    %910 = vmatpush1.bf16.msra.mxu0 0
    %911 = vmatprep.subr.bf16.mxu0 0
    %912 = vmatpush1.bf16.msra.mxu0 0
    %913 = vmatprep.subr.bf16.mxu0 0
    %914 = vmatpush1.bf16.msra.mxu0 0
    %915 = vmatprep.mubr.bf16.mxu0 0
    %916 = vmatmul.mubr.bf16.gmra.mrb[0].mxu0 %v841
    %v917 = vpop.f32.mrb[0].mxu0
    %v918 = vadd.f32 0.0, %v917
    %v919 = vpop.f32.mrb[0].mxu0
    %v920 = vpop.f32.mrb[0].mxu0
    %v921 = vpop.f32.mrb[0].mxu0
    %922 = vdwg.mxu0
    %v923 = vadd.f32 %v838, %v877
    %v924 = vadd.f32 %v839, %v879
    %v925 = vadd.f32 %v840, %v918
    %v926 = vxor.u32 %v923, 2147483648
    %v927 = vxor.u32 %v924, 2147483648
    %v928 = vmul.f32 %v926, 1.442695
    %v929 = vpow.pop %v928
    %v930 = vmul.f32 %v927, 1.442695
    %v931 = vpow.pop %v930
    %v932 = vadd.f32 %v929, 1.0
    %v933 = vadd.f32 %v931, 1.0
    %v934 = vrcp.pop %v932
    %v935 = vmul.f32 1.0, %v934
    %v936 = vrcp.pop %v933
    %v937 = vmul.f32 1.0, %v936
    %v938 = vtanh.pop %v925
    %v939 = vmul.f32 %v937, %v833
    %v940 = vmul.f32 %v935, %v938
    %v941 = vadd.f32 %v939, %v940
    %v942 = vtanh.pop %v941
    %s943 = smul.u32 3, 3
    %s944 = smul.addr %s943, 8
    %s945 = scalar_lea.vmem [#allocation2], %s944
    %v946 = vld [vmem:[%s945] sm:$0xff]
    %v947 = vld [vmem:[%s945 + $0x8] sm:$0xff]
    %v948 = vld [vmem:[%s945 + $0x10] sm:$0xff]
    %v949 = vpack.c.bf16 %v942, %v942
    %950 = vmatprep.subr.bf16.mxu0 %v579
    %951 = vmatpush1.bf16.msra.mxu0 %v578
    %952 = vmatprep.subr.bf16.mxu0 %v582
    %953 = vmatpush1.bf16.msra.mxu0 %v581
    %954 = vmatprep.subr.bf16.mxu0 %v585
    %955 = vmatpush1.bf16.msra.mxu0 %v584
    %956 = vmatprep.subr.bf16.mxu0 %v588
    %957 = vmatpush1.bf16.msra.mxu0 %v587
    %958 = vmatprep.subr.bf16.mxu0 %v591
    %959 = vmatpush1.bf16.msra.mxu0 %v590
    %960 = vmatprep.subr.bf16.mxu0 %v594
    %961 = vmatpush1.bf16.msra.mxu0 %v593
    %962 = vmatprep.subr.bf16.mxu0 %v597
    %963 = vmatpush1.bf16.msra.mxu0 %v596
    %964 = vmatprep.subr.bf16.mxu0 %v600
    %965 = vmatpush1.bf16.msra.mxu0 %v599
    %966 = vmatprep.subr.bf16.mxu0 0
    %967 = vmatpush1.bf16.msra.mxu0 0
    %968 = vmatprep.subr.bf16.mxu0 0
    %969 = vmatpush1.bf16.msra.mxu0 0
    %970 = vmatprep.subr.bf16.mxu0 0
    %971 = vmatpush1.bf16.msra.mxu0 0
    %972 = vmatprep.subr.bf16.mxu0 0
    %973 = vmatpush1.bf16.msra.mxu0 0
    %974 = vmatprep.subr.bf16.mxu0 0
    %975 = vmatpush1.bf16.msra.mxu0 0
    %976 = vmatprep.subr.bf16.mxu0 0
    %977 = vmatpush1.bf16.msra.mxu0 0
    %978 = vmatprep.subr.bf16.mxu0 0
    %979 = vmatpush1.bf16.msra.mxu0 0
    %980 = vmatprep.subr.bf16.mxu0 0
    %981 = vmatpush1.bf16.msra.mxu0 0
    %982 = vmatprep.mubr.bf16.mxu0 0
    %983 = vmatmul.mubr.bf16.gmra.mrb[0].mxu0 %v949
    %v984 = vpop.f32.mrb[0].mxu0
    %v985 = vadd.f32 0.0, %v984
    %v986 = vpop.f32.mrb[0].mxu0
    %v987 = vadd.f32 0.0, %v986
    %v988 = vpop.f32.mrb[0].mxu0
    %v989 = vpop.f32.mrb[0].mxu0
    %990 = vdwg.mxu0
    %991 = vmatprep.subr.bf16.mxu0 0
    %992 = vmatpush1.bf16.msra.mxu0 %v580
    %993 = vmatprep.subr.bf16.mxu0 0
    %994 = vmatpush1.bf16.msra.mxu0 %v583
    %995 = vmatprep.subr.bf16.mxu0 0
    %996 = vmatpush1.bf16.msra.mxu0 %v586
    %997 = vmatprep.subr.bf16.mxu0 0
    %998 = vmatpush1.bf16.msra.mxu0 %v589
    %999 = vmatprep.subr.bf16.mxu0 0
    %1000 = vmatpush1.bf16.msra.mxu0 %v592
    %1001 = vmatprep.subr.bf16.mxu0 0
    %1002 = vmatpush1.bf16.msra.mxu0 %v595
    %1003 = vmatprep.subr.bf16.mxu0 0
    %1004 = vmatpush1.bf16.msra.mxu0 %v598
    %1005 = vmatprep.subr.bf16.mxu0 0
    %1006 = vmatpush1.bf16.msra.mxu0 %v601
    %1007 = vmatprep.subr.bf16.mxu0 0
    %1008 = vmatpush1.bf16.msra.mxu0 0
    %1009 = vmatprep.subr.bf16.mxu0 0
    %1010 = vmatpush1.bf16.msra.mxu0 0
    %1011 = vmatprep.subr.bf16.mxu0 0
    %1012 = vmatpush1.bf16.msra.mxu0 0
    %1013 = vmatprep.subr.bf16.mxu0 0
    %1014 = vmatpush1.bf16.msra.mxu0 0
    %1015 = vmatprep.subr.bf16.mxu0 0
    %1016 = vmatpush1.bf16.msra.mxu0 0
    %1017 = vmatprep.subr.bf16.mxu0 0
    %1018 = vmatpush1.bf16.msra.mxu0 0
    %1019 = vmatprep.subr.bf16.mxu0 0
    %1020 = vmatpush1.bf16.msra.mxu0 0
    %1021 = vmatprep.subr.bf16.mxu0 0
    %1022 = vmatpush1.bf16.msra.mxu0 0
    %1023 = vmatprep.mubr.bf16.mxu0 0
    %1024 = vmatmul.mubr.bf16.gmra.mrb[0].mxu0 %v949
    %v1025 = vpop.f32.mrb[0].mxu0
    %v1026 = vadd.f32 0.0, %v1025
    %v1027 = vpop.f32.mrb[0].mxu0
    %v1028 = vpop.f32.mrb[0].mxu0
    %v1029 = vpop.f32.mrb[0].mxu0
    %1030 = vdwg.mxu0
    %v1031 = vadd.f32 %v946, %v985
    %v1032 = vadd.f32 %v947, %v987
    %v1033 = vadd.f32 %v948, %v1026
    %v1034 = vxor.u32 %v1031, 2147483648
    %v1035 = vxor.u32 %v1032, 2147483648
    %v1036 = vmul.f32 %v1034, 1.442695
    %v1037 = vpow.pop %v1036
    %v1038 = vmul.f32 %v1035, 1.442695
    %v1039 = vpow.pop %v1038
    %v1040 = vadd.f32 %v1037, 1.0
    %v1041 = vadd.f32 %v1039, 1.0
    %v1042 = vrcp.pop %v1040
    %v1043 = vmul.f32 1.0, %v1042
    %v1044 = vrcp.pop %v1041
    %v1045 = vmul.f32 1.0, %v1044
    %v1046 = vtanh.pop %v1033
    %v1047 = vmul.f32 %v1045, %v941
    %v1048 = vmul.f32 %v1043, %v1046
    %v1049 = vadd.f32 %v1047, %v1048
    %v1050 = vtanh.pop %v1049
    %s1051 = smul.u32 4, 3
    %s1052 = smul.addr %s1051, 8
    %s1053 = scalar_lea.vmem [#allocation2], %s1052
    %v1054 = vld [vmem:[%s1053] sm:$0xff]
    %v1055 = vld [vmem:[%s1053 + $0x8] sm:$0xff]
    %v1056 = vld [vmem:[%s1053 + $0x10] sm:$0xff]
    %v1057 = vpack.c.bf16 %v1050, %v1050
    %1058 = vmatprep.subr.bf16.mxu0 %v579
    %1059 = vmatpush1.bf16.msra.mxu0 %v578
    %1060 = vmatprep.subr.bf16.mxu0 %v582
    %1061 = vmatpush1.bf16.msra.mxu0 %v581
    %1062 = vmatprep.subr.bf16.mxu0 %v585
    %1063 = vmatpush1.bf16.msra.mxu0 %v584
    %1064 = vmatprep.subr.bf16.mxu0 %v588
    %1065 = vmatpush1.bf16.msra.mxu0 %v587
    %1066 = vmatprep.subr.bf16.mxu0 %v591
    %1067 = vmatpush1.bf16.msra.mxu0 %v590
    %1068 = vmatprep.subr.bf16.mxu0 %v594
    %1069 = vmatpush1.bf16.msra.mxu0 %v593
    %1070 = vmatprep.subr.bf16.mxu0 %v597
    %1071 = vmatpush1.bf16.msra.mxu0 %v596
    %1072 = vmatprep.subr.bf16.mxu0 %v600
    %1073 = vmatpush1.bf16.msra.mxu0 %v599
    %1074 = vmatprep.subr.bf16.mxu0 0
    %1075 = vmatpush1.bf16.msra.mxu0 0
    %1076 = vmatprep.subr.bf16.mxu0 0
    %1077 = vmatpush1.bf16.msra.mxu0 0
    %1078 = vmatprep.subr.bf16.mxu0 0
    %1079 = vmatpush1.bf16.msra.mxu0 0
    %1080 = vmatprep.subr.bf16.mxu0 0
    %1081 = vmatpush1.bf16.msra.mxu0 0
    %1082 = vmatprep.subr.bf16.mxu0 0
    %1083 = vmatpush1.bf16.msra.mxu0 0
    %1084 = vmatprep.subr.bf16.mxu0 0
    %1085 = vmatpush1.bf16.msra.mxu0 0
    %1086 = vmatprep.subr.bf16.mxu0 0
    %1087 = vmatpush1.bf16.msra.mxu0 0
    %1088 = vmatprep.subr.bf16.mxu0 0
    %1089 = vmatpush1.bf16.msra.mxu0 0
    %1090 = vmatprep.mubr.bf16.mxu0 0
    %1091 = vmatmul.mubr.bf16.gmra.mrb[0].mxu0 %v1057
    %v1092 = vpop.f32.mrb[0].mxu0
    %v1093 = vadd.f32 0.0, %v1092
    %v1094 = vpop.f32.mrb[0].mxu0
    %v1095 = vadd.f32 0.0, %v1094
    %v1096 = vpop.f32.mrb[0].mxu0
    %v1097 = vpop.f32.mrb[0].mxu0
    %1098 = vdwg.mxu0
    %1099 = vmatprep.subr.bf16.mxu0 0
    %1100 = vmatpush1.bf16.msra.mxu0 %v580
    %1101 = vmatprep.subr.bf16.mxu0 0
    %1102 = vmatpush1.bf16.msra.mxu0 %v583
    %1103 = vmatprep.subr.bf16.mxu0 0
    %1104 = vmatpush1.bf16.msra.mxu0 %v586
    %1105 = vmatprep.subr.bf16.mxu0 0
    %1106 = vmatpush1.bf16.msra.mxu0 %v589
    %1107 = vmatprep.subr.bf16.mxu0 0
    %1108 = vmatpush1.bf16.msra.mxu0 %v592
    %1109 = vmatprep.subr.bf16.mxu0 0
    %1110 = vmatpush1.bf16.msra.mxu0 %v595
    %1111 = vmatprep.subr.bf16.mxu0 0
    %1112 = vmatpush1.bf16.msra.mxu0 %v598
    %1113 = vmatprep.subr.bf16.mxu0 0
    %1114 = vmatpush1.bf16.msra.mxu0 %v601
    %1115 = vmatprep.subr.bf16.mxu0 0
    %1116 = vmatpush1.bf16.msra.mxu0 0
    %1117 = vmatprep.subr.bf16.mxu0 0
    %1118 = vmatpush1.bf16.msra.mxu0 0
    %1119 = vmatprep.subr.bf16.mxu0 0
    %1120 = vmatpush1.bf16.msra.mxu0 0
    %1121 = vmatprep.subr.bf16.mxu0 0
    %1122 = vmatpush1.bf16.msra.mxu0 0
    %1123 = vmatprep.subr.bf16.mxu0 0
    %1124 = vmatpush1.bf16.msra.mxu0 0
    %1125 = vmatprep.subr.bf16.mxu0 0
    %1126 = vmatpush1.bf16.msra.mxu0 0
    %1127 = vmatprep.subr.bf16.mxu0 0
    %1128 = vmatpush1.bf16.msra.mxu0 0
    %1129 = vmatprep.subr.bf16.mxu0 0
    %1130 = vmatpush1.bf16.msra.mxu0 0
    %1131 = vmatprep.mubr.bf16.mxu0 0
    %1132 = vmatmul.mubr.bf16.gmra.mrb[0].mxu0 %v1057
    %v1133 = vpop.f32.mrb[0].mxu0
    %v1134 = vadd.f32 0.0, %v1133
    %v1135 = vpop.f32.mrb[0].mxu0
    %v1136 = vpop.f32.mrb[0].mxu0
    %v1137 = vpop.f32.mrb[0].mxu0
    %1138 = vdwg.mxu0
    %v1139 = vadd.f32 %v1054, %v1093
    %v1140 = vadd.f32 %v1055, %v1095
    %v1141 = vadd.f32 %v1056, %v1134
    %v1142 = vxor.u32 %v1139, 2147483648
    %v1143 = vxor.u32 %v1140, 2147483648
    %v1144 = vmul.f32 %v1142, 1.442695
    %v1145 = vpow.pop %v1144
    %v1146 = vmul.f32 %v1143, 1.442695
    %v1147 = vpow.pop %v1146
    %v1148 = vadd.f32 %v1145, 1.0
    %v1149 = vadd.f32 %v1147, 1.0
    %v1150 = vrcp.pop %v1148
    %v1151 = vmul.f32 1.0, %v1150
    %v1152 = vrcp.pop %v1149
    %v1153 = vmul.f32 1.0, %v1152
    %v1154 = vtanh.pop %v1141
    %v1155 = vmul.f32 %v1153, %v1049
    %v1156 = vmul.f32 %v1151, %v1154
    %v1157 = vadd.f32 %v1155, %v1156
    %v1158 = vtanh.pop %v1157
    %s1159 = smul.u32 5, 3
    %s1160 = smul.addr %s1159, 8
    %s1161 = scalar_lea.vmem [#allocation2], %s1160
    %v1162 = vld [vmem:[%s1161] sm:$0xff]
    %v1163 = vld [vmem:[%s1161 + $0x8] sm:$0xff]
    %v1164 = vld [vmem:[%s1161 + $0x10] sm:$0xff]
    %v1165 = vpack.c.bf16 %v1158, %v1158
    %1166 = vmatprep.subr.bf16.mxu0 %v579
    %1167 = vmatpush1.bf16.msra.mxu0 %v578
    %1168 = vmatprep.subr.bf16.mxu0 %v582
    %1169 = vmatpush1.bf16.msra.mxu0 %v581
    %1170 = vmatprep.subr.bf16.mxu0 %v585
    %1171 = vmatpush1.bf16.msra.mxu0 %v584
    %1172 = vmatprep.subr.bf16.mxu0 %v588
    %1173 = vmatpush1.bf16.msra.mxu0 %v587
    %1174 = vmatprep.subr.bf16.mxu0 %v591
    %1175 = vmatpush1.bf16.msra.mxu0 %v590
    %1176 = vmatprep.subr.bf16.mxu0 %v594
    %1177 = vmatpush1.bf16.msra.mxu0 %v593
    %1178 = vmatprep.subr.bf16.mxu0 %v597
    %1179 = vmatpush1.bf16.msra.mxu0 %v596
    %1180 = vmatprep.subr.bf16.mxu0 %v600
    %1181 = vmatpush1.bf16.msra.mxu0 %v599
    %1182 = vmatprep.subr.bf16.mxu0 0
    %1183 = vmatpush1.bf16.msra.mxu0 0
    %1184 = vmatprep.subr.bf16.mxu0 0
    %1185 = vmatpush1.bf16.msra.mxu0 0
    %1186 = vmatprep.subr.bf16.mxu0 0
    %1187 = vmatpush1.bf16.msra.mxu0 0
    %1188 = vmatprep.subr.bf16.mxu0 0
    %1189 = vmatpush1.bf16.msra.mxu0 0
    %1190 = vmatprep.subr.bf16.mxu0 0
    %1191 = vmatpush1.bf16.msra.mxu0 0
    %1192 = vmatprep.subr.bf16.mxu0 0
    %1193 = vmatpush1.bf16.msra.mxu0 0
    %1194 = vmatprep.subr.bf16.mxu0 0
    %1195 = vmatpush1.bf16.msra.mxu0 0
    %1196 = vmatprep.subr.bf16.mxu0 0
    %1197 = vmatpush1.bf16.msra.mxu0 0
    %1198 = vmatprep.mubr.bf16.mxu0 0
    %1199 = vmatmul.mubr.bf16.gmra.mrb[0].mxu0 %v1165
    %v1200 = vpop.f32.mrb[0].mxu0
    %v1201 = vadd.f32 0.0, %v1200
    %v1202 = vpop.f32.mrb[0].mxu0
    %v1203 = vadd.f32 0.0, %v1202
    %v1204 = vpop.f32.mrb[0].mxu0
    %v1205 = vpop.f32.mrb[0].mxu0
    %1206 = vdwg.mxu0
    %1207 = vmatprep.subr.bf16.mxu0 0
    %1208 = vmatpush1.bf16.msra.mxu0 %v580
    %1209 = vmatprep.subr.bf16.mxu0 0
    %1210 = vmatpush1.bf16.msra.mxu0 %v583
    %1211 = vmatprep.subr.bf16.mxu0 0
    %1212 = vmatpush1.bf16.msra.mxu0 %v586
    %1213 = vmatprep.subr.bf16.mxu0 0
    %1214 = vmatpush1.bf16.msra.mxu0 %v589
    %1215 = vmatprep.subr.bf16.mxu0 0
    %1216 = vmatpush1.bf16.msra.mxu0 %v592
    %1217 = vmatprep.subr.bf16.mxu0 0
    %1218 = vmatpush1.bf16.msra.mxu0 %v595
    %1219 = vmatprep.subr.bf16.mxu0 0
    %1220 = vmatpush1.bf16.msra.mxu0 %v598
    %1221 = vmatprep.subr.bf16.mxu0 0
    %1222 = vmatpush1.bf16.msra.mxu0 %v601
    %1223 = vmatprep.subr.bf16.mxu0 0
    %1224 = vmatpush1.bf16.msra.mxu0 0
    %1225 = vmatprep.subr.bf16.mxu0 0
    %1226 = vmatpush1.bf16.msra.mxu0 0
    %1227 = vmatprep.subr.bf16.mxu0 0
    %1228 = vmatpush1.bf16.msra.mxu0 0
    %1229 = vmatprep.subr.bf16.mxu0 0
    %1230 = vmatpush1.bf16.msra.mxu0 0
    %1231 = vmatprep.subr.bf16.mxu0 0
    %1232 = vmatpush1.bf16.msra.mxu0 0
    %1233 = vmatprep.subr.bf16.mxu0 0
    %1234 = vmatpush1.bf16.msra.mxu0 0
    %1235 = vmatprep.subr.bf16.mxu0 0
    %1236 = vmatpush1.bf16.msra.mxu0 0
    %1237 = vmatprep.subr.bf16.mxu0 0
    %1238 = vmatpush1.bf16.msra.mxu0 0
    %1239 = vmatprep.mubr.bf16.mxu0 0
    %1240 = vmatmul.mubr.bf16.gmra.mrb[0].mxu0 %v1165
    %v1241 = vpop.f32.mrb[0].mxu0
    %v1242 = vadd.f32 0.0, %v1241
    %v1243 = vpop.f32.mrb[0].mxu0
    %v1244 = vpop.f32.mrb[0].mxu0
    %v1245 = vpop.f32.mrb[0].mxu0
    %1246 = vdwg.mxu0
    %v1247 = vadd.f32 %v1162, %v1201
    %v1248 = vadd.f32 %v1163, %v1203
    %v1249 = vadd.f32 %v1164, %v1242
    %v1250 = vxor.u32 %v1247, 2147483648
    %v1251 = vxor.u32 %v1248, 2147483648
    %v1252 = vmul.f32 %v1250, 1.442695
    %v1253 = vpow.pop %v1252
    %v1254 = vmul.f32 %v1251, 1.442695
    %v1255 = vpow.pop %v1254
    %v1256 = vadd.f32 %v1253, 1.0
    %v1257 = vadd.f32 %v1255, 1.0
    %v1258 = vrcp.pop %v1256
    %v1259 = vmul.f32 1.0, %v1258
    %v1260 = vrcp.pop %v1257
    %v1261 = vmul.f32 1.0, %v1260
    %v1262 = vtanh.pop %v1249
    %v1263 = vmul.f32 %v1261, %v1157
    %v1264 = vmul.f32 %v1259, %v1262
    %v1265 = vadd.f32 %v1263, %v1264
    %v1266 = vtanh.pop %v1265
    %s1267 = smul.u32 6, 3
    %s1268 = smul.addr %s1267, 8
    %s1269 = scalar_lea.vmem [#allocation2], %s1268
    %v1270 = vld [vmem:[%s1269] sm:$0xff]
    %v1271 = vld [vmem:[%s1269 + $0x8] sm:$0xff]
    %v1272 = vld [vmem:[%s1269 + $0x10] sm:$0xff]
    %v1273 = vpack.c.bf16 %v1266, %v1266
    %1274 = vmatprep.subr.bf16.mxu0 %v579
    %1275 = vmatpush1.bf16.msra.mxu0 %v578
    %1276 = vmatprep.subr.bf16.mxu0 %v582
    %1277 = vmatpush1.bf16.msra.mxu0 %v581
    %1278 = vmatprep.subr.bf16.mxu0 %v585
    %1279 = vmatpush1.bf16.msra.mxu0 %v584
    %1280 = vmatprep.subr.bf16.mxu0 %v588
    %1281 = vmatpush1.bf16.msra.mxu0 %v587
    %1282 = vmatprep.subr.bf16.mxu0 %v591
    %1283 = vmatpush1.bf16.msra.mxu0 %v590
    %1284 = vmatprep.subr.bf16.mxu0 %v594
    %1285 = vmatpush1.bf16.msra.mxu0 %v593
    %1286 = vmatprep.subr.bf16.mxu0 %v597
    %1287 = vmatpush1.bf16.msra.mxu0 %v596
    %1288 = vmatprep.subr.bf16.mxu0 %v600
    %1289 = vmatpush1.bf16.msra.mxu0 %v599
    %1290 = vmatprep.subr.bf16.mxu0 0
    %1291 = vmatpush1.bf16.msra.mxu0 0
    %1292 = vmatprep.subr.bf16.mxu0 0
    %1293 = vmatpush1.bf16.msra.mxu0 0
    %1294 = vmatprep.subr.bf16.mxu0 0
    %1295 = vmatpush1.bf16.msra.mxu0 0
    %1296 = vmatprep.subr.bf16.mxu0 0
    %1297 = vmatpush1.bf16.msra.mxu0 0
    %1298 = vmatprep.subr.bf16.mxu0 0
    %1299 = vmatpush1.bf16.msra.mxu0 0
    %1300 = vmatprep.subr.bf16.mxu0 0
    %1301 = vmatpush1.bf16.msra.mxu0 0
    %1302 = vmatprep.subr.bf16.mxu0 0
    %1303 = vmatpush1.bf16.msra.mxu0 0
    %1304 = vmatprep.subr.bf16.mxu0 0
    %1305 = vmatpush1.bf16.msra.mxu0 0
    %1306 = vmatprep.mubr.bf16.mxu0 0
    %1307 = vmatmul.mubr.bf16.gmra.mrb[0].mxu0 %v1273
    %v1308 = vpop.f32.mrb[0].mxu0
    %v1309 = vadd.f32 0.0, %v1308
    %v1310 = vpop.f32.mrb[0].mxu0
    %v1311 = vadd.f32 0.0, %v1310
    %v1312 = vpop.f32.mrb[0].mxu0
    %v1313 = vpop.f32.mrb[0].mxu0
    %1314 = vdwg.mxu0
    %1315 = vmatprep.subr.bf16.mxu0 0
    %1316 = vmatpush1.bf16.msra.mxu0 %v580
    %1317 = vmatprep.subr.bf16.mxu0 0
    %1318 = vmatpush1.bf16.msra.mxu0 %v583
    %1319 = vmatprep.subr.bf16.mxu0 0
    %1320 = vmatpush1.bf16.msra.mxu0 %v586
    %1321 = vmatprep.subr.bf16.mxu0 0
    %1322 = vmatpush1.bf16.msra.mxu0 %v589
    %1323 = vmatprep.subr.bf16.mxu0 0
    %1324 = vmatpush1.bf16.msra.mxu0 %v592
    %1325 = vmatprep.subr.bf16.mxu0 0
    %1326 = vmatpush1.bf16.msra.mxu0 %v595
    %1327 = vmatprep.subr.bf16.mxu0 0
    %1328 = vmatpush1.bf16.msra.mxu0 %v598
    %1329 = vmatprep.subr.bf16.mxu0 0
    %1330 = vmatpush1.bf16.msra.mxu0 %v601
    %1331 = vmatprep.subr.bf16.mxu0 0
    %1332 = vmatpush1.bf16.msra.mxu0 0
    %1333 = vmatprep.subr.bf16.mxu0 0
    %1334 = vmatpush1.bf16.msra.mxu0 0
    %1335 = vmatprep.subr.bf16.mxu0 0
    %1336 = vmatpush1.bf16.msra.mxu0 0
    %1337 = vmatprep.subr.bf16.mxu0 0
    %1338 = vmatpush1.bf16.msra.mxu0 0
    %1339 = vmatprep.subr.bf16.mxu0 0
    %1340 = vmatpush1.bf16.msra.mxu0 0
    %1341 = vmatprep.subr.bf16.mxu0 0
    %1342 = vmatpush1.bf16.msra.mxu0 0
    %1343 = vmatprep.subr.bf16.mxu0 0
    %1344 = vmatpush1.bf16.msra.mxu0 0
    %1345 = vmatprep.subr.bf16.mxu0 0
    %1346 = vmatpush1.bf16.msra.mxu0 0
    %1347 = vmatprep.mubr.bf16.mxu0 0
    %1348 = vmatmul.mubr.bf16.gmra.mrb[0].mxu0 %v1273
    %v1349 = vpop.f32.mrb[0].mxu0
    %v1350 = vadd.f32 0.0, %v1349
    %v1351 = vpop.f32.mrb[0].mxu0
    %v1352 = vpop.f32.mrb[0].mxu0
    %v1353 = vpop.f32.mrb[0].mxu0
    %1354 = vdwg.mxu0
    %v1355 = vadd.f32 %v1270, %v1309
    %v1356 = vadd.f32 %v1271, %v1311
    %v1357 = vadd.f32 %v1272, %v1350
    %v1358 = vxor.u32 %v1355, 2147483648
    %v1359 = vxor.u32 %v1356, 2147483648
    %v1360 = vmul.f32 %v1358, 1.442695
    %v1361 = vpow.pop %v1360
    %v1362 = vmul.f32 %v1359, 1.442695
    %v1363 = vpow.pop %v1362
    %v1364 = vadd.f32 %v1361, 1.0
    %v1365 = vadd.f32 %v1363, 1.0
    %v1366 = vrcp.pop %v1364
    %v1367 = vmul.f32 1.0, %v1366
    %v1368 = vrcp.pop %v1365
    %v1369 = vmul.f32 1.0, %v1368
    %v1370 = vtanh.pop %v1357
    %v1371 = vmul.f32 %v1369, %v1265
    %v1372 = vmul.f32 %v1367, %v1370
    %v1373 = vadd.f32 %v1371, %v1372
    %v1374 = vtanh.pop %v1373
    %s1375 = smul.u32 7, 3
    %s1376 = smul.addr %s1375, 8
    %s1377 = scalar_lea.vmem [#allocation2], %s1376
    %v1378 = vld [vmem:[%s1377] sm:$0xff]
    %v1379 = vld [vmem:[%s1377 + $0x8] sm:$0xff]
    %v1380 = vld [vmem:[%s1377 + $0x10] sm:$0xff]
    %v1381 = vpack.c.bf16 %v1374, %v1374
    %1382 = vmatprep.subr.bf16.mxu0 %v579
    %1383 = vmatpush1.bf16.msra.mxu0 %v578
    %1384 = vmatprep.subr.bf16.mxu0 %v582
    %1385 = vmatpush1.bf16.msra.mxu0 %v581
    %1386 = vmatprep.subr.bf16.mxu0 %v585
    %1387 = vmatpush1.bf16.msra.mxu0 %v584
    %1388 = vmatprep.subr.bf16.mxu0 %v588
    %1389 = vmatpush1.bf16.msra.mxu0 %v587
    %1390 = vmatprep.subr.bf16.mxu0 %v591
    %1391 = vmatpush1.bf16.msra.mxu0 %v590
    %1392 = vmatprep.subr.bf16.mxu0 %v594
    %1393 = vmatpush1.bf16.msra.mxu0 %v593
    %1394 = vmatprep.subr.bf16.mxu0 %v597
    %1395 = vmatpush1.bf16.msra.mxu0 %v596
    %1396 = vmatprep.subr.bf16.mxu0 %v600
    %1397 = vmatpush1.bf16.msra.mxu0 %v599
    %1398 = vmatprep.subr.bf16.mxu0 0
    %1399 = vmatpush1.bf16.msra.mxu0 0
    %1400 = vmatprep.subr.bf16.mxu0 0
    %1401 = vmatpush1.bf16.msra.mxu0 0
    %1402 = vmatprep.subr.bf16.mxu0 0
    %1403 = vmatpush1.bf16.msra.mxu0 0
    %1404 = vmatprep.subr.bf16.mxu0 0
    %1405 = vmatpush1.bf16.msra.mxu0 0
    %1406 = vmatprep.subr.bf16.mxu0 0
    %1407 = vmatpush1.bf16.msra.mxu0 0
    %1408 = vmatprep.subr.bf16.mxu0 0
    %1409 = vmatpush1.bf16.msra.mxu0 0
    %1410 = vmatprep.subr.bf16.mxu0 0
    %1411 = vmatpush1.bf16.msra.mxu0 0
    %1412 = vmatprep.subr.bf16.mxu0 0
    %1413 = vmatpush1.bf16.msra.mxu0 0
    %1414 = vmatprep.mubr.bf16.mxu0 0
    %1415 = vmatmul.mubr.bf16.gmra.mrb[0].mxu0 %v1381
    %v1416 = vpop.f32.mrb[0].mxu0
    %v1417 = vadd.f32 0.0, %v1416
    %v1418 = vpop.f32.mrb[0].mxu0
    %v1419 = vadd.f32 0.0, %v1418
    %v1420 = vpop.f32.mrb[0].mxu0
    %v1421 = vpop.f32.mrb[0].mxu0
    %1422 = vdwg.mxu0
    %1423 = vmatprep.subr.bf16.mxu0 0
    %1424 = vmatpush1.bf16.msra.mxu0 %v580
    %1425 = vmatprep.subr.bf16.mxu0 0
    %1426 = vmatpush1.bf16.msra.mxu0 %v583
    %1427 = vmatprep.subr.bf16.mxu0 0
    %1428 = vmatpush1.bf16.msra.mxu0 %v586
    %1429 = vmatprep.subr.bf16.mxu0 0
    %1430 = vmatpush1.bf16.msra.mxu0 %v589
    %1431 = vmatprep.subr.bf16.mxu0 0
    %1432 = vmatpush1.bf16.msra.mxu0 %v592
    %1433 = vmatprep.subr.bf16.mxu0 0
    %1434 = vmatpush1.bf16.msra.mxu0 %v595
    %1435 = vmatprep.subr.bf16.mxu0 0
    %1436 = vmatpush1.bf16.msra.mxu0 %v598
    %1437 = vmatprep.subr.bf16.mxu0 0
    %1438 = vmatpush1.bf16.msra.mxu0 %v601
    %1439 = vmatprep.subr.bf16.mxu0 0
    %1440 = vmatpush1.bf16.msra.mxu0 0
    %1441 = vmatprep.subr.bf16.mxu0 0
    %1442 = vmatpush1.bf16.msra.mxu0 0
    %1443 = vmatprep.subr.bf16.mxu0 0
    %1444 = vmatpush1.bf16.msra.mxu0 0
    %1445 = vmatprep.subr.bf16.mxu0 0
    %1446 = vmatpush1.bf16.msra.mxu0 0
    %1447 = vmatprep.subr.bf16.mxu0 0
    %1448 = vmatpush1.bf16.msra.mxu0 0
    %1449 = vmatprep.subr.bf16.mxu0 0
    %1450 = vmatpush1.bf16.msra.mxu0 0
    %1451 = vmatprep.subr.bf16.mxu0 0
    %1452 = vmatpush1.bf16.msra.mxu0 0
    %1453 = vmatprep.subr.bf16.mxu0 0
    %1454 = vmatpush1.bf16.msra.mxu0 0
    %1455 = vmatprep.mubr.bf16.mxu0 0
    %1456 = vmatmul.mubr.bf16.gmra.mrb[0].mxu0 %v1381
    %v1457 = vpop.f32.mrb[0].mxu0
    %v1458 = vadd.f32 0.0, %v1457
    %v1459 = vpop.f32.mrb[0].mxu0
    %v1460 = vpop.f32.mrb[0].mxu0
    %v1461 = vpop.f32.mrb[0].mxu0
    %1462 = vdwg.mxu0
    %v1463 = vadd.f32 %v1378, %v1417
    %v1464 = vadd.f32 %v1379, %v1419
    %v1465 = vadd.f32 %v1380, %v1458
    %v1466 = vxor.u32 %v1463, 2147483648
    %v1467 = vxor.u32 %v1464, 2147483648
    %v1468 = vmul.f32 %v1466, 1.442695
    %v1469 = vpow.pop %v1468
    %v1470 = vmul.f32 %v1467, 1.442695
    %v1471 = vpow.pop %v1470
    %v1472 = vadd.f32 %v1469, 1.0
    %v1473 = vadd.f32 %v1471, 1.0
    %v1474 = vrcp.pop %v1472
    %v1475 = vmul.f32 1.0, %v1474
    %v1476 = vrcp.pop %v1473
    %v1477 = vmul.f32 1.0, %v1476
    %v1478 = vtanh.pop %v1465
    %v1479 = vmul.f32 %v1477, %v1373
    %v1480 = vmul.f32 %v1475, %v1478
    %v1481 = vadd.f32 %v1479, %v1480
    %v1482 = vtanh.pop %v1481
    %1483 = vst [vmem:[#allocation3] sm:$0xff] %v1482
    %1484 = vst [vmem:[#allocation4] sm:$0xff] %v1481
    // Predicated region
    $region46: #{tpu_custom_call.1} parent=1 // pred_check
      %p1485 = pneg %p80
    $region47: #{tpu_custom_call.1} parent=1 // pred_check_branch
      %1487 = sbr.rel (%p1485) target = $region49
    $region48: #{tpu_custom_call.1} parent=1 // pred_region
      %v1488 = vpack.c.bf16 %v1482, %v1482
      %v1489 = vld [vmem:[#allocation11] sm:$0xf]
      %v1490 = vld [vmem:[#allocation11 + $0x4] sm:$0xf]
      %v1491 = vld [vmem:[#allocation11 + $0x8] sm:$0xf]
      %v1492 = vld [vmem:[#allocation11 + $0xc] sm:$0xf]
      %v1493 = vld [vmem:[#allocation11 + $0x10] sm:$0xf]
      %v1494 = vld [vmem:[#allocation11 + $0x14] sm:$0xf]
      %v1495 = vld [vmem:[#allocation11 + $0x18] sm:$0xf]
      %v1496 = vld [vmem:[#allocation11 + $0x1c] sm:$0xf]
      %v1497 = vld [vmem:[#allocation11 + $0x20] sm:$0xf]
      %v1498 = vld [vmem:[#allocation11 + $0x24] sm:$0xf]
      %v1499 = vld [vmem:[#allocation11 + $0x28] sm:$0xf]
      %v1500 = vld [vmem:[#allocation11 + $0x2c] sm:$0xf]
      %v1501 = vld [vmem:[#allocation11 + $0x30] sm:$0xf]
      %v1502 = vld [vmem:[#allocation11 + $0x34] sm:$0xf]
      %v1503 = vld [vmem:[#allocation11 + $0x38] sm:$0xf]
      %v1504 = vld [vmem:[#allocation11 + $0x3c] sm:$0xf]
      %v1505 = vld [vmem:[%s5] sm:$0x1]
      %v1507 = vlaneseq
      %v1508 = vshrl.u32 %v1507, 7
      %v1509 = vsub.s32 0, %v1508
      %v1510 = vrot.slane %v1505, %v1509
      %v1528 = vunpack.c.l.b16 %v1489
      %v1529 = vunpack.c.l.b16 %v1490
      %v1530 = vunpack.c.l.b16 %v1491
      %v1531 = vunpack.c.l.b16 %v1492
      %v1532 = vunpack.c.l.b16 %v1493
      %v1533 = vunpack.c.l.b16 %v1494
      %v1534 = vunpack.c.l.b16 %v1495
      %v1535 = vunpack.c.l.b16 %v1496
      %v1536 = vunpack.c.l.b16 %v1497
      %v1537 = vunpack.c.l.b16 %v1498
      %v1538 = vunpack.c.l.b16 %v1499
      %v1539 = vunpack.c.l.b16 %v1500
      %v1540 = vunpack.c.l.b16 %v1501
      %v1541 = vunpack.c.l.b16 %v1502
      %v1542 = vunpack.c.l.b16 %v1503
      %v1543 = vunpack.c.l.b16 %v1504
      %v1544 = vpack.c.b16 %v1529, %v1528
      %v1545 = vpack.c.b16 %v1531, %v1530
      %v1546 = vpack.c.b16 %v1533, %v1532
      %v1547 = vpack.c.b16 %v1535, %v1534
      %v1548 = vpack.c.b16 %v1537, %v1536
      %v1549 = vpack.c.b16 %v1539, %v1538
      %v1550 = vpack.c.b16 %v1541, %v1540
      %v1551 = vpack.c.b16 %v1543, %v1542
      %1560 = vmatprep.subr.bf16.mxu0 0
      %1561 = vmatpush1.bf16.msra.mxu0 %v1544
      %1562 = vmatprep.subr.bf16.mxu0 0
      %1563 = vmatpush1.bf16.msra.mxu0 %v1545
      %1564 = vmatprep.subr.bf16.mxu0 0
      %1565 = vmatpush1.bf16.msra.mxu0 %v1546
      %1566 = vmatprep.subr.bf16.mxu0 0
      %1567 = vmatpush1.bf16.msra.mxu0 %v1547
      %1568 = vmatprep.subr.bf16.mxu0 0
      %1569 = vmatpush1.bf16.msra.mxu0 %v1548
      %1570 = vmatprep.subr.bf16.mxu0 0
      %1571 = vmatpush1.bf16.msra.mxu0 %v1549
      %1572 = vmatprep.subr.bf16.mxu0 0
      %1573 = vmatpush1.bf16.msra.mxu0 %v1550
      %1574 = vmatprep.subr.bf16.mxu0 0
      %1575 = vmatpush1.bf16.msra.mxu0 %v1551
      %1576 = vmatprep.subr.bf16.mxu0 0
      %1577 = vmatpush1.bf16.msra.mxu0 0
      %1578 = vmatprep.subr.bf16.mxu0 0
      %1579 = vmatpush1.bf16.msra.mxu0 0
      %1580 = vmatprep.subr.bf16.mxu0 0
      %1581 = vmatpush1.bf16.msra.mxu0 0
      %1582 = vmatprep.subr.bf16.mxu0 0
      %1583 = vmatpush1.bf16.msra.mxu0 0
      %1584 = vmatprep.subr.bf16.mxu0 0
      %1585 = vmatpush1.bf16.msra.mxu0 0
      %1586 = vmatprep.subr.bf16.mxu0 0
      %1587 = vmatpush1.bf16.msra.mxu0 0
      %1588 = vmatprep.subr.bf16.mxu0 0
      %1589 = vmatpush1.bf16.msra.mxu0 0
      %1590 = vmatprep.subr.bf16.mxu0 0
      %1591 = vmatpush1.bf16.msra.mxu0 0
      %1592 = vmatprep.mubr.bf16.mxu0 0
      %1593 = vmatmul.mubr.bf16.gmra.mrb[0].mxu0 %v1488
      %v1594 = vpop.f32.mrb[0].mxu0
      %v1595 = vadd.f32 %v1510, %v1594
      %v1596 = vpop.f32.mrb[0].mxu0
      %v1597 = vpop.f32.mrb[0].mxu0
      %v1598 = vpop.f32.mrb[0].mxu0
      %1599 = vdwg.mxu0
      %1600 = vst [vmem:[#allocation13] sm:$0xff] %v1595
    $region49: #{tpu_custom_call.1} parent=1 // pred_fallthru
      _
    // Predicated region
    $region50: #{tpu_custom_call.1} parent=1 // pred_check
      _
    $region51: #{tpu_custom_call.1} parent=1 // pred_check_branch
      %1602 = sbr.rel (0) target = $region53
    $region52: #{tpu_custom_call.1} parent=1 // pred_region
      %s1604 = ssub.s32 128, 128
      %1605 = vsyncadd [#allocation7], %s1604
      %s1607 = sshll.u32 [#allocation13], 4
      %s1608 = int_to_ptr.vmem [resolvable:$true] %s1607
      %1610 = dma.vmem_to_hbm [thread:$0]  %s1608, 128, %s6, [#allocation7]
    $region53: #{tpu_custom_call.1} parent=1 // pred_fallthru
      _
    // Predicated region
    $region54: #{tpu_custom_call.1} parent=1 // pred_check
      _
    $region55: #{tpu_custom_call.1} parent=1 // pred_check_branch
      %1612 = sbr.rel (0) target = $region57
    $region56: #{tpu_custom_call.1} parent=1 // pred_region
      %1613 = dma.done [#allocation7], 128
    $region57: #{tpu_custom_call.1} parent=1 // pred_fallthru
      _
    %1614 = vsyncpa [#allocation6], 1
    %1615 = vsyncpa [#allocation9], 1
    %1616 = vsyncpa [#allocation12], 1
    %1617 = vsyncpa [#allocation7], 1

</llo_original>
